<compile_context>
chip_gen: v7x
topology: tpu7x:2x2x1
jax: 0.10.0
libtpu: 0.0.40
codegen_flags: <defaults>
</compile_context>

<pallas_src>
import numpy as np

import jax
import jax.numpy as jnp
from jax.experimental import pallas as pl
from jax.experimental.pallas import tpu as pltpu


# --------------------------------------------------------------------------
# im2col as a compile-time 0/1 gather table (numpy, trace-time only).
# Row t*M + (a*Wo + b) of the table selects the input pixel read by tap
# (i, j) = (t // kw, t % kw) of output pixel (a, b); rows hitting the
# zero-padding ring stay all-zero, which realizes the padding for free.
# --------------------------------------------------------------------------
def _conv_gather_table(H, W, kh, kw, stride, pad):
    Ho = (H + 2 * pad - kh) // stride + 1
    Wo = (W + 2 * pad - kw) // stride + 1
    T, M = kh * kw, Ho * Wo
    G = np.zeros((T * M, H * W), np.float32)
    for i in range(kh):
        for j in range(kw):
            t = i * kw + j
            for a in range(Ho):
                h = stride * a + i - pad
                if not (0 <= h < H):
                    continue
                for b in range(Wo):
                    w = stride * b + j - pad
                    if 0 <= w < W:
                        G[t * M + a * Wo + b, h * W + w] = 1.0
    return G, Ho, Wo


# ------------------------------- kernel ------------------------------------
def _make_encoder_kernel(m_sizes, t_sizes):
    M1, M2, M3 = m_sizes
    T1, T2, T3 = t_sizes

    def conv_block(p, w_ref, b_ref, M, T, relu):
        # p: (T*M, Cin) bf16 gathered taps; w_ref: (T, Cin, Cout) bf16.
        acc = jnp.zeros((M, w_ref.shape[-1]), jnp.float32)
        for t in range(T):                                   # unrolled, static
            acc += jnp.dot(p[t * M:(t + 1) * M], w_ref[t],
                           preferred_element_type=jnp.float32)
        acc = acc + b_ref[...]                               # (1, Cout) f32 bias
        if relu:
            acc = jnp.maximum(acc, 0.0)
        return acc

    def kernel(x_ref, g1_ref, w1_ref, b1_ref, g2_ref, w2_ref, b2_ref,
               g3_ref, w3_ref, b3_ref, o_ref):
        x = x_ref[0]                                         # (H*W, Cin) bf16
        # conv1: gather taps on the MXU, per-tap matmul accumulate, ReLU.
        p1 = jnp.dot(g1_ref[...], x,
                     preferred_element_type=jnp.float32).astype(jnp.bfloat16)
        h1 = conv_block(p1, w1_ref, b1_ref, M1, T1, True).astype(jnp.bfloat16)
        # conv2 (gather table already folds conv1->conv2 zero padding).
        p2 = jnp.dot(g2_ref[...], h1,
                     preferred_element_type=jnp.float32).astype(jnp.bfloat16)
        h2 = conv_block(p2, w2_ref, b2_ref, M2, T2, True).astype(jnp.bfloat16)
        # conv3 (no ReLU), stored unpadded in f32.
        p3 = jnp.dot(g3_ref[...], h2,
                     preferred_element_type=jnp.float32).astype(jnp.bfloat16)
        o_ref[0] = conv_block(p3, w3_ref, b3_ref, M3, T3, False)

    return kernel


# ------------------------------ forward pass --------------------------------
@jax.jit
def encoder_forward(params, x_nchw):
    (w1, b1), (w2, b2), (w3, b3) = params
    N, Cin, H, W = x_nchw.shape
    C1, C2, Ce = w1.shape[0], w2.shape[0], w3.shape[0]

    # NCHW -> NHWC once, cast to bf16 before any further data movement.
    x2d = (jnp.transpose(x_nchw, (0, 2, 3, 1))
           .astype(jnp.bfloat16)
           .reshape(N, H * W, Cin))

    # Compile-time constant gather tables (baked into the executable).
    G1, H1, W1_ = _conv_gather_table(H, W, 4, 4, 2, 1)
    G2, H2, W2_ = _conv_gather_table(H1, W1_, 4, 4, 2, 1)
    G3, H3, W3_ = _conv_gather_table(H2, W2_, 3, 3, 1, 1)
    M1, M2, M3 = H1 * W1_, H2 * W2_, H3 * W3_
    T1, T2, T3 = G1.shape[0] // M1, G2.shape[0] // M2, G3.shape[0] // M3

    table_bytes = 2 * (G1.size + G2.size + G3.size)
    assert table_bytes < 8 * 1024 * 1024, (
        "fused small-image path only; gather tables too large for VMEM")

    g1 = jnp.asarray(G1, jnp.bfloat16)
    g2 = jnp.asarray(G2, jnp.bfloat16)
    g3 = jnp.asarray(G3, jnp.bfloat16)

    def tap_weights(w):  # OIHW -> (kh*kw, Cin, Cout) bf16
        Cout, Cin_, kh, kw = w.shape
        return (jnp.transpose(w, (2, 3, 1, 0))
                .reshape(kh * kw, Cin_, Cout)
                .astype(jnp.bfloat16))

    tw1, tw2, tw3 = tap_weights(w1), tap_weights(w2), tap_weights(w3)
    tb1 = b1.astype(jnp.float32).reshape(1, C1)
    tb2 = b2.astype(jnp.float32).reshape(1, C2)
    tb3 = b3.astype(jnp.float32).reshape(1, Ce)

    def resident(shape):
        return pl.BlockSpec(shape, lambda n, _s=len(shape): (0,) * _s)

    flops = 2 * N * (T1 * M1 * H * W * Cin + T1 * M1 * Cin * C1 +
                     T2 * M2 * M1 * C1 + T2 * M2 * C1 * C2 +
                     T3 * M3 * M2 * C2 + T3 * M3 * C2 * Ce)
    bytes_accessed = (x2d.size * 2 + (g1.size + g2.size + g3.size) * 2 +
                      (tw1.size + tw2.size + tw3.size) * 2 +
                      (C1 + C2 + Ce) * 4 + N * M3 * Ce * 4)

    out = pl.pallas_call(
        _make_encoder_kernel((M1, M2, M3), (T1, T2, T3)),
        out_shape=jax.ShapeDtypeStruct((N, M3, Ce), jnp.float32),
        grid=(N,),
        in_specs=[
            pl.BlockSpec((1, H * W, Cin), lambda n: (n, 0, 0)),   # per-image input
            resident(g1.shape), resident(tw1.shape), resident(tb1.shape),
            resident(g2.shape), resident(tw2.shape), resident(tb2.shape),
            resident(g3.shape), resident(tw3.shape), resident(tb3.shape),
        ],
        out_specs=pl.BlockSpec((1, M3, Ce), lambda n: (n, 0, 0)),
        compiler_params=pltpu.CompilerParams(
            dimension_semantics=("parallel",),        # 2 grid steps -> 2 TCs on v7x
            vmem_limit_bytes=32 * 1024 * 1024,        # ample on v5e/v6e/v7x
        ),
        cost_estimate=pl.CostEstimate(flops=flops, transcendentals=0,
                                      bytes_accessed=bytes_accessed),
    )(x2d, g1, tw1, tb1, g2, tw2, tb2, g3, tw3, tb3)

    # Tiny XLA epilogue: (N, Ho*Wo, emb) -> NCHW.
    return jnp.transpose(out.reshape(N, H3, W3_, Ce), (0, 3, 1, 2))


# --------------------------- parameter init ----------------------------------
def init_encoder_params(key, in_channels, embedding_dim):
    # Deterministic Kaiming-uniform-style init (matches nn.Conv2d default bounds).
    specs = [
        (32, in_channels, 4, 4),
        (64, 32, 4, 4),
        (embedding_dim, 64, 3, 3),
    ]
    params = []
    for i, shape in enumerate(specs):
        kw_, kb_ = jax.random.split(jax.random.fold_in(key, i))
        fan_in = shape[1] * shape[2] * shape[3]
        bound = 1.0 / jnp.sqrt(jnp.float32(fan_in))
        w = jax.random.uniform(kw_, shape, jnp.float32, -bound, bound)
        b = jax.random.uniform(kb_, (shape[0],), jnp.float32, -bound, bound)
        params.append((w, b))
    return params


def encoder_reference(params, x):
    # Pure-JAX f32 reference (XLA conv) to sanity-check the Pallas path.
    def conv(x, w, b, stride, padding):
        y = jax.lax.conv_general_dilated(
            x, w, window_strides=(stride, stride),
            padding=((padding, padding), (padding, padding)),
            dimension_numbers=("NCHW", "OIHW", "NCHW"))
        return y + b[None, :, None, None]
    (w1, b1), (w2, b2), (w3, b3) = params
    x = jax.nn.relu(conv(x, w1, b1, 2, 1))
    x = jax.nn.relu(conv(x, w2, b2, 2, 1))
    return conv(x, w3, b3, 1, 1)


if __name__ == "__main__":
    key = jax.random.PRNGKey(0)
    in_channels = 3
    embedding_dim = 8
    N, H, W = 2, 16, 16

    kx, kp = jax.random.split(key)
    x = jax.random.normal(kx, (N, in_channels, H, W), jnp.float32)
    params = init_encoder_params(kp, in_channels, embedding_dim)

    out = jax.block_until_ready(encoder_forward(params, x))
    assert out.shape == (N, embedding_dim, H // 4, W // 4), out.shape

    ref = jax.block_until_ready(encoder_reference(params, x))
    # bf16 MXU path -> slightly looser tolerance than the f32 reference.
    err = float(jnp.max(jnp.abs(out - ref)))
    assert jnp.allclose(out, ref, rtol=3e-2, atol=3e-2), err

    print("KERNEL_OK")
</pallas_src>

<mosaic_0001>
module attributes {stable_mosaic.version = 11 : i64} {
  func.func @kernel(%arg0: i32, %arg1: memref<1x256x3xbf16, #tpu.memory_space<vmem>>, %arg2: memref<1024x256xbf16, #tpu.memory_space<vmem>>, %arg3: memref<16x3x32xbf16, #tpu.memory_space<vmem>>, %arg4: memref<1x32xf32, #tpu.memory_space<vmem>>, %arg5: memref<256x64xbf16, #tpu.memory_space<vmem>>, %arg6: memref<16x32x64xbf16, #tpu.memory_space<vmem>>, %arg7: memref<1x64xf32, #tpu.memory_space<vmem>>, %arg8: memref<144x16xbf16, #tpu.memory_space<vmem>>, %arg9: memref<9x64x8xbf16, #tpu.memory_space<vmem>>, %arg10: memref<1x8xf32, #tpu.memory_space<vmem>>, %arg11: memref<1x16x8xf32, #tpu.memory_space<vmem>>) attributes {dimension_semantics = [#tpu.dimension_semantics<parallel>], iteration_bounds = array<i64: 2>, scalar_prefetch = 0 : i64, scratch_operands = 0 : i64, tpu.core_type = #tpu.core_type<tc>, window_params = [{transform_indices = @transform_0, window_bounds = array<i64: 1, 256, 3>}, {pipeline_mode = #tpu.pipeline_mode<synchronous>, transform_indices = @transform_1, window_bounds = array<i64: 1024, 256>}, {pipeline_mode = #tpu.pipeline_mode<synchronous>, transform_indices = @transform_2, window_bounds = array<i64: 16, 3, 32>}, {pipeline_mode = #tpu.pipeline_mode<synchronous>, transform_indices = @transform_3, window_bounds = array<i64: 1, 32>}, {pipeline_mode = #tpu.pipeline_mode<synchronous>, transform_indices = @transform_4, window_bounds = array<i64: 256, 64>}, {pipeline_mode = #tpu.pipeline_mode<synchronous>, transform_indices = @transform_5, window_bounds = array<i64: 16, 32, 64>}, {pipeline_mode = #tpu.pipeline_mode<synchronous>, transform_indices = @transform_6, window_bounds = array<i64: 1, 64>}, {pipeline_mode = #tpu.pipeline_mode<synchronous>, transform_indices = @transform_7, window_bounds = array<i64: 144, 16>}, {pipeline_mode = #tpu.pipeline_mode<synchronous>, transform_indices = @transform_8, window_bounds = array<i64: 9, 64, 8>}, {pipeline_mode = #tpu.pipeline_mode<synchronous>, transform_indices = @transform_9, window_bounds = array<i64: 1, 8>}, {transform_indices = @transform_10, window_bounds = array<i64: 1, 16, 8>}]} {
    %c0 = arith.constant 0 : index
    %c0_0 = arith.constant 0 : index
    %c0_1 = arith.constant 0 : index
    %0 = vector.load %arg1[%c0, %c0_0, %c0_1] : memref<1x256x3xbf16, #tpu.memory_space<vmem>>, vector<1x256x3xbf16>
    %1 = vector.shape_cast %0 : vector<1x256x3xbf16> to vector<256x3xbf16>
    %c0_2 = arith.constant 0 : index
    %c0_3 = arith.constant 0 : index
    %2 = vector.load %arg2[%c0_2, %c0_3] : memref<1024x256xbf16, #tpu.memory_space<vmem>>, vector<1024x256xbf16>
    %cst = arith.constant dense<0.000000e+00> : vector<1024x3xf32>
    %3 = tpu.matmul %2, %1, %cst {dimension_numbers = #tpu.dot_dimension_numbers<[1], [0], [0], [1], [0, 0, 1, 1], [], []>} : vector<1024x256xbf16>, vector<256x3xbf16>, vector<1024x3xf32> -> vector<1024x3xf32>
    %4 = arith.truncf %3 : vector<1024x3xf32> to vector<1024x3xbf16>
    %cst_4 = arith.constant 0.000000e+00 : f32
    %5 = vector.broadcast %cst_4 : f32 to vector<64x32xf32>
    %6 = vector.extract_strided_slice %4 {offsets = [0, 0], sizes = [64, 3], strides = [1, 1]} : vector<1024x3xbf16> to vector<64x3xbf16>
    %c0_5 = arith.constant 0 : index
    %c0_6 = arith.constant 0 : index
    %c0_7 = arith.constant 0 : index
    %7 = vector.load %arg3[%c0_5, %c0_6, %c0_7] : memref<16x3x32xbf16, #tpu.memory_space<vmem>>, vector<1x3x32xbf16>
    %8 = vector.shape_cast %7 : vector<1x3x32xbf16> to vector<3x32xbf16>
    %cst_8 = arith.constant dense<0.000000e+00> : vector<64x32xf32>
    %9 = tpu.matmul %6, %8, %cst_8 {dimension_numbers = #tpu.dot_dimension_numbers<[1], [0], [0], [1], [0, 0, 1, 1], [], []>} : vector<64x3xbf16>, vector<3x32xbf16>, vector<64x32xf32> -> vector<64x32xf32>
    %10 = arith.addf %5, %9 : vector<64x32xf32>
    %11 = vector.extract_strided_slice %4 {offsets = [64, 0], sizes = [64, 3], strides = [1, 1]} : vector<1024x3xbf16> to vector<64x3xbf16>
    %c1 = arith.constant 1 : index
    %c0_9 = arith.constant 0 : index
    %c0_10 = arith.constant 0 : index
    %12 = vector.load %arg3[%c1, %c0_9, %c0_10] : memref<16x3x32xbf16, #tpu.memory_space<vmem>>, vector<1x3x32xbf16>
    %13 = vector.shape_cast %12 : vector<1x3x32xbf16> to vector<3x32xbf16>
    %cst_11 = arith.constant dense<0.000000e+00> : vector<64x32xf32>
    %14 = tpu.matmul %11, %13, %cst_11 {dimension_numbers = #tpu.dot_dimension_numbers<[1], [0], [0], [1], [0, 0, 1, 1], [], []>} : vector<64x3xbf16>, vector<3x32xbf16>, vector<64x32xf32> -> vector<64x32xf32>
    %15 = arith.addf %10, %14 : vector<64x32xf32>
    %16 = vector.extract_strided_slice %4 {offsets = [128, 0], sizes = [64, 3], strides = [1, 1]} : vector<1024x3xbf16> to vector<64x3xbf16>
    %c2 = arith.constant 2 : index
    %c0_12 = arith.constant 0 : index
    %c0_13 = arith.constant 0 : index
    %17 = vector.load %arg3[%c2, %c0_12, %c0_13] : memref<16x3x32xbf16, #tpu.memory_space<vmem>>, vector<1x3x32xbf16>
    %18 = vector.shape_cast %17 : vector<1x3x32xbf16> to vector<3x32xbf16>
    %cst_14 = arith.constant dense<0.000000e+00> : vector<64x32xf32>
    %19 = tpu.matmul %16, %18, %cst_14 {dimension_numbers = #tpu.dot_dimension_numbers<[1], [0], [0], [1], [0, 0, 1, 1], [], []>} : vector<64x3xbf16>, vector<3x32xbf16>, vector<64x32xf32> -> vector<64x32xf32>
    %20 = arith.addf %15, %19 : vector<64x32xf32>
    %21 = vector.extract_strided_slice %4 {offsets = [192, 0], sizes = [64, 3], strides = [1, 1]} : vector<1024x3xbf16> to vector<64x3xbf16>
    %c3 = arith.constant 3 : index
    %c0_15 = arith.constant 0 : index
    %c0_16 = arith.constant 0 : index
    %22 = vector.load %arg3[%c3, %c0_15, %c0_16] : memref<16x3x32xbf16, #tpu.memory_space<vmem>>, vector<1x3x32xbf16>
    %23 = vector.shape_cast %22 : vector<1x3x32xbf16> to vector<3x32xbf16>
    %cst_17 = arith.constant dense<0.000000e+00> : vector<64x32xf32>
    %24 = tpu.matmul %21, %23, %cst_17 {dimension_numbers = #tpu.dot_dimension_numbers<[1], [0], [0], [1], [0, 0, 1, 1], [], []>} : vector<64x3xbf16>, vector<3x32xbf16>, vector<64x32xf32> -> vector<64x32xf32>
    %25 = arith.addf %20, %24 : vector<64x32xf32>
    %26 = vector.extract_strided_slice %4 {offsets = [256, 0], sizes = [64, 3], strides = [1, 1]} : vector<1024x3xbf16> to vector<64x3xbf16>
    %c4 = arith.constant 4 : index
    %c0_18 = arith.constant 0 : index
    %c0_19 = arith.constant 0 : index
    %27 = vector.load %arg3[%c4, %c0_18, %c0_19] : memref<16x3x32xbf16, #tpu.memory_space<vmem>>, vector<1x3x32xbf16>
    %28 = vector.shape_cast %27 : vector<1x3x32xbf16> to vector<3x32xbf16>
    %cst_20 = arith.constant dense<0.000000e+00> : vector<64x32xf32>
    %29 = tpu.matmul %26, %28, %cst_20 {dimension_numbers = #tpu.dot_dimension_numbers<[1], [0], [0], [1], [0, 0, 1, 1], [], []>} : vector<64x3xbf16>, vector<3x32xbf16>, vector<64x32xf32> -> vector<64x32xf32>
    %30 = arith.addf %25, %29 : vector<64x32xf32>
    %31 = vector.extract_strided_slice %4 {offsets = [320, 0], sizes = [64, 3], strides = [1, 1]} : vector<1024x3xbf16> to vector<64x3xbf16>
    %c5 = arith.constant 5 : index
    %c0_21 = arith.constant 0 : index
    %c0_22 = arith.constant 0 : index
    %32 = vector.load %arg3[%c5, %c0_21, %c0_22] : memref<16x3x32xbf16, #tpu.memory_space<vmem>>, vector<1x3x32xbf16>
    %33 = vector.shape_cast %32 : vector<1x3x32xbf16> to vector<3x32xbf16>
    %cst_23 = arith.constant dense<0.000000e+00> : vector<64x32xf32>
    %34 = tpu.matmul %31, %33, %cst_23 {dimension_numbers = #tpu.dot_dimension_numbers<[1], [0], [0], [1], [0, 0, 1, 1], [], []>} : vector<64x3xbf16>, vector<3x32xbf16>, vector<64x32xf32> -> vector<64x32xf32>
    %35 = arith.addf %30, %34 : vector<64x32xf32>
    %36 = vector.extract_strided_slice %4 {offsets = [384, 0], sizes = [64, 3], strides = [1, 1]} : vector<1024x3xbf16> to vector<64x3xbf16>
    %c6 = arith.constant 6 : index
    %c0_24 = arith.constant 0 : index
    %c0_25 = arith.constant 0 : index
    %37 = vector.load %arg3[%c6, %c0_24, %c0_25] : memref<16x3x32xbf16, #tpu.memory_space<vmem>>, vector<1x3x32xbf16>
    %38 = vector.shape_cast %37 : vector<1x3x32xbf16> to vector<3x32xbf16>
    %cst_26 = arith.constant dense<0.000000e+00> : vector<64x32xf32>
    %39 = tpu.matmul %36, %38, %cst_26 {dimension_numbers = #tpu.dot_dimension_numbers<[1], [0], [0], [1], [0, 0, 1, 1], [], []>} : vector<64x3xbf16>, vector<3x32xbf16>, vector<64x32xf32> -> vector<64x32xf32>
    %40 = arith.addf %35, %39 : vector<64x32xf32>
    %41 = vector.extract_strided_slice %4 {offsets = [448, 0], sizes = [64, 3], strides = [1, 1]} : vector<1024x3xbf16> to vector<64x3xbf16>
    %c7 = arith.constant 7 : index
    %c0_27 = arith.constant 0 : index
    %c0_28 = arith.constant 0 : index
    %42 = vector.load %arg3[%c7, %c0_27, %c0_28] : memref<16x3x32xbf16, #tpu.memory_space<vmem>>, vector<1x3x32xbf16>
    %43 = vector.shape_cast %42 : vector<1x3x32xbf16> to vector<3x32xbf16>
    %cst_29 = arith.constant dense<0.000000e+00> : vector<64x32xf32>
    %44 = tpu.matmul %41, %43, %cst_29 {dimension_numbers = #tpu.dot_dimension_numbers<[1], [0], [0], [1], [0, 0, 1, 1], [], []>} : vector<64x3xbf16>, vector<3x32xbf16>, vector<64x32xf32> -> vector<64x32xf32>
    %45 = arith.addf %40, %44 : vector<64x32xf32>
    %46 = vector.extract_strided_slice %4 {offsets = [512, 0], sizes = [64, 3], strides = [1, 1]} : vector<1024x3xbf16> to vector<64x3xbf16>
    %c8 = arith.constant 8 : index
    %c0_30 = arith.constant 0 : index
    %c0_31 = arith.constant 0 : index
    %47 = vector.load %arg3[%c8, %c0_30, %c0_31] : memref<16x3x32xbf16, #tpu.memory_space<vmem>>, vector<1x3x32xbf16>
    %48 = vector.shape_cast %47 : vector<1x3x32xbf16> to vector<3x32xbf16>
    %cst_32 = arith.constant dense<0.000000e+00> : vector<64x32xf32>
    %49 = tpu.matmul %46, %48, %cst_32 {dimension_numbers = #tpu.dot_dimension_numbers<[1], [0], [0], [1], [0, 0, 1, 1], [], []>} : vector<64x3xbf16>, vector<3x32xbf16>, vector<64x32xf32> -> vector<64x32xf32>
    %50 = arith.addf %45, %49 : vector<64x32xf32>
    %51 = vector.extract_strided_slice %4 {offsets = [576, 0], sizes = [64, 3], strides = [1, 1]} : vector<1024x3xbf16> to vector<64x3xbf16>
    %c9 = arith.constant 9 : index
    %c0_33 = arith.constant 0 : index
    %c0_34 = arith.constant 0 : index
    %52 = vector.load %arg3[%c9, %c0_33, %c0_34] : memref<16x3x32xbf16, #tpu.memory_space<vmem>>, vector<1x3x32xbf16>
    %53 = vector.shape_cast %52 : vector<1x3x32xbf16> to vector<3x32xbf16>
    %cst_35 = arith.constant dense<0.000000e+00> : vector<64x32xf32>
    %54 = tpu.matmul %51, %53, %cst_35 {dimension_numbers = #tpu.dot_dimension_numbers<[1], [0], [0], [1], [0, 0, 1, 1], [], []>} : vector<64x3xbf16>, vector<3x32xbf16>, vector<64x32xf32> -> vector<64x32xf32>
    %55 = arith.addf %50, %54 : vector<64x32xf32>
    %56 = vector.extract_strided_slice %4 {offsets = [640, 0], sizes = [64, 3], strides = [1, 1]} : vector<1024x3xbf16> to vector<64x3xbf16>
    %c10 = arith.constant 10 : index
    %c0_36 = arith.constant 0 : index
    %c0_37 = arith.constant 0 : index
    %57 = vector.load %arg3[%c10, %c0_36, %c0_37] : memref<16x3x32xbf16, #tpu.memory_space<vmem>>, vector<1x3x32xbf16>
    %58 = vector.shape_cast %57 : vector<1x3x32xbf16> to vector<3x32xbf16>
    %cst_38 = arith.constant dense<0.000000e+00> : vector<64x32xf32>
    %59 = tpu.matmul %56, %58, %cst_38 {dimension_numbers = #tpu.dot_dimension_numbers<[1], [0], [0], [1], [0, 0, 1, 1], [], []>} : vector<64x3xbf16>, vector<3x32xbf16>, vector<64x32xf32> -> vector<64x32xf32>
    %60 = arith.addf %55, %59 : vector<64x32xf32>
    %61 = vector.extract_strided_slice %4 {offsets = [704, 0], sizes = [64, 3], strides = [1, 1]} : vector<1024x3xbf16> to vector<64x3xbf16>
    %c11 = arith.constant 11 : index
    %c0_39 = arith.constant 0 : index
    %c0_40 = arith.constant 0 : index
    %62 = vector.load %arg3[%c11, %c0_39, %c0_40] : memref<16x3x32xbf16, #tpu.memory_space<vmem>>, vector<1x3x32xbf16>
    %63 = vector.shape_cast %62 : vector<1x3x32xbf16> to vector<3x32xbf16>
    %cst_41 = arith.constant dense<0.000000e+00> : vector<64x32xf32>
    %64 = tpu.matmul %61, %63, %cst_41 {dimension_numbers = #tpu.dot_dimension_numbers<[1], [0], [0], [1], [0, 0, 1, 1], [], []>} : vector<64x3xbf16>, vector<3x32xbf16>, vector<64x32xf32> -> vector<64x32xf32>
    %65 = arith.addf %60, %64 : vector<64x32xf32>
    %66 = vector.extract_strided_slice %4 {offsets = [768, 0], sizes = [64, 3], strides = [1, 1]} : vector<1024x3xbf16> to vector<64x3xbf16>
    %c12 = arith.constant 12 : index
    %c0_42 = arith.constant 0 : index
    %c0_43 = arith.constant 0 : index
    %67 = vector.load %arg3[%c12, %c0_42, %c0_43] : memref<16x3x32xbf16, #tpu.memory_space<vmem>>, vector<1x3x32xbf16>
    %68 = vector.shape_cast %67 : vector<1x3x32xbf16> to vector<3x32xbf16>
    %cst_44 = arith.constant dense<0.000000e+00> : vector<64x32xf32>
    %69 = tpu.matmul %66, %68, %cst_44 {dimension_numbers = #tpu.dot_dimension_numbers<[1], [0], [0], [1], [0, 0, 1, 1], [], []>} : vector<64x3xbf16>, vector<3x32xbf16>, vector<64x32xf32> -> vector<64x32xf32>
    %70 = arith.addf %65, %69 : vector<64x32xf32>
    %71 = vector.extract_strided_slice %4 {offsets = [832, 0], sizes = [64, 3], strides = [1, 1]} : vector<1024x3xbf16> to vector<64x3xbf16>
    %c13 = arith.constant 13 : index
    %c0_45 = arith.constant 0 : index
    %c0_46 = arith.constant 0 : index
    %72 = vector.load %arg3[%c13, %c0_45, %c0_46] : memref<16x3x32xbf16, #tpu.memory_space<vmem>>, vector<1x3x32xbf16>
    %73 = vector.shape_cast %72 : vector<1x3x32xbf16> to vector<3x32xbf16>
    %cst_47 = arith.constant dense<0.000000e+00> : vector<64x32xf32>
    %74 = tpu.matmul %71, %73, %cst_47 {dimension_numbers = #tpu.dot_dimension_numbers<[1], [0], [0], [1], [0, 0, 1, 1], [], []>} : vector<64x3xbf16>, vector<3x32xbf16>, vector<64x32xf32> -> vector<64x32xf32>
    %75 = arith.addf %70, %74 : vector<64x32xf32>
    %76 = vector.extract_strided_slice %4 {offsets = [896, 0], sizes = [64, 3], strides = [1, 1]} : vector<1024x3xbf16> to vector<64x3xbf16>
    %c14 = arith.constant 14 : index
    %c0_48 = arith.constant 0 : index
    %c0_49 = arith.constant 0 : index
    %77 = vector.load %arg3[%c14, %c0_48, %c0_49] : memref<16x3x32xbf16, #tpu.memory_space<vmem>>, vector<1x3x32xbf16>
    %78 = vector.shape_cast %77 : vector<1x3x32xbf16> to vector<3x32xbf16>
    %cst_50 = arith.constant dense<0.000000e+00> : vector<64x32xf32>
    %79 = tpu.matmul %76, %78, %cst_50 {dimension_numbers = #tpu.dot_dimension_numbers<[1], [0], [0], [1], [0, 0, 1, 1], [], []>} : vector<64x3xbf16>, vector<3x32xbf16>, vector<64x32xf32> -> vector<64x32xf32>
    %80 = arith.addf %75, %79 : vector<64x32xf32>
    %81 = vector.extract_strided_slice %4 {offsets = [960, 0], sizes = [64, 3], strides = [1, 1]} : vector<1024x3xbf16> to vector<64x3xbf16>
    %c15 = arith.constant 15 : index
    %c0_51 = arith.constant 0 : index
    %c0_52 = arith.constant 0 : index
    %82 = vector.load %arg3[%c15, %c0_51, %c0_52] : memref<16x3x32xbf16, #tpu.memory_space<vmem>>, vector<1x3x32xbf16>
    %83 = vector.shape_cast %82 : vector<1x3x32xbf16> to vector<3x32xbf16>
    %cst_53 = arith.constant dense<0.000000e+00> : vector<64x32xf32>
    %84 = tpu.matmul %81, %83, %cst_53 {dimension_numbers = #tpu.dot_dimension_numbers<[1], [0], [0], [1], [0, 0, 1, 1], [], []>} : vector<64x3xbf16>, vector<3x32xbf16>, vector<64x32xf32> -> vector<64x32xf32>
    %85 = arith.addf %80, %84 : vector<64x32xf32>
    %c0_54 = arith.constant 0 : index
    %c0_55 = arith.constant 0 : index
    %86 = vector.load %arg4[%c0_54, %c0_55] : memref<1x32xf32, #tpu.memory_space<vmem>>, vector<1x32xf32>
    %87 = vector.broadcast %86 : vector<1x32xf32> to vector<64x32xf32>
    %88 = arith.addf %85, %87 : vector<64x32xf32>
    %cst_56 = arith.constant 0.000000e+00 : f32
    %89 = vector.broadcast %cst_56 : f32 to vector<64x32xf32>
    %90 = arith.maximumf %88, %89 : vector<64x32xf32>
    %91 = arith.truncf %90 : vector<64x32xf32> to vector<64x32xbf16>
    %c0_57 = arith.constant 0 : index
    %c0_58 = arith.constant 0 : index
    %92 = vector.load %arg5[%c0_57, %c0_58] : memref<256x64xbf16, #tpu.memory_space<vmem>>, vector<256x64xbf16>
    %cst_59 = arith.constant dense<0.000000e+00> : vector<256x32xf32>
    %93 = tpu.matmul %92, %91, %cst_59 {dimension_numbers = #tpu.dot_dimension_numbers<[1], [0], [0], [1], [0, 0, 1, 1], [], []>} : vector<256x64xbf16>, vector<64x32xbf16>, vector<256x32xf32> -> vector<256x32xf32>
    %94 = arith.truncf %93 : vector<256x32xf32> to vector<256x32xbf16>
    %cst_60 = arith.constant 0.000000e+00 : f32
    %95 = vector.broadcast %cst_60 : f32 to vector<16x64xf32>
    %96 = vector.extract_strided_slice %94 {offsets = [0, 0], sizes = [16, 32], strides = [1, 1]} : vector<256x32xbf16> to vector<16x32xbf16>
    %c0_61 = arith.constant 0 : index
    %c0_62 = arith.constant 0 : index
    %c0_63 = arith.constant 0 : index
    %97 = vector.load %arg6[%c0_61, %c0_62, %c0_63] : memref<16x32x64xbf16, #tpu.memory_space<vmem>>, vector<1x32x64xbf16>
    %98 = vector.shape_cast %97 : vector<1x32x64xbf16> to vector<32x64xbf16>
    %cst_64 = arith.constant dense<0.000000e+00> : vector<16x64xf32>
    %99 = tpu.matmul %96, %98, %cst_64 {dimension_numbers = #tpu.dot_dimension_numbers<[1], [0], [0], [1], [0, 0, 1, 1], [], []>} : vector<16x32xbf16>, vector<32x64xbf16>, vector<16x64xf32> -> vector<16x64xf32>
    %100 = arith.addf %95, %99 : vector<16x64xf32>
    %101 = vector.extract_strided_slice %94 {offsets = [16, 0], sizes = [16, 32], strides = [1, 1]} : vector<256x32xbf16> to vector<16x32xbf16>
    %c1_65 = arith.constant 1 : index
    %c0_66 = arith.constant 0 : index
    %c0_67 = arith.constant 0 : index
    %102 = vector.load %arg6[%c1_65, %c0_66, %c0_67] : memref<16x32x64xbf16, #tpu.memory_space<vmem>>, vector<1x32x64xbf16>
    %103 = vector.shape_cast %102 : vector<1x32x64xbf16> to vector<32x64xbf16>
    %cst_68 = arith.constant dense<0.000000e+00> : vector<16x64xf32>
    %104 = tpu.matmul %101, %103, %cst_68 {dimension_numbers = #tpu.dot_dimension_numbers<[1], [0], [0], [1], [0, 0, 1, 1], [], []>} : vector<16x32xbf16>, vector<32x64xbf16>, vector<16x64xf32> -> vector<16x64xf32>
    %105 = arith.addf %100, %104 : vector<16x64xf32>
    %106 = vector.extract_strided_slice %94 {offsets = [32, 0], sizes = [16, 32], strides = [1, 1]} : vector<256x32xbf16> to vector<16x32xbf16>
    %c2_69 = arith.constant 2 : index
    %c0_70 = arith.constant 0 : index
    %c0_71 = arith.constant 0 : index
    %107 = vector.load %arg6[%c2_69, %c0_70, %c0_71] : memref<16x32x64xbf16, #tpu.memory_space<vmem>>, vector<1x32x64xbf16>
    %108 = vector.shape_cast %107 : vector<1x32x64xbf16> to vector<32x64xbf16>
    %cst_72 = arith.constant dense<0.000000e+00> : vector<16x64xf32>
    %109 = tpu.matmul %106, %108, %cst_72 {dimension_numbers = #tpu.dot_dimension_numbers<[1], [0], [0], [1], [0, 0, 1, 1], [], []>} : vector<16x32xbf16>, vector<32x64xbf16>, vector<16x64xf32> -> vector<16x64xf32>
    %110 = arith.addf %105, %109 : vector<16x64xf32>
    %111 = vector.extract_strided_slice %94 {offsets = [48, 0], sizes = [16, 32], strides = [1, 1]} : vector<256x32xbf16> to vector<16x32xbf16>
    %c3_73 = arith.constant 3 : index
    %c0_74 = arith.constant 0 : index
    %c0_75 = arith.constant 0 : index
    %112 = vector.load %arg6[%c3_73, %c0_74, %c0_75] : memref<16x32x64xbf16, #tpu.memory_space<vmem>>, vector<1x32x64xbf16>
    %113 = vector.shape_cast %112 : vector<1x32x64xbf16> to vector<32x64xbf16>
    %cst_76 = arith.constant dense<0.000000e+00> : vector<16x64xf32>
    %114 = tpu.matmul %111, %113, %cst_76 {dimension_numbers = #tpu.dot_dimension_numbers<[1], [0], [0], [1], [0, 0, 1, 1], [], []>} : vector<16x32xbf16>, vector<32x64xbf16>, vector<16x64xf32> -> vector<16x64xf32>
    %115 = arith.addf %110, %114 : vector<16x64xf32>
    %116 = vector.extract_strided_slice %94 {offsets = [64, 0], sizes = [16, 32], strides = [1, 1]} : vector<256x32xbf16> to vector<16x32xbf16>
    %c4_77 = arith.constant 4 : index
    %c0_78 = arith.constant 0 : index
    %c0_79 = arith.constant 0 : index
    %117 = vector.load %arg6[%c4_77, %c0_78, %c0_79] : memref<16x32x64xbf16, #tpu.memory_space<vmem>>, vector<1x32x64xbf16>
    %118 = vector.shape_cast %117 : vector<1x32x64xbf16> to vector<32x64xbf16>
    %cst_80 = arith.constant dense<0.000000e+00> : vector<16x64xf32>
    %119 = tpu.matmul %116, %118, %cst_80 {dimension_numbers = #tpu.dot_dimension_numbers<[1], [0], [0], [1], [0, 0, 1, 1], [], []>} : vector<16x32xbf16>, vector<32x64xbf16>, vector<16x64xf32> -> vector<16x64xf32>
    %120 = arith.addf %115, %119 : vector<16x64xf32>
    %121 = vector.extract_strided_slice %94 {offsets = [80, 0], sizes = [16, 32], strides = [1, 1]} : vector<256x32xbf16> to vector<16x32xbf16>
    %c5_81 = arith.constant 5 : index
    %c0_82 = arith.constant 0 : index
    %c0_83 = arith.constant 0 : index
    %122 = vector.load %arg6[%c5_81, %c0_82, %c0_83] : memref<16x32x64xbf16, #tpu.memory_space<vmem>>, vector<1x32x64xbf16>
    %123 = vector.shape_cast %122 : vector<1x32x64xbf16> to vector<32x64xbf16>
    %cst_84 = arith.constant dense<0.000000e+00> : vector<16x64xf32>
    %124 = tpu.matmul %121, %123, %cst_84 {dimension_numbers = #tpu.dot_dimension_numbers<[1], [0], [0], [1], [0, 0, 1, 1], [], []>} : vector<16x32xbf16>, vector<32x64xbf16>, vector<16x64xf32> -> vector<16x64xf32>
    %125 = arith.addf %120, %124 : vector<16x64xf32>
    %126 = vector.extract_strided_slice %94 {offsets = [96, 0], sizes = [16, 32], strides = [1, 1]} : vector<256x32xbf16> to vector<16x32xbf16>
    %c6_85 = arith.constant 6 : index
    %c0_86 = arith.constant 0 : index
    %c0_87 = arith.constant 0 : index
    %127 = vector.load %arg6[%c6_85, %c0_86, %c0_87] : memref<16x32x64xbf16, #tpu.memory_space<vmem>>, vector<1x32x64xbf16>
    %128 = vector.shape_cast %127 : vector<1x32x64xbf16> to vector<32x64xbf16>
    %cst_88 = arith.constant dense<0.000000e+00> : vector<16x64xf32>
    %129 = tpu.matmul %126, %128, %cst_88 {dimension_numbers = #tpu.dot_dimension_numbers<[1], [0], [0], [1], [0, 0, 1, 1], [], []>} : vector<16x32xbf16>, vector<32x64xbf16>, vector<16x64xf32> -> vector<16x64xf32>
    %130 = arith.addf %125, %129 : vector<16x64xf32>
    %131 = vector.extract_strided_slice %94 {offsets = [112, 0], sizes = [16, 32], strides = [1, 1]} : vector<256x32xbf16> to vector<16x32xbf16>
    %c7_89 = arith.constant 7 : index
    %c0_90 = arith.constant 0 : index
    %c0_91 = arith.constant 0 : index
    %132 = vector.load %arg6[%c7_89, %c0_90, %c0_91] : memref<16x32x64xbf16, #tpu.memory_space<vmem>>, vector<1x32x64xbf16>
    %133 = vector.shape_cast %132 : vector<1x32x64xbf16> to vector<32x64xbf16>
    %cst_92 = arith.constant dense<0.000000e+00> : vector<16x64xf32>
    %134 = tpu.matmul %131, %133, %cst_92 {dimension_numbers = #tpu.dot_dimension_numbers<[1], [0], [0], [1], [0, 0, 1, 1], [], []>} : vector<16x32xbf16>, vector<32x64xbf16>, vector<16x64xf32> -> vector<16x64xf32>
    %135 = arith.addf %130, %134 : vector<16x64xf32>
    %136 = vector.extract_strided_slice %94 {offsets = [128, 0], sizes = [16, 32], strides = [1, 1]} : vector<256x32xbf16> to vector<16x32xbf16>
    %c8_93 = arith.constant 8 : index
    %c0_94 = arith.constant 0 : index
    %c0_95 = arith.constant 0 : index
    %137 = vector.load %arg6[%c8_93, %c0_94, %c0_95] : memref<16x32x64xbf16, #tpu.memory_space<vmem>>, vector<1x32x64xbf16>
    %138 = vector.shape_cast %137 : vector<1x32x64xbf16> to vector<32x64xbf16>
    %cst_96 = arith.constant dense<0.000000e+00> : vector<16x64xf32>
    %139 = tpu.matmul %136, %138, %cst_96 {dimension_numbers = #tpu.dot_dimension_numbers<[1], [0], [0], [1], [0, 0, 1, 1], [], []>} : vector<16x32xbf16>, vector<32x64xbf16>, vector<16x64xf32> -> vector<16x64xf32>
    %140 = arith.addf %135, %139 : vector<16x64xf32>
    %141 = vector.extract_strided_slice %94 {offsets = [144, 0], sizes = [16, 32], strides = [1, 1]} : vector<256x32xbf16> to vector<16x32xbf16>
    %c9_97 = arith.constant 9 : index
    %c0_98 = arith.constant 0 : index
    %c0_99 = arith.constant 0 : index
    %142 = vector.load %arg6[%c9_97, %c0_98, %c0_99] : memref<16x32x64xbf16, #tpu.memory_space<vmem>>, vector<1x32x64xbf16>
    %143 = vector.shape_cast %142 : vector<1x32x64xbf16> to vector<32x64xbf16>
    %cst_100 = arith.constant dense<0.000000e+00> : vector<16x64xf32>
    %144 = tpu.matmul %141, %143, %cst_100 {dimension_numbers = #tpu.dot_dimension_numbers<[1], [0], [0], [1], [0, 0, 1, 1], [], []>} : vector<16x32xbf16>, vector<32x64xbf16>, vector<16x64xf32> -> vector<16x64xf32>
    %145 = arith.addf %140, %144 : vector<16x64xf32>
    %146 = vector.extract_strided_slice %94 {offsets = [160, 0], sizes = [16, 32], strides = [1, 1]} : vector<256x32xbf16> to vector<16x32xbf16>
    %c10_101 = arith.constant 10 : index
    %c0_102 = arith.constant 0 : index
    %c0_103 = arith.constant 0 : index
    %147 = vector.load %arg6[%c10_101, %c0_102, %c0_103] : memref<16x32x64xbf16, #tpu.memory_space<vmem>>, vector<1x32x64xbf16>
    %148 = vector.shape_cast %147 : vector<1x32x64xbf16> to vector<32x64xbf16>
    %cst_104 = arith.constant dense<0.000000e+00> : vector<16x64xf32>
    %149 = tpu.matmul %146, %148, %cst_104 {dimension_numbers = #tpu.dot_dimension_numbers<[1], [0], [0], [1], [0, 0, 1, 1], [], []>} : vector<16x32xbf16>, vector<32x64xbf16>, vector<16x64xf32> -> vector<16x64xf32>
    %150 = arith.addf %145, %149 : vector<16x64xf32>
    %151 = vector.extract_strided_slice %94 {offsets = [176, 0], sizes = [16, 32], strides = [1, 1]} : vector<256x32xbf16> to vector<16x32xbf16>
    %c11_105 = arith.constant 11 : index
    %c0_106 = arith.constant 0 : index
    %c0_107 = arith.constant 0 : index
    %152 = vector.load %arg6[%c11_105, %c0_106, %c0_107] : memref<16x32x64xbf16, #tpu.memory_space<vmem>>, vector<1x32x64xbf16>
    %153 = vector.shape_cast %152 : vector<1x32x64xbf16> to vector<32x64xbf16>
    %cst_108 = arith.constant dense<0.000000e+00> : vector<16x64xf32>
    %154 = tpu.matmul %151, %153, %cst_108 {dimension_numbers = #tpu.dot_dimension_numbers<[1], [0], [0], [1], [0, 0, 1, 1], [], []>} : vector<16x32xbf16>, vector<32x64xbf16>, vector<16x64xf32> -> vector<16x64xf32>
    %155 = arith.addf %150, %154 : vector<16x64xf32>
    %156 = vector.extract_strided_slice %94 {offsets = [192, 0], sizes = [16, 32], strides = [1, 1]} : vector<256x32xbf16> to vector<16x32xbf16>
    %c12_109 = arith.constant 12 : index
    %c0_110 = arith.constant 0 : index
    %c0_111 = arith.constant 0 : index
    %157 = vector.load %arg6[%c12_109, %c0_110, %c0_111] : memref<16x32x64xbf16, #tpu.memory_space<vmem>>, vector<1x32x64xbf16>
    %158 = vector.shape_cast %157 : vector<1x32x64xbf16> to vector<32x64xbf16>
    %cst_112 = arith.constant dense<0.000000e+00> : vector<16x64xf32>
    %159 = tpu.matmul %156, %158, %cst_112 {dimension_numbers = #tpu.dot_dimension_numbers<[1], [0], [0], [1], [0, 0, 1, 1], [], []>} : vector<16x32xbf16>, vector<32x64xbf16>, vector<16x64xf32> -> vector<16x64xf32>
    %160 = arith.addf %155, %159 : vector<16x64xf32>
    %161 = vector.extract_strided_slice %94 {offsets = [208, 0], sizes = [16, 32], strides = [1, 1]} : vector<256x32xbf16> to vector<16x32xbf16>
    %c13_113 = arith.constant 13 : index
    %c0_114 = arith.constant 0 : index
    %c0_115 = arith.constant 0 : index
    %162 = vector.load %arg6[%c13_113, %c0_114, %c0_115] : memref<16x32x64xbf16, #tpu.memory_space<vmem>>, vector<1x32x64xbf16>
    %163 = vector.shape_cast %162 : vector<1x32x64xbf16> to vector<32x64xbf16>
    %cst_116 = arith.constant dense<0.000000e+00> : vector<16x64xf32>
    %164 = tpu.matmul %161, %163, %cst_116 {dimension_numbers = #tpu.dot_dimension_numbers<[1], [0], [0], [1], [0, 0, 1, 1], [], []>} : vector<16x32xbf16>, vector<32x64xbf16>, vector<16x64xf32> -> vector<16x64xf32>
    %165 = arith.addf %160, %164 : vector<16x64xf32>
    %166 = vector.extract_strided_slice %94 {offsets = [224, 0], sizes = [16, 32], strides = [1, 1]} : vector<256x32xbf16> to vector<16x32xbf16>
    %c14_117 = arith.constant 14 : index
    %c0_118 = arith.constant 0 : index
    %c0_119 = arith.constant 0 : index
    %167 = vector.load %arg6[%c14_117, %c0_118, %c0_119] : memref<16x32x64xbf16, #tpu.memory_space<vmem>>, vector<1x32x64xbf16>
    %168 = vector.shape_cast %167 : vector<1x32x64xbf16> to vector<32x64xbf16>
    %cst_120 = arith.constant dense<0.000000e+00> : vector<16x64xf32>
    %169 = tpu.matmul %166, %168, %cst_120 {dimension_numbers = #tpu.dot_dimension_numbers<[1], [0], [0], [1], [0, 0, 1, 1], [], []>} : vector<16x32xbf16>, vector<32x64xbf16>, vector<16x64xf32> -> vector<16x64xf32>
    %170 = arith.addf %165, %169 : vector<16x64xf32>
    %171 = vector.extract_strided_slice %94 {offsets = [240, 0], sizes = [16, 32], strides = [1, 1]} : vector<256x32xbf16> to vector<16x32xbf16>
    %c15_121 = arith.constant 15 : index
    %c0_122 = arith.constant 0 : index
    %c0_123 = arith.constant 0 : index
    %172 = vector.load %arg6[%c15_121, %c0_122, %c0_123] : memref<16x32x64xbf16, #tpu.memory_space<vmem>>, vector<1x32x64xbf16>
    %173 = vector.shape_cast %172 : vector<1x32x64xbf16> to vector<32x64xbf16>
    %cst_124 = arith.constant dense<0.000000e+00> : vector<16x64xf32>
    %174 = tpu.matmul %171, %173, %cst_124 {dimension_numbers = #tpu.dot_dimension_numbers<[1], [0], [0], [1], [0, 0, 1, 1], [], []>} : vector<16x32xbf16>, vector<32x64xbf16>, vector<16x64xf32> -> vector<16x64xf32>
    %175 = arith.addf %170, %174 : vector<16x64xf32>
    %c0_125 = arith.constant 0 : index
    %c0_126 = arith.constant 0 : index
    %176 = vector.load %arg7[%c0_125, %c0_126] : memref<1x64xf32, #tpu.memory_space<vmem>>, vector<1x64xf32>
    %177 = vector.broadcast %176 : vector<1x64xf32> to vector<16x64xf32>
    %178 = arith.addf %175, %177 : vector<16x64xf32>
    %cst_127 = arith.constant 0.000000e+00 : f32
    %179 = vector.broadcast %cst_127 : f32 to vector<16x64xf32>
    %180 = arith.maximumf %178, %179 : vector<16x64xf32>
    %181 = arith.truncf %180 : vector<16x64xf32> to vector<16x64xbf16>
    %c0_128 = arith.constant 0 : index
    %c0_129 = arith.constant 0 : index
    %182 = vector.load %arg8[%c0_128, %c0_129] : memref<144x16xbf16, #tpu.memory_space<vmem>>, vector<144x16xbf16>
    %cst_130 = arith.constant dense<0.000000e+00> : vector<144x64xf32>
    %183 = tpu.matmul %182, %181, %cst_130 {dimension_numbers = #tpu.dot_dimension_numbers<[1], [0], [0], [1], [0, 0, 1, 1], [], []>} : vector<144x16xbf16>, vector<16x64xbf16>, vector<144x64xf32> -> vector<144x64xf32>
    %184 = arith.truncf %183 : vector<144x64xf32> to vector<144x64xbf16>
    %cst_131 = arith.constant 0.000000e+00 : f32
    %185 = vector.broadcast %cst_131 : f32 to vector<16x8xf32>
    %186 = vector.extract_strided_slice %184 {offsets = [0, 0], sizes = [16, 64], strides = [1, 1]} : vector<144x64xbf16> to vector<16x64xbf16>
    %c0_132 = arith.constant 0 : index
    %c0_133 = arith.constant 0 : index
    %c0_134 = arith.constant 0 : index
    %187 = vector.load %arg9[%c0_132, %c0_133, %c0_134] : memref<9x64x8xbf16, #tpu.memory_space<vmem>>, vector<1x64x8xbf16>
    %188 = vector.shape_cast %187 : vector<1x64x8xbf16> to vector<64x8xbf16>
    %cst_135 = arith.constant dense<0.000000e+00> : vector<16x8xf32>
    %189 = tpu.matmul %186, %188, %cst_135 {dimension_numbers = #tpu.dot_dimension_numbers<[1], [0], [0], [1], [0, 0, 1, 1], [], []>} : vector<16x64xbf16>, vector<64x8xbf16>, vector<16x8xf32> -> vector<16x8xf32>
    %190 = arith.addf %185, %189 : vector<16x8xf32>
    %191 = vector.extract_strided_slice %184 {offsets = [16, 0], sizes = [16, 64], strides = [1, 1]} : vector<144x64xbf16> to vector<16x64xbf16>
    %c1_136 = arith.constant 1 : index
    %c0_137 = arith.constant 0 : index
    %c0_138 = arith.constant 0 : index
    %192 = vector.load %arg9[%c1_136, %c0_137, %c0_138] : memref<9x64x8xbf16, #tpu.memory_space<vmem>>, vector<1x64x8xbf16>
    %193 = vector.shape_cast %192 : vector<1x64x8xbf16> to vector<64x8xbf16>
    %cst_139 = arith.constant dense<0.000000e+00> : vector<16x8xf32>
    %194 = tpu.matmul %191, %193, %cst_139 {dimension_numbers = #tpu.dot_dimension_numbers<[1], [0], [0], [1], [0, 0, 1, 1], [], []>} : vector<16x64xbf16>, vector<64x8xbf16>, vector<16x8xf32> -> vector<16x8xf32>
    %195 = arith.addf %190, %194 : vector<16x8xf32>
    %196 = vector.extract_strided_slice %184 {offsets = [32, 0], sizes = [16, 64], strides = [1, 1]} : vector<144x64xbf16> to vector<16x64xbf16>
    %c2_140 = arith.constant 2 : index
    %c0_141 = arith.constant 0 : index
    %c0_142 = arith.constant 0 : index
    %197 = vector.load %arg9[%c2_140, %c0_141, %c0_142] : memref<9x64x8xbf16, #tpu.memory_space<vmem>>, vector<1x64x8xbf16>
    %198 = vector.shape_cast %197 : vector<1x64x8xbf16> to vector<64x8xbf16>
    %cst_143 = arith.constant dense<0.000000e+00> : vector<16x8xf32>
    %199 = tpu.matmul %196, %198, %cst_143 {dimension_numbers = #tpu.dot_dimension_numbers<[1], [0], [0], [1], [0, 0, 1, 1], [], []>} : vector<16x64xbf16>, vector<64x8xbf16>, vector<16x8xf32> -> vector<16x8xf32>
    %200 = arith.addf %195, %199 : vector<16x8xf32>
    %201 = vector.extract_strided_slice %184 {offsets = [48, 0], sizes = [16, 64], strides = [1, 1]} : vector<144x64xbf16> to vector<16x64xbf16>
    %c3_144 = arith.constant 3 : index
    %c0_145 = arith.constant 0 : index
    %c0_146 = arith.constant 0 : index
    %202 = vector.load %arg9[%c3_144, %c0_145, %c0_146] : memref<9x64x8xbf16, #tpu.memory_space<vmem>>, vector<1x64x8xbf16>
    %203 = vector.shape_cast %202 : vector<1x64x8xbf16> to vector<64x8xbf16>
    %cst_147 = arith.constant dense<0.000000e+00> : vector<16x8xf32>
    %204 = tpu.matmul %201, %203, %cst_147 {dimension_numbers = #tpu.dot_dimension_numbers<[1], [0], [0], [1], [0, 0, 1, 1], [], []>} : vector<16x64xbf16>, vector<64x8xbf16>, vector<16x8xf32> -> vector<16x8xf32>
    %205 = arith.addf %200, %204 : vector<16x8xf32>
    %206 = vector.extract_strided_slice %184 {offsets = [64, 0], sizes = [16, 64], strides = [1, 1]} : vector<144x64xbf16> to vector<16x64xbf16>
    %c4_148 = arith.constant 4 : index
    %c0_149 = arith.constant 0 : index
    %c0_150 = arith.constant 0 : index
    %207 = vector.load %arg9[%c4_148, %c0_149, %c0_150] : memref<9x64x8xbf16, #tpu.memory_space<vmem>>, vector<1x64x8xbf16>
    %208 = vector.shape_cast %207 : vector<1x64x8xbf16> to vector<64x8xbf16>
    %cst_151 = arith.constant dense<0.000000e+00> : vector<16x8xf32>
    %209 = tpu.matmul %206, %208, %cst_151 {dimension_numbers = #tpu.dot_dimension_numbers<[1], [0], [0], [1], [0, 0, 1, 1], [], []>} : vector<16x64xbf16>, vector<64x8xbf16>, vector<16x8xf32> -> vector<16x8xf32>
    %210 = arith.addf %205, %209 : vector<16x8xf32>
    %211 = vector.extract_strided_slice %184 {offsets = [80, 0], sizes = [16, 64], strides = [1, 1]} : vector<144x64xbf16> to vector<16x64xbf16>
    %c5_152 = arith.constant 5 : index
    %c0_153 = arith.constant 0 : index
    %c0_154 = arith.constant 0 : index
    %212 = vector.load %arg9[%c5_152, %c0_153, %c0_154] : memref<9x64x8xbf16, #tpu.memory_space<vmem>>, vector<1x64x8xbf16>
    %213 = vector.shape_cast %212 : vector<1x64x8xbf16> to vector<64x8xbf16>
    %cst_155 = arith.constant dense<0.000000e+00> : vector<16x8xf32>
    %214 = tpu.matmul %211, %213, %cst_155 {dimension_numbers = #tpu.dot_dimension_numbers<[1], [0], [0], [1], [0, 0, 1, 1], [], []>} : vector<16x64xbf16>, vector<64x8xbf16>, vector<16x8xf32> -> vector<16x8xf32>
    %215 = arith.addf %210, %214 : vector<16x8xf32>
    %216 = vector.extract_strided_slice %184 {offsets = [96, 0], sizes = [16, 64], strides = [1, 1]} : vector<144x64xbf16> to vector<16x64xbf16>
    %c6_156 = arith.constant 6 : index
    %c0_157 = arith.constant 0 : index
    %c0_158 = arith.constant 0 : index
    %217 = vector.load %arg9[%c6_156, %c0_157, %c0_158] : memref<9x64x8xbf16, #tpu.memory_space<vmem>>, vector<1x64x8xbf16>
    %218 = vector.shape_cast %217 : vector<1x64x8xbf16> to vector<64x8xbf16>
    %cst_159 = arith.constant dense<0.000000e+00> : vector<16x8xf32>
    %219 = tpu.matmul %216, %218, %cst_159 {dimension_numbers = #tpu.dot_dimension_numbers<[1], [0], [0], [1], [0, 0, 1, 1], [], []>} : vector<16x64xbf16>, vector<64x8xbf16>, vector<16x8xf32> -> vector<16x8xf32>
    %220 = arith.addf %215, %219 : vector<16x8xf32>
    %221 = vector.extract_strided_slice %184 {offsets = [112, 0], sizes = [16, 64], strides = [1, 1]} : vector<144x64xbf16> to vector<16x64xbf16>
    %c7_160 = arith.constant 7 : index
    %c0_161 = arith.constant 0 : index
    %c0_162 = arith.constant 0 : index
    %222 = vector.load %arg9[%c7_160, %c0_161, %c0_162] : memref<9x64x8xbf16, #tpu.memory_space<vmem>>, vector<1x64x8xbf16>
    %223 = vector.shape_cast %222 : vector<1x64x8xbf16> to vector<64x8xbf16>
    %cst_163 = arith.constant dense<0.000000e+00> : vector<16x8xf32>
    %224 = tpu.matmul %221, %223, %cst_163 {dimension_numbers = #tpu.dot_dimension_numbers<[1], [0], [0], [1], [0, 0, 1, 1], [], []>} : vector<16x64xbf16>, vector<64x8xbf16>, vector<16x8xf32> -> vector<16x8xf32>
    %225 = arith.addf %220, %224 : vector<16x8xf32>
    %226 = vector.extract_strided_slice %184 {offsets = [128, 0], sizes = [16, 64], strides = [1, 1]} : vector<144x64xbf16> to vector<16x64xbf16>
    %c8_164 = arith.constant 8 : index
    %c0_165 = arith.constant 0 : index
    %c0_166 = arith.constant 0 : index
    %227 = vector.load %arg9[%c8_164, %c0_165, %c0_166] : memref<9x64x8xbf16, #tpu.memory_space<vmem>>, vector<1x64x8xbf16>
    %228 = vector.shape_cast %227 : vector<1x64x8xbf16> to vector<64x8xbf16>
    %cst_167 = arith.constant dense<0.000000e+00> : vector<16x8xf32>
    %229 = tpu.matmul %226, %228, %cst_167 {dimension_numbers = #tpu.dot_dimension_numbers<[1], [0], [0], [1], [0, 0, 1, 1], [], []>} : vector<16x64xbf16>, vector<64x8xbf16>, vector<16x8xf32> -> vector<16x8xf32>
    %230 = arith.addf %225, %229 : vector<16x8xf32>
    %c0_168 = arith.constant 0 : index
    %c0_169 = arith.constant 0 : index
    %231 = vector.load %arg10[%c0_168, %c0_169] : memref<1x8xf32, #tpu.memory_space<vmem>>, vector<1x8xf32>
    %232 = vector.broadcast %231 : vector<1x8xf32> to vector<16x8xf32>
    %233 = arith.addf %230, %232 : vector<16x8xf32>
    %c0_170 = arith.constant 0 : index
    %c0_171 = arith.constant 0 : index
    %c0_172 = arith.constant 0 : index
    %234 = vector.load %arg11[%c0_170, %c0_171, %c0_172] : memref<1x16x8xf32, #tpu.memory_space<vmem>>, vector<1x16x8xf32>
    %235 = vector.shape_cast %234 : vector<1x16x8xf32> to vector<16x8xf32>
    %236 = vector.shape_cast %233 : vector<16x8xf32> to vector<1x16x8xf32>
    tpu.vector_store %arg11[%c0_170, %c0_171, %c0_172], %236 {strides = array<i32>} : memref<1x16x8xf32, #tpu.memory_space<vmem>>, vector<1x16x8xf32>,
    return
  }
  func.func @transform_0(%arg0: i32) -> (i32, i32, i32) {
    %c0_i32 = arith.constant 0 : i32
    %c0_i32_0 = arith.constant 0 : i32
    %c0_i32_1 = arith.constant 0 : i32
    return %arg0, %c0_i32, %c0_i32_0 : i32, i32, i32
  }
  func.func @transform_1(%arg0: i32) -> (i32, i32) {
    %c0_i32 = arith.constant 0 : i32
    %c0_i32_0 = arith.constant 0 : i32
    %c0_i32_1 = arith.constant 0 : i32
    return %c0_i32, %c0_i32_0 : i32, i32
  }
  func.func @transform_2(%arg0: i32) -> (i32, i32, i32) {
    %c0_i32 = arith.constant 0 : i32
    %c0_i32_0 = arith.constant 0 : i32
    %c0_i32_1 = arith.constant 0 : i32
    %c0_i32_2 = arith.constant 0 : i32
    return %c0_i32, %c0_i32_0, %c0_i32_1 : i32, i32, i32
  }
  func.func @transform_3(%arg0: i32) -> (i32, i32) {
    %c0_i32 = arith.constant 0 : i32
    %c0_i32_0 = arith.constant 0 : i32
    %c0_i32_1 = arith.constant 0 : i32
    return %c0_i32, %c0_i32_0 : i32, i32
  }
  func.func @transform_4(%arg0: i32) -> (i32, i32) {
    %c0_i32 = arith.constant 0 : i32
    %c0_i32_0 = arith.constant 0 : i32
    %c0_i32_1 = arith.constant 0 : i32
    return %c0_i32, %c0_i32_0 : i32, i32
  }
  func.func @transform_5(%arg0: i32) -> (i32, i32, i32) {
    %c0_i32 = arith.constant 0 : i32
    %c0_i32_0 = arith.constant 0 : i32
    %c0_i32_1 = arith.constant 0 : i32
    %c0_i32_2 = arith.constant 0 : i32
    return %c0_i32, %c0_i32_0, %c0_i32_1 : i32, i32, i32
  }
  func.func @transform_6(%arg0: i32) -> (i32, i32) {
    %c0_i32 = arith.constant 0 : i32
    %c0_i32_0 = arith.constant 0 : i32
    %c0_i32_1 = arith.constant 0 : i32
    return %c0_i32, %c0_i32_0 : i32, i32
  }
  func.func @transform_7(%arg0: i32) -> (i32, i32) {
    %c0_i32 = arith.constant 0 : i32
    %c0_i32_0 = arith.constant 0 : i32
    %c0_i32_1 = arith.constant 0 : i32
    return %c0_i32, %c0_i32_0 : i32, i32
  }
  func.func @transform_8(%arg0: i32) -> (i32, i32, i32) {
    %c0_i32 = arith.constant 0 : i32
    %c0_i32_0 = arith.constant 0 : i32
    %c0_i32_1 = arith.constant 0 : i32
    %c0_i32_2 = arith.constant 0 : i32
    return %c0_i32, %c0_i32_0, %c0_i32_1 : i32, i32, i32
  }
  func.func @transform_9(%arg0: i32) -> (i32, i32) {
    %c0_i32 = arith.constant 0 : i32
    %c0_i32_0 = arith.constant 0 : i32
    %c0_i32_1 = arith.constant 0 : i32
    return %c0_i32, %c0_i32_0 : i32, i32
  }
  func.func @transform_10(%arg0: i32) -> (i32, i32, i32) {
    %c0_i32 = arith.constant 0 : i32
    %c0_i32_0 = arith.constant 0 : i32
    %c0_i32_1 = arith.constant 0 : i32
    return %arg0, %c0_i32, %c0_i32_0 : i32, i32, i32
  }
}

</mosaic_0001>

<llo_original>
// kernel: encoder_forward.1
$region0: #{encoder_forward.1}
  #allocation0 [shape = 'u32[]', space=smem, size = 0x4, offset = 0x4, fixed_abs, tag = 'smem constant byte address 0x4 - core index']
  #allocation1 [shape = 'u32[144,128]{1,0:T(1,128)}', space=vmem, size = 0x12000, scoped, tag = 'internal scratch']
  %s0 = inlined_call_operand.vmem [shape: bf16[2,256,3], index: 0, kind: input, shape index: {}]
  %s1 = inlined_call_operand.vmem [shape: bf16[1024,256], index: 1, kind: input, shape index: {}]
  %s2 = inlined_call_operand.vmem [shape: bf16[16,3,32], index: 2, kind: input, shape index: {}]
  %s3 = inlined_call_operand.vmem [shape: f32[1,32], index: 3, kind: input, shape index: {}]
  %s4 = inlined_call_operand.vmem [shape: bf16[256,64], index: 4, kind: input, shape index: {}]
  %s5 = inlined_call_operand.vmem [shape: bf16[16,32,64], index: 5, kind: input, shape index: {}]
  %s6 = inlined_call_operand.vmem [shape: f32[1,64], index: 6, kind: input, shape index: {}]
  %s7 = inlined_call_operand.vmem [shape: bf16[144,16], index: 7, kind: input, shape index: {}]
  %s8 = inlined_call_operand.vmem [shape: bf16[9,64,8], index: 8, kind: input, shape index: {}]
  %s9 = inlined_call_operand.vmem [shape: f32[1,8], index: 9, kind: input, shape index: {}]
  %s10 = inlined_call_operand.hbm [shape: f32[2,16,8], index: 10, kind: output, shape index: {}]
  %s11 = sld [smem:[#allocation0]]
  $region73: #{encoder_forward.1} parent=0
    _
  %s13 = ssub.s32 1, %s11
  %s14 = scalar_select 0, %s13, %s11
  $region1: #{encoder_forward.1} parent=0
    #allocation2 [shape = 'u8[16384]{0}', space=vmem, size = 0x4000, scoped, tag = 'output window, operand 0']
    #allocation3 [shape = 's32[2]{0}', space=sflag, size = 0x8, scoped, tag = 'scoped memory for encoder_forward.1']
    %15 = vsyncpa [#allocation3], 0
    %s16 = scalar_lea.sflag [#allocation3], 1
    %17 = vsyncpa %s16, 0
    loop: start=0, step=1, limit=4
    $region2: #{encoder_forward.1} parent=1 // loop_pre_header
      _
    $region3: #{encoder_forward.1} parent=1 // loop_header
      %s19 = sphi 0, %s23
      %p20 = scmp.ge.s32.totalorder %s19, 4
      %s29 = sphi 0, %s31
      %s32 = sphi 0, %s29
      %s33 = sphi 0, %s32
      %s49 = sphi 0, %s33
      %s53 = sphi 0, %s53
      %s55 = sphi 0, %s53
      %s56 = sphi 0, %s55
      %s70 = sphi 0, %s56
      %s74 = sphi 0, %s74
      %s76 = sphi 0, %s74
      %s77 = sphi 0, %s76
      %s91 = sphi 0, %s77
      %s95 = sphi 0, %s95
      %s97 = sphi 0, %s95
      %s98 = sphi 0, %s97
      %s112 = sphi 0, %s98
      %s116 = sphi 0, %s116
      %s118 = sphi 0, %s116
      %s119 = sphi 0, %s118
      %s133 = sphi 0, %s119
      %s137 = sphi 0, %s137
      %s139 = sphi 0, %s137
      %s140 = sphi 0, %s139
      %s154 = sphi 0, %s140
      %s158 = sphi 0, %s158
      %s160 = sphi 0, %s158
      %s161 = sphi 0, %s160
      %s175 = sphi 0, %s161
      %s179 = sphi 0, %s179
      %s181 = sphi 0, %s179
      %s182 = sphi 0, %s181
      %s196 = sphi 0, %s182
      %s200 = sphi 0, %s200
      %s202 = sphi 0, %s200
      %s203 = sphi 0, %s202
      %s217 = sphi 0, %s203
      %s221 = sphi 0, %s221
      %s223 = sphi 0, %s221
      %s224 = sphi 0, %s223
      %s238 = sphi 0, %s224
      %s244 = sphi 0, %s246
      %s247 = sphi 0, %s244
      %s248 = sphi 0, %s247
      %s264 = sphi 0, %s248
    $region4: #{encoder_forward.1} parent=1 // loop_header_branch
      %22 = sbr.rel (%p20) target = $region8
    $region5: #{encoder_forward.1} parent=1 // loop_body
      %s24 = ssub.s32 %s19, 1
      %s25 = ssub.s32 %s19, 2
      %s26 = sadd.s32 %s19, 1
      %s27 = ssub.s32 %s19, %s26
      %p28 = scmp.eq.s32.totalorder %s27, 0
      %s30 = sadd.s32 %s29, 1
      %s31 = scalar_select %p28, %s29, %s30
      %p34 = pneg %p28
      %p35 = scmp.eq.s32.totalorder %s19, 1
      %p36 = por %p34, %p35
      %p37 = scmp.ne.s32.totalorder %s29, %s32
      %p38 = scmp.eq.s32.totalorder %s19, 0
      %p39 = por %p37, %p38
      %p40 = scmp.ne.s32.totalorder %s29, %s32
      %p41 = scmp.eq.s32.totalorder %s24, 1
      %p42 = por %p40, %p41
      %p43 = scmp.ne.s32.totalorder %s32, %s33
      %p44 = scmp.eq.s32.totalorder %s24, 0
      %p45 = por %p43, %p44
      %p46 = scmp.ne.s32.totalorder %s32, %s33
      %p47 = scmp.eq.s32.totalorder %s25, 1
      %p48 = por %p46, %p47
      %p50 = scmp.ne.s32.totalorder %s33, %s49
      %p51 = scmp.eq.s32.totalorder %s25, 0
      %p52 = por %p50, %p51
      %s54 = sadd.s32 %s53, 1
      %p57 = scmp.eq.s32.totalorder %s19, 1
      %p58 = scmp.ne.s32.totalorder %s53, %s55
      %p59 = scmp.eq.s32.totalorder %s19, 0
      %p60 = por %p58, %p59
      %p61 = scmp.ne.s32.totalorder %s53, %s55
      %p62 = scmp.eq.s32.totalorder %s24, 1
      %p63 = por %p61, %p62
      %p64 = scmp.ne.s32.totalorder %s55, %s56
      %p65 = scmp.eq.s32.totalorder %s24, 0
      %p66 = por %p64, %p65
      %p67 = scmp.ne.s32.totalorder %s55, %s56
      %p68 = scmp.eq.s32.totalorder %s25, 1
      %p69 = por %p67, %p68
      %p71 = scmp.ne.s32.totalorder %s56, %s70
      %p72 = scmp.eq.s32.totalorder %s25, 0
      %p73 = por %p71, %p72
      %s75 = sadd.s32 %s74, 1
      %p78 = scmp.eq.s32.totalorder %s19, 1
      %p79 = scmp.ne.s32.totalorder %s74, %s76
      %p80 = scmp.eq.s32.totalorder %s19, 0
      %p81 = por %p79, %p80
      %p82 = scmp.ne.s32.totalorder %s74, %s76
      %p83 = scmp.eq.s32.totalorder %s24, 1
      %p84 = por %p82, %p83
      %p85 = scmp.ne.s32.totalorder %s76, %s77
      %p86 = scmp.eq.s32.totalorder %s24, 0
      %p87 = por %p85, %p86
      %p88 = scmp.ne.s32.totalorder %s76, %s77
      %p89 = scmp.eq.s32.totalorder %s25, 1
      %p90 = por %p88, %p89
      %p92 = scmp.ne.s32.totalorder %s77, %s91
      %p93 = scmp.eq.s32.totalorder %s25, 0
      %p94 = por %p92, %p93
      %s96 = sadd.s32 %s95, 1
      %p99 = scmp.eq.s32.totalorder %s19, 1
      %p100 = scmp.ne.s32.totalorder %s95, %s97
      %p101 = scmp.eq.s32.totalorder %s19, 0
      %p102 = por %p100, %p101
      %p103 = scmp.ne.s32.totalorder %s95, %s97
      %p104 = scmp.eq.s32.totalorder %s24, 1
      %p105 = por %p103, %p104
      %p106 = scmp.ne.s32.totalorder %s97, %s98
      %p107 = scmp.eq.s32.totalorder %s24, 0
      %p108 = por %p106, %p107
      %p109 = scmp.ne.s32.totalorder %s97, %s98
      %p110 = scmp.eq.s32.totalorder %s25, 1
      %p111 = por %p109, %p110
      %p113 = scmp.ne.s32.totalorder %s98, %s112
      %p114 = scmp.eq.s32.totalorder %s25, 0
      %p115 = por %p113, %p114
      %s117 = sadd.s32 %s116, 1
      %p120 = scmp.eq.s32.totalorder %s19, 1
      %p121 = scmp.ne.s32.totalorder %s116, %s118
      %p122 = scmp.eq.s32.totalorder %s19, 0
      %p123 = por %p121, %p122
      %p124 = scmp.ne.s32.totalorder %s116, %s118
      %p125 = scmp.eq.s32.totalorder %s24, 1
      %p126 = por %p124, %p125
      %p127 = scmp.ne.s32.totalorder %s118, %s119
      %p128 = scmp.eq.s32.totalorder %s24, 0
      %p129 = por %p127, %p128
      %p130 = scmp.ne.s32.totalorder %s118, %s119
      %p131 = scmp.eq.s32.totalorder %s25, 1
      %p132 = por %p130, %p131
      %p134 = scmp.ne.s32.totalorder %s119, %s133
      %p135 = scmp.eq.s32.totalorder %s25, 0
      %p136 = por %p134, %p135
      %s138 = sadd.s32 %s137, 1
      %p141 = scmp.eq.s32.totalorder %s19, 1
      %p142 = scmp.ne.s32.totalorder %s137, %s139
      %p143 = scmp.eq.s32.totalorder %s19, 0
      %p144 = por %p142, %p143
      %p145 = scmp.ne.s32.totalorder %s137, %s139
      %p146 = scmp.eq.s32.totalorder %s24, 1
      %p147 = por %p145, %p146
      %p148 = scmp.ne.s32.totalorder %s139, %s140
      %p149 = scmp.eq.s32.totalorder %s24, 0
      %p150 = por %p148, %p149
      %p151 = scmp.ne.s32.totalorder %s139, %s140
      %p152 = scmp.eq.s32.totalorder %s25, 1
      %p153 = por %p151, %p152
      %p155 = scmp.ne.s32.totalorder %s140, %s154
      %p156 = scmp.eq.s32.totalorder %s25, 0
      %p157 = por %p155, %p156
      %s159 = sadd.s32 %s158, 1
      %p162 = scmp.eq.s32.totalorder %s19, 1
      %p163 = scmp.ne.s32.totalorder %s158, %s160
      %p164 = scmp.eq.s32.totalorder %s19, 0
      %p165 = por %p163, %p164
      %p166 = scmp.ne.s32.totalorder %s158, %s160
      %p167 = scmp.eq.s32.totalorder %s24, 1
      %p168 = por %p166, %p167
      %p169 = scmp.ne.s32.totalorder %s160, %s161
      %p170 = scmp.eq.s32.totalorder %s24, 0
      %p171 = por %p169, %p170
      %p172 = scmp.ne.s32.totalorder %s160, %s161
      %p173 = scmp.eq.s32.totalorder %s25, 1
      %p174 = por %p172, %p173
      %p176 = scmp.ne.s32.totalorder %s161, %s175
      %p177 = scmp.eq.s32.totalorder %s25, 0
      %p178 = por %p176, %p177
      %s180 = sadd.s32 %s179, 1
      %p183 = scmp.eq.s32.totalorder %s19, 1
      %p184 = scmp.ne.s32.totalorder %s179, %s181
      %p185 = scmp.eq.s32.totalorder %s19, 0
      %p186 = por %p184, %p185
      %p187 = scmp.ne.s32.totalorder %s179, %s181
      %p188 = scmp.eq.s32.totalorder %s24, 1
      %p189 = por %p187, %p188
      %p190 = scmp.ne.s32.totalorder %s181, %s182
      %p191 = scmp.eq.s32.totalorder %s24, 0
      %p192 = por %p190, %p191
      %p193 = scmp.ne.s32.totalorder %s181, %s182
      %p194 = scmp.eq.s32.totalorder %s25, 1
      %p195 = por %p193, %p194
      %p197 = scmp.ne.s32.totalorder %s182, %s196
      %p198 = scmp.eq.s32.totalorder %s25, 0
      %p199 = por %p197, %p198
      %s201 = sadd.s32 %s200, 1
      %p204 = scmp.eq.s32.totalorder %s19, 1
      %p205 = scmp.ne.s32.totalorder %s200, %s202
      %p206 = scmp.eq.s32.totalorder %s19, 0
      %p207 = por %p205, %p206
      %p208 = scmp.ne.s32.totalorder %s200, %s202
      %p209 = scmp.eq.s32.totalorder %s24, 1
      %p210 = por %p208, %p209
      %p211 = scmp.ne.s32.totalorder %s202, %s203
      %p212 = scmp.eq.s32.totalorder %s24, 0
      %p213 = por %p211, %p212
      %p214 = scmp.ne.s32.totalorder %s202, %s203
      %p215 = scmp.eq.s32.totalorder %s25, 1
      %p216 = por %p214, %p215
      %p218 = scmp.ne.s32.totalorder %s203, %s217
      %p219 = scmp.eq.s32.totalorder %s25, 0
      %p220 = por %p218, %p219
      %s222 = sadd.s32 %s221, 1
      %p225 = scmp.eq.s32.totalorder %s19, 1
      %p226 = scmp.ne.s32.totalorder %s221, %s223
      %p227 = scmp.eq.s32.totalorder %s19, 0
      %p228 = por %p226, %p227
      %p229 = scmp.ne.s32.totalorder %s221, %s223
      %p230 = scmp.eq.s32.totalorder %s24, 1
      %p231 = por %p229, %p230
      %p232 = scmp.ne.s32.totalorder %s223, %s224
      %p233 = scmp.eq.s32.totalorder %s24, 0
      %p234 = por %p232, %p233
      %p235 = scmp.ne.s32.totalorder %s223, %s224
      %p236 = scmp.eq.s32.totalorder %s25, 1
      %p237 = por %p235, %p236
      %p239 = scmp.ne.s32.totalorder %s224, %s238
      %p240 = scmp.eq.s32.totalorder %s25, 0
      %p241 = por %p239, %p240
      %s242 = ssub.s32 %s19, %s26
      %p243 = scmp.eq.s32.totalorder %s242, 0
      %s245 = sadd.s32 %s244, 1
      %s246 = scalar_select %p243, %s244, %s245
      %p249 = pneg %p243
      %p250 = scmp.eq.s32.totalorder %s19, 1
      %p251 = por %p249, %p250
      %p252 = scmp.ne.s32.totalorder %s244, %s247
      %p253 = scmp.eq.s32.totalorder %s19, 0
      %p254 = por %p252, %p253
      %p255 = scmp.ne.s32.totalorder %s244, %s247
      %p256 = scmp.eq.s32.totalorder %s24, 1
      %p257 = por %p255, %p256
      %p258 = scmp.ne.s32.totalorder %s247, %s248
      %p259 = scmp.eq.s32.totalorder %s24, 0
      %p260 = por %p258, %p259
      %p261 = scmp.ne.s32.totalorder %s247, %s248
      %p262 = scmp.eq.s32.totalorder %s25, 1
      %p263 = por %p261, %p262
      %p265 = scmp.ne.s32.totalorder %s248, %s264
      %p266 = scmp.eq.s32.totalorder %s25, 0
      %p267 = por %p265, %p266
      %p268 = scmp.le.s32.totalorder 1, %s19
      %p269 = scmp.lt.s32.totalorder %s19, 3
      %p270 = pnand %p268, %p269
      %p271 = pneg %p270
      // Predicated region
      $region9: #{encoder_forward.1} parent=5 // pred_check
        _
      $region10: #{encoder_forward.1} parent=5 // pred_check_branch
        %273 = sbr.rel (%p270) target = $region12
      $region11: #{encoder_forward.1} parent=5 // pred_region
        %s274 = ssub.s32 %s19, 1
        // Predicated region
        $region13: #{encoder_forward.1} parent=11 // pred_check
          %p275 = pneg %p66
        $region14: #{encoder_forward.1} parent=11 // pred_check_branch
          %277 = sbr.rel (%p275) target = $region16
        $region15: #{encoder_forward.1} parent=11 // pred_region
          _
        $region16: #{encoder_forward.1} parent=11 // pred_fallthru
          _
        // Predicated region
        $region17: #{encoder_forward.1} parent=11 // pred_check
          %p278 = pneg %p87
        $region18: #{encoder_forward.1} parent=11 // pred_check_branch
          %280 = sbr.rel (%p278) target = $region20
        $region19: #{encoder_forward.1} parent=11 // pred_region
          _
        $region20: #{encoder_forward.1} parent=11 // pred_fallthru
          _
        // Predicated region
        $region21: #{encoder_forward.1} parent=11 // pred_check
          %p281 = pneg %p108
        $region22: #{encoder_forward.1} parent=11 // pred_check_branch
          %283 = sbr.rel (%p281) target = $region24
        $region23: #{encoder_forward.1} parent=11 // pred_region
          _
        $region24: #{encoder_forward.1} parent=11 // pred_fallthru
          _
        // Predicated region
        $region25: #{encoder_forward.1} parent=11 // pred_check
          %p284 = pneg %p129
        $region26: #{encoder_forward.1} parent=11 // pred_check_branch
          %286 = sbr.rel (%p284) target = $region28
        $region27: #{encoder_forward.1} parent=11 // pred_region
          _
        $region28: #{encoder_forward.1} parent=11 // pred_fallthru
          _
        // Predicated region
        $region29: #{encoder_forward.1} parent=11 // pred_check
          %p287 = pneg %p150
        $region30: #{encoder_forward.1} parent=11 // pred_check_branch
          %289 = sbr.rel (%p287) target = $region32
        $region31: #{encoder_forward.1} parent=11 // pred_region
          _
        $region32: #{encoder_forward.1} parent=11 // pred_fallthru
          _
        // Predicated region
        $region33: #{encoder_forward.1} parent=11 // pred_check
          %p290 = pneg %p171
        $region34: #{encoder_forward.1} parent=11 // pred_check_branch
          %292 = sbr.rel (%p290) target = $region36
        $region35: #{encoder_forward.1} parent=11 // pred_region
          _
        $region36: #{encoder_forward.1} parent=11 // pred_fallthru
          _
        // Predicated region
        $region37: #{encoder_forward.1} parent=11 // pred_check
          %p293 = pneg %p192
        $region38: #{encoder_forward.1} parent=11 // pred_check_branch
          %295 = sbr.rel (%p293) target = $region40
        $region39: #{encoder_forward.1} parent=11 // pred_region
          _
        $region40: #{encoder_forward.1} parent=11 // pred_fallthru
          _
        // Predicated region
        $region41: #{encoder_forward.1} parent=11 // pred_check
          %p296 = pneg %p213
        $region42: #{encoder_forward.1} parent=11 // pred_check_branch
          %298 = sbr.rel (%p296) target = $region44
        $region43: #{encoder_forward.1} parent=11 // pred_region
          _
        $region44: #{encoder_forward.1} parent=11 // pred_fallthru
          _
        // Predicated region
        $region45: #{encoder_forward.1} parent=11 // pred_check
          %p299 = pneg %p234
        $region46: #{encoder_forward.1} parent=11 // pred_check_branch
          %301 = sbr.rel (%p299) target = $region48
        $region47: #{encoder_forward.1} parent=11 // pred_region
          _
        $region48: #{encoder_forward.1} parent=11 // pred_fallthru
          _
      $region12: #{encoder_forward.1} parent=5 // pred_fallthru
        _
      %p302 = scmp.lt.s32.totalorder %s19, 2
      // Predicated region
      $region49: #{encoder_forward.1} parent=5 // pred_check
        %p303 = pneg %p302
      $region50: #{encoder_forward.1} parent=5 // pred_check_branch
        %305 = sbr.rel (%p303) target = $region52
      $region51: #{encoder_forward.1} parent=5 // pred_region
        // Predicated region
        $region53: #{encoder_forward.1} parent=51 // pred_check
          %p306 = pneg %p39
        $region54: #{encoder_forward.1} parent=51 // pred_check_branch
          %308 = sbr.rel (%p306) target = $region56
        $region55: #{encoder_forward.1} parent=51 // pred_region
          %p309 = scmp.lt.s32.totalorder %s19, 1
          %s310 = scalar_select %p309, %s19, 1
          %s311 = smul.addr %s310, 32
          %s312 = smul.addr %s311, 4
          %s313 = scalar_lea.vmem %s0, %s312
        $region56: #{encoder_forward.1} parent=51 // pred_fallthru
          _
      $region52: #{encoder_forward.1} parent=5 // pred_fallthru
        _
      %p314 = scmp.le.s32.totalorder 1, %s19
      %p315 = scmp.lt.s32.totalorder %s19, 3
      %p316 = pnand %p314, %p315
      %p317 = pneg %p316
      // Predicated region
      $region57: #{encoder_forward.1} parent=5 // pred_check
        _
      $region58: #{encoder_forward.1} parent=5 // pred_check_branch
        %319 = sbr.rel (%p316) target = $region60
      $region59: #{encoder_forward.1} parent=5 // pred_region
        %s320 = ssub.s32 %s19, 1
        %p321 = scmp.lt.s32.totalorder %s24, 1
        %s322 = scalar_select %p321, %s24, 1
        %s323 = smul.addr %s322, 32
        %s324 = smul.addr %s323, 4
        %s325 = scalar_lea.vmem %s0, %s324
        %p326 = pneg %p45
        %p327 = pneg %p42
        %p328 = pneg %p66
        %p329 = pneg %p63
        %p330 = pneg %p87
        %p331 = pneg %p84
        %p332 = pneg %p108
        %p333 = pneg %p105
        %p334 = pneg %p129
        %p335 = pneg %p126
        %p336 = pneg %p150
        %p337 = pneg %p147
        %p338 = pneg %p171
        %p339 = pneg %p168
        %p340 = pneg %p192
        %p341 = pneg %p189
        %p342 = pneg %p213
        %p343 = pneg %p210
        %p344 = pneg %p234
        %p345 = pneg %p231
        %p346 = pneg %p260
        %p347 = pneg %p257
        %s348 = sand.u32 %s247, 1
        %s349 = scalar_lea.sflag [#allocation3], %s348
        %s350 = sand.u32 %s247, 1
        %s351 = smul.addr %s350, 16
        %s352 = scalar_lea.vmem [#allocation2], %s351
        %p353 = scmp.lt.s32.totalorder %s24, 1
        %s354 = scalar_select %p353, %s24, 1
        %s355 = smul.addr %s354, 32
        %s356 = smul.addr %s355, 4
        %s357 = scalar_lea.vmem %s0, %s356
        %v359 = vld [vmem:[%s357] sm:$0xf]
        %v360 = vld [vmem:[%s357 + $0x4] sm:$0xf]
        %v361 = vld [vmem:[%s357 + $0x8] sm:$0xf]
        %v362 = vld [vmem:[%s357 + $0xc] sm:$0xf]
        %v363 = vld [vmem:[%s357 + $0x10] sm:$0xf]
        %v364 = vld [vmem:[%s357 + $0x14] sm:$0xf]
        %v365 = vld [vmem:[%s357 + $0x18] sm:$0xf]
        %v366 = vld [vmem:[%s357 + $0x1c] sm:$0xf]
        %v367 = vld [vmem:[%s357 + $0x20] sm:$0xf]
        %v368 = vld [vmem:[%s357 + $0x24] sm:$0xf]
        %v369 = vld [vmem:[%s357 + $0x28] sm:$0xf]
        %v370 = vld [vmem:[%s357 + $0x2c] sm:$0xf]
        %v371 = vld [vmem:[%s357 + $0x30] sm:$0xf]
        %v372 = vld [vmem:[%s357 + $0x34] sm:$0xf]
        %v373 = vld [vmem:[%s357 + $0x38] sm:$0xf]
        %v374 = vld [vmem:[%s357 + $0x3c] sm:$0xf]
        %v375 = vld [vmem:[%s357 + $0x40] sm:$0xf]
        %v376 = vld [vmem:[%s357 + $0x44] sm:$0xf]
        %v377 = vld [vmem:[%s357 + $0x48] sm:$0xf]
        %v378 = vld [vmem:[%s357 + $0x4c] sm:$0xf]
        %v379 = vld [vmem:[%s357 + $0x50] sm:$0xf]
        %v380 = vld [vmem:[%s357 + $0x54] sm:$0xf]
        %v381 = vld [vmem:[%s357 + $0x58] sm:$0xf]
        %v382 = vld [vmem:[%s357 + $0x5c] sm:$0xf]
        %v383 = vld [vmem:[%s357 + $0x60] sm:$0xf]
        %v384 = vld [vmem:[%s357 + $0x64] sm:$0xf]
        %v385 = vld [vmem:[%s357 + $0x68] sm:$0xf]
        %v386 = vld [vmem:[%s357 + $0x6c] sm:$0xf]
        %v387 = vld [vmem:[%s357 + $0x70] sm:$0xf]
        %v388 = vld [vmem:[%s357 + $0x74] sm:$0xf]
        %v389 = vld [vmem:[%s357 + $0x78] sm:$0xf]
        %v390 = vld [vmem:[%s357 + $0x7c] sm:$0xf]
        %v391 = vld [vmem:[%s1] sm:$0xff]
        %v392 = vld [vmem:[%s1 + $0x8] sm:$0xff]
        %v393 = vld [vmem:[%s1 + $0x10] sm:$0xff]
        %v394 = vld [vmem:[%s1 + $0x18] sm:$0xff]
        %v395 = vld [vmem:[%s1 + $0x20] sm:$0xff]
        %v396 = vld [vmem:[%s1 + $0x28] sm:$0xff]
        %v397 = vld [vmem:[%s1 + $0x30] sm:$0xff]
        %v398 = vld [vmem:[%s1 + $0x38] sm:$0xff]
        %v399 = vld [vmem:[%s1 + $0x40] sm:$0xff]
        %v400 = vld [vmem:[%s1 + $0x48] sm:$0xff]
        %v401 = vld [vmem:[%s1 + $0x50] sm:$0xff]
        %v402 = vld [vmem:[%s1 + $0x58] sm:$0xff]
        %v403 = vld [vmem:[%s1 + $0x60] sm:$0xff]
        %v404 = vld [vmem:[%s1 + $0x68] sm:$0xff]
        %v405 = vld [vmem:[%s1 + $0x70] sm:$0xff]
        %v406 = vld [vmem:[%s1 + $0x78] sm:$0xff]
        %v407 = vld [vmem:[%s1 + $0x80] sm:$0xff]
        %v408 = vld [vmem:[%s1 + $0x88] sm:$0xff]
        %v409 = vld [vmem:[%s1 + $0x90] sm:$0xff]
        %v410 = vld [vmem:[%s1 + $0x98] sm:$0xff]
        %v411 = vld [vmem:[%s1 + $0xa0] sm:$0xff]
        %v412 = vld [vmem:[%s1 + $0xa8] sm:$0xff]
        %v413 = vld [vmem:[%s1 + $0xb0] sm:$0xff]
        %v414 = vld [vmem:[%s1 + $0xb8] sm:$0xff]
        %v415 = vld [vmem:[%s1 + $0xc0] sm:$0xff]
        %v416 = vld [vmem:[%s1 + $0xc8] sm:$0xff]
        %v417 = vld [vmem:[%s1 + $0xd0] sm:$0xff]
        %v418 = vld [vmem:[%s1 + $0xd8] sm:$0xff]
        %v419 = vld [vmem:[%s1 + $0xe0] sm:$0xff]
        %v420 = vld [vmem:[%s1 + $0xe8] sm:$0xff]
        %v421 = vld [vmem:[%s1 + $0xf0] sm:$0xff]
        %v422 = vld [vmem:[%s1 + $0xf8] sm:$0xff]
        %v423 = vld [vmem:[%s1 + $0x100] sm:$0xff]
        %v424 = vld [vmem:[%s1 + $0x108] sm:$0xff]
        %v425 = vld [vmem:[%s1 + $0x110] sm:$0xff]
        %v426 = vld [vmem:[%s1 + $0x118] sm:$0xff]
        %v427 = vld [vmem:[%s1 + $0x120] sm:$0xff]
        %v428 = vld [vmem:[%s1 + $0x128] sm:$0xff]
        %v429 = vld [vmem:[%s1 + $0x130] sm:$0xff]
        %v430 = vld [vmem:[%s1 + $0x138] sm:$0xff]
        %v431 = vld [vmem:[%s1 + $0x140] sm:$0xff]
        %v432 = vld [vmem:[%s1 + $0x148] sm:$0xff]
        %v433 = vld [vmem:[%s1 + $0x150] sm:$0xff]
        %v434 = vld [vmem:[%s1 + $0x158] sm:$0xff]
        %v435 = vld [vmem:[%s1 + $0x160] sm:$0xff]
        %v436 = vld [vmem:[%s1 + $0x168] sm:$0xff]
        %v437 = vld [vmem:[%s1 + $0x170] sm:$0xff]
        %v438 = vld [vmem:[%s1 + $0x178] sm:$0xff]
        %v439 = vld [vmem:[%s1 + $0x180] sm:$0xff]
        %v440 = vld [vmem:[%s1 + $0x188] sm:$0xff]
        %v441 = vld [vmem:[%s1 + $0x190] sm:$0xff]
        %v442 = vld [vmem:[%s1 + $0x198] sm:$0xff]
        %v443 = vld [vmem:[%s1 + $0x1a0] sm:$0xff]
        %v444 = vld [vmem:[%s1 + $0x1a8] sm:$0xff]
        %v445 = vld [vmem:[%s1 + $0x1b0] sm:$0xff]
        %v446 = vld [vmem:[%s1 + $0x1b8] sm:$0xff]
        %v447 = vld [vmem:[%s1 + $0x1c0] sm:$0xff]
        %v448 = vld [vmem:[%s1 + $0x1c8] sm:$0xff]
        %v449 = vld [vmem:[%s1 + $0x1d0] sm:$0xff]
        %v450 = vld [vmem:[%s1 + $0x1d8] sm:$0xff]
        %v451 = vld [vmem:[%s1 + $0x1e0] sm:$0xff]
        %v452 = vld [vmem:[%s1 + $0x1e8] sm:$0xff]
        %v453 = vld [vmem:[%s1 + $0x1f0] sm:$0xff]
        %v454 = vld [vmem:[%s1 + $0x1f8] sm:$0xff]
        %v455 = vld [vmem:[%s1 + $0x200] sm:$0xff]
        %v456 = vld [vmem:[%s1 + $0x208] sm:$0xff]
        %v457 = vld [vmem:[%s1 + $0x210] sm:$0xff]
        %v458 = vld [vmem:[%s1 + $0x218] sm:$0xff]
        %v459 = vld [vmem:[%s1 + $0x220] sm:$0xff]
        %v460 = vld [vmem:[%s1 + $0x228] sm:$0xff]
        %v461 = vld [vmem:[%s1 + $0x230] sm:$0xff]
        %v462 = vld [vmem:[%s1 + $0x238] sm:$0xff]
        %v463 = vld [vmem:[%s1 + $0x240] sm:$0xff]
        %v464 = vld [vmem:[%s1 + $0x248] sm:$0xff]
        %v465 = vld [vmem:[%s1 + $0x250] sm:$0xff]
        %v466 = vld [vmem:[%s1 + $0x258] sm:$0xff]
        %v467 = vld [vmem:[%s1 + $0x260] sm:$0xff]
        %v468 = vld [vmem:[%s1 + $0x268] sm:$0xff]
        %v469 = vld [vmem:[%s1 + $0x270] sm:$0xff]
        %v470 = vld [vmem:[%s1 + $0x278] sm:$0xff]
        %v471 = vld [vmem:[%s1 + $0x280] sm:$0xff]
        %v472 = vld [vmem:[%s1 + $0x288] sm:$0xff]
        %v473 = vld [vmem:[%s1 + $0x290] sm:$0xff]
        %v474 = vld [vmem:[%s1 + $0x298] sm:$0xff]
        %v475 = vld [vmem:[%s1 + $0x2a0] sm:$0xff]
        %v476 = vld [vmem:[%s1 + $0x2a8] sm:$0xff]
        %v477 = vld [vmem:[%s1 + $0x2b0] sm:$0xff]
        %v478 = vld [vmem:[%s1 + $0x2b8] sm:$0xff]
        %v479 = vld [vmem:[%s1 + $0x2c0] sm:$0xff]
        %v480 = vld [vmem:[%s1 + $0x2c8] sm:$0xff]
        %v481 = vld [vmem:[%s1 + $0x2d0] sm:$0xff]
        %v482 = vld [vmem:[%s1 + $0x2d8] sm:$0xff]
        %v483 = vld [vmem:[%s1 + $0x2e0] sm:$0xff]
        %v484 = vld [vmem:[%s1 + $0x2e8] sm:$0xff]
        %v485 = vld [vmem:[%s1 + $0x2f0] sm:$0xff]
        %v486 = vld [vmem:[%s1 + $0x2f8] sm:$0xff]
        %v487 = vld [vmem:[%s1 + $0x300] sm:$0xff]
        %v488 = vld [vmem:[%s1 + $0x308] sm:$0xff]
        %v489 = vld [vmem:[%s1 + $0x310] sm:$0xff]
        %v490 = vld [vmem:[%s1 + $0x318] sm:$0xff]
        %v491 = vld [vmem:[%s1 + $0x320] sm:$0xff]
        %v492 = vld [vmem:[%s1 + $0x328] sm:$0xff]
        %v493 = vld [vmem:[%s1 + $0x330] sm:$0xff]
        %v494 = vld [vmem:[%s1 + $0x338] sm:$0xff]
        %v495 = vld [vmem:[%s1 + $0x340] sm:$0xff]
        %v496 = vld [vmem:[%s1 + $0x348] sm:$0xff]
        %v497 = vld [vmem:[%s1 + $0x350] sm:$0xff]
        %v498 = vld [vmem:[%s1 + $0x358] sm:$0xff]
        %v499 = vld [vmem:[%s1 + $0x360] sm:$0xff]
        %v500 = vld [vmem:[%s1 + $0x368] sm:$0xff]
        %v501 = vld [vmem:[%s1 + $0x370] sm:$0xff]
        %v502 = vld [vmem:[%s1 + $0x378] sm:$0xff]
        %v503 = vld [vmem:[%s1 + $0x380] sm:$0xff]
        %v504 = vld [vmem:[%s1 + $0x388] sm:$0xff]
        %v505 = vld [vmem:[%s1 + $0x390] sm:$0xff]
        %v506 = vld [vmem:[%s1 + $0x398] sm:$0xff]
        %v507 = vld [vmem:[%s1 + $0x3a0] sm:$0xff]
        %v508 = vld [vmem:[%s1 + $0x3a8] sm:$0xff]
        %v509 = vld [vmem:[%s1 + $0x3b0] sm:$0xff]
        %v510 = vld [vmem:[%s1 + $0x3b8] sm:$0xff]
        %v511 = vld [vmem:[%s1 + $0x3c0] sm:$0xff]
        %v512 = vld [vmem:[%s1 + $0x3c8] sm:$0xff]
        %v513 = vld [vmem:[%s1 + $0x3d0] sm:$0xff]
        %v514 = vld [vmem:[%s1 + $0x3d8] sm:$0xff]
        %v515 = vld [vmem:[%s1 + $0x3e0] sm:$0xff]
        %v516 = vld [vmem:[%s1 + $0x3e8] sm:$0xff]
        %v517 = vld [vmem:[%s1 + $0x3f0] sm:$0xff]
        %v518 = vld [vmem:[%s1 + $0x3f8] sm:$0xff]
        %v647 = vunpack.c.l.b16 %v391
        %v648 = vunpack.c.h.b16 %v391
        %v649 = vunpack.c.l.b16 %v392
        %v650 = vunpack.c.h.b16 %v392
        %v651 = vunpack.c.l.b16 %v393
        %v652 = vunpack.c.h.b16 %v393
        %v653 = vunpack.c.l.b16 %v394
        %v654 = vunpack.c.h.b16 %v394
        %v655 = vunpack.c.l.b16 %v395
        %v656 = vunpack.c.h.b16 %v395
        %v657 = vunpack.c.l.b16 %v396
        %v658 = vunpack.c.h.b16 %v396
        %v659 = vunpack.c.l.b16 %v397
        %v660 = vunpack.c.h.b16 %v397
        %v661 = vunpack.c.l.b16 %v398
        %v662 = vunpack.c.h.b16 %v398
        %v663 = vunpack.c.l.b16 %v399
        %v664 = vunpack.c.h.b16 %v399
        %v665 = vunpack.c.l.b16 %v400
        %v666 = vunpack.c.h.b16 %v400
        %v667 = vunpack.c.l.b16 %v401
        %v668 = vunpack.c.h.b16 %v401
        %v669 = vunpack.c.l.b16 %v402
        %v670 = vunpack.c.h.b16 %v402
        %v671 = vunpack.c.l.b16 %v403
        %v672 = vunpack.c.h.b16 %v403
        %v673 = vunpack.c.l.b16 %v404
        %v674 = vunpack.c.h.b16 %v404
        %v675 = vunpack.c.l.b16 %v405
        %v676 = vunpack.c.h.b16 %v405
        %v677 = vunpack.c.l.b16 %v406
        %v678 = vunpack.c.h.b16 %v406
        %v679 = vunpack.c.l.b16 %v407
        %v680 = vunpack.c.h.b16 %v407
        %v681 = vunpack.c.l.b16 %v408
        %v682 = vunpack.c.h.b16 %v408
        %v683 = vunpack.c.l.b16 %v409
        %v684 = vunpack.c.h.b16 %v409
        %v685 = vunpack.c.l.b16 %v410
        %v686 = vunpack.c.h.b16 %v410
        %v687 = vunpack.c.l.b16 %v411
        %v688 = vunpack.c.h.b16 %v411
        %v689 = vunpack.c.l.b16 %v412
        %v690 = vunpack.c.h.b16 %v412
        %v691 = vunpack.c.l.b16 %v413
        %v692 = vunpack.c.h.b16 %v413
        %v693 = vunpack.c.l.b16 %v414
        %v694 = vunpack.c.h.b16 %v414
        %v695 = vunpack.c.l.b16 %v415
        %v696 = vunpack.c.h.b16 %v415
        %v697 = vunpack.c.l.b16 %v416
        %v698 = vunpack.c.h.b16 %v416
        %v699 = vunpack.c.l.b16 %v417
        %v700 = vunpack.c.h.b16 %v417
        %v701 = vunpack.c.l.b16 %v418
        %v702 = vunpack.c.h.b16 %v418
        %v703 = vunpack.c.l.b16 %v419
        %v704 = vunpack.c.h.b16 %v419
        %v705 = vunpack.c.l.b16 %v420
        %v706 = vunpack.c.h.b16 %v420
        %v707 = vunpack.c.l.b16 %v421
        %v708 = vunpack.c.h.b16 %v421
        %v709 = vunpack.c.l.b16 %v422
        %v710 = vunpack.c.h.b16 %v422
        %v711 = vunpack.c.l.b16 %v423
        %v712 = vunpack.c.h.b16 %v423
        %v713 = vunpack.c.l.b16 %v424
        %v714 = vunpack.c.h.b16 %v424
        %v715 = vunpack.c.l.b16 %v425
        %v716 = vunpack.c.h.b16 %v425
        %v717 = vunpack.c.l.b16 %v426
        %v718 = vunpack.c.h.b16 %v426
        %v719 = vunpack.c.l.b16 %v427
        %v720 = vunpack.c.h.b16 %v427
        %v721 = vunpack.c.l.b16 %v428
        %v722 = vunpack.c.h.b16 %v428
        %v723 = vunpack.c.l.b16 %v429
        %v724 = vunpack.c.h.b16 %v429
        %v725 = vunpack.c.l.b16 %v430
        %v726 = vunpack.c.h.b16 %v430
        %v727 = vunpack.c.l.b16 %v431
        %v728 = vunpack.c.h.b16 %v431
        %v729 = vunpack.c.l.b16 %v432
        %v730 = vunpack.c.h.b16 %v432
        %v731 = vunpack.c.l.b16 %v433
        %v732 = vunpack.c.h.b16 %v433
        %v733 = vunpack.c.l.b16 %v434
        %v734 = vunpack.c.h.b16 %v434
        %v735 = vunpack.c.l.b16 %v435
        %v736 = vunpack.c.h.b16 %v435
        %v737 = vunpack.c.l.b16 %v436
        %v738 = vunpack.c.h.b16 %v436
        %v739 = vunpack.c.l.b16 %v437
        %v740 = vunpack.c.h.b16 %v437
        %v741 = vunpack.c.l.b16 %v438
        %v742 = vunpack.c.h.b16 %v438
        %v743 = vunpack.c.l.b16 %v439
        %v744 = vunpack.c.h.b16 %v439
        %v745 = vunpack.c.l.b16 %v440
        %v746 = vunpack.c.h.b16 %v440
        %v747 = vunpack.c.l.b16 %v441
        %v748 = vunpack.c.h.b16 %v441
        %v749 = vunpack.c.l.b16 %v442
        %v750 = vunpack.c.h.b16 %v442
        %v751 = vunpack.c.l.b16 %v443
        %v752 = vunpack.c.h.b16 %v443
        %v753 = vunpack.c.l.b16 %v444
        %v754 = vunpack.c.h.b16 %v444
        %v755 = vunpack.c.l.b16 %v445
        %v756 = vunpack.c.h.b16 %v445
        %v757 = vunpack.c.l.b16 %v446
        %v758 = vunpack.c.h.b16 %v446
        %v759 = vunpack.c.l.b16 %v447
        %v760 = vunpack.c.h.b16 %v447
        %v761 = vunpack.c.l.b16 %v448
        %v762 = vunpack.c.h.b16 %v448
        %v763 = vunpack.c.l.b16 %v449
        %v764 = vunpack.c.h.b16 %v449
        %v765 = vunpack.c.l.b16 %v450
        %v766 = vunpack.c.h.b16 %v450
        %v767 = vunpack.c.l.b16 %v451
        %v768 = vunpack.c.h.b16 %v451
        %v769 = vunpack.c.l.b16 %v452
        %v770 = vunpack.c.h.b16 %v452
        %v771 = vunpack.c.l.b16 %v453
        %v772 = vunpack.c.h.b16 %v453
        %v773 = vunpack.c.l.b16 %v454
        %v774 = vunpack.c.h.b16 %v454
        %v775 = vunpack.c.l.b16 %v455
        %v776 = vunpack.c.h.b16 %v455
        %v777 = vunpack.c.l.b16 %v456
        %v778 = vunpack.c.h.b16 %v456
        %v779 = vunpack.c.l.b16 %v457
        %v780 = vunpack.c.h.b16 %v457
        %v781 = vunpack.c.l.b16 %v458
        %v782 = vunpack.c.h.b16 %v458
        %v783 = vunpack.c.l.b16 %v459
        %v784 = vunpack.c.h.b16 %v459
        %v785 = vunpack.c.l.b16 %v460
        %v786 = vunpack.c.h.b16 %v460
        %v787 = vunpack.c.l.b16 %v461
        %v788 = vunpack.c.h.b16 %v461
        %v789 = vunpack.c.l.b16 %v462
        %v790 = vunpack.c.h.b16 %v462
        %v791 = vunpack.c.l.b16 %v463
        %v792 = vunpack.c.h.b16 %v463
        %v793 = vunpack.c.l.b16 %v464
        %v794 = vunpack.c.h.b16 %v464
        %v795 = vunpack.c.l.b16 %v465
        %v796 = vunpack.c.h.b16 %v465
        %v797 = vunpack.c.l.b16 %v466
        %v798 = vunpack.c.h.b16 %v466
        %v799 = vunpack.c.l.b16 %v467
        %v800 = vunpack.c.h.b16 %v467
        %v801 = vunpack.c.l.b16 %v468
        %v802 = vunpack.c.h.b16 %v468
        %v803 = vunpack.c.l.b16 %v469
        %v804 = vunpack.c.h.b16 %v469
        %v805 = vunpack.c.l.b16 %v470
        %v806 = vunpack.c.h.b16 %v470
        %v807 = vunpack.c.l.b16 %v471
        %v808 = vunpack.c.h.b16 %v471
        %v809 = vunpack.c.l.b16 %v472
        %v810 = vunpack.c.h.b16 %v472
        %v811 = vunpack.c.l.b16 %v473
        %v812 = vunpack.c.h.b16 %v473
        %v813 = vunpack.c.l.b16 %v474
        %v814 = vunpack.c.h.b16 %v474
        %v815 = vunpack.c.l.b16 %v475
        %v816 = vunpack.c.h.b16 %v475
        %v817 = vunpack.c.l.b16 %v476
        %v818 = vunpack.c.h.b16 %v476
        %v819 = vunpack.c.l.b16 %v477
        %v820 = vunpack.c.h.b16 %v477
        %v821 = vunpack.c.l.b16 %v478
        %v822 = vunpack.c.h.b16 %v478
        %v823 = vunpack.c.l.b16 %v479
        %v824 = vunpack.c.h.b16 %v479
        %v825 = vunpack.c.l.b16 %v480
        %v826 = vunpack.c.h.b16 %v480
        %v827 = vunpack.c.l.b16 %v481
        %v828 = vunpack.c.h.b16 %v481
        %v829 = vunpack.c.l.b16 %v482
        %v830 = vunpack.c.h.b16 %v482
        %v831 = vunpack.c.l.b16 %v483
        %v832 = vunpack.c.h.b16 %v483
        %v833 = vunpack.c.l.b16 %v484
        %v834 = vunpack.c.h.b16 %v484
        %v835 = vunpack.c.l.b16 %v485
        %v836 = vunpack.c.h.b16 %v485
        %v837 = vunpack.c.l.b16 %v486
        %v838 = vunpack.c.h.b16 %v486
        %v839 = vunpack.c.l.b16 %v487
        %v840 = vunpack.c.h.b16 %v487
        %v841 = vunpack.c.l.b16 %v488
        %v842 = vunpack.c.h.b16 %v488
        %v843 = vunpack.c.l.b16 %v489
        %v844 = vunpack.c.h.b16 %v489
        %v845 = vunpack.c.l.b16 %v490
        %v846 = vunpack.c.h.b16 %v490
        %v847 = vunpack.c.l.b16 %v491
        %v848 = vunpack.c.h.b16 %v491
        %v849 = vunpack.c.l.b16 %v492
        %v850 = vunpack.c.h.b16 %v492
        %v851 = vunpack.c.l.b16 %v493
        %v852 = vunpack.c.h.b16 %v493
        %v853 = vunpack.c.l.b16 %v494
        %v854 = vunpack.c.h.b16 %v494
        %v855 = vunpack.c.l.b16 %v495
        %v856 = vunpack.c.h.b16 %v495
        %v857 = vunpack.c.l.b16 %v496
        %v858 = vunpack.c.h.b16 %v496
        %v859 = vunpack.c.l.b16 %v497
        %v860 = vunpack.c.h.b16 %v497
        %v861 = vunpack.c.l.b16 %v498
        %v862 = vunpack.c.h.b16 %v498
        %v863 = vunpack.c.l.b16 %v499
        %v864 = vunpack.c.h.b16 %v499
        %v865 = vunpack.c.l.b16 %v500
        %v866 = vunpack.c.h.b16 %v500
        %v867 = vunpack.c.l.b16 %v501
        %v868 = vunpack.c.h.b16 %v501
        %v869 = vunpack.c.l.b16 %v502
        %v870 = vunpack.c.h.b16 %v502
        %v871 = vunpack.c.l.b16 %v503
        %v872 = vunpack.c.h.b16 %v503
        %v873 = vunpack.c.l.b16 %v504
        %v874 = vunpack.c.h.b16 %v504
        %v875 = vunpack.c.l.b16 %v505
        %v876 = vunpack.c.h.b16 %v505
        %v877 = vunpack.c.l.b16 %v506
        %v878 = vunpack.c.h.b16 %v506
        %v879 = vunpack.c.l.b16 %v507
        %v880 = vunpack.c.h.b16 %v507
        %v881 = vunpack.c.l.b16 %v508
        %v882 = vunpack.c.h.b16 %v508
        %v883 = vunpack.c.l.b16 %v509
        %v884 = vunpack.c.h.b16 %v509
        %v885 = vunpack.c.l.b16 %v510
        %v886 = vunpack.c.h.b16 %v510
        %v887 = vunpack.c.l.b16 %v511
        %v888 = vunpack.c.h.b16 %v511
        %v889 = vunpack.c.l.b16 %v512
        %v890 = vunpack.c.h.b16 %v512
        %v891 = vunpack.c.l.b16 %v513
        %v892 = vunpack.c.h.b16 %v513
        %v893 = vunpack.c.l.b16 %v514
        %v894 = vunpack.c.h.b16 %v514
        %v895 = vunpack.c.l.b16 %v515
        %v896 = vunpack.c.h.b16 %v515
        %v897 = vunpack.c.l.b16 %v516
        %v898 = vunpack.c.h.b16 %v516
        %v899 = vunpack.c.l.b16 %v517
        %v900 = vunpack.c.h.b16 %v517
        %v901 = vunpack.c.l.b16 %v518
        %v902 = vunpack.c.h.b16 %v518
        %v903 = vpack.c.b16 %v649, %v647
        %v904 = vpack.c.b16 %v650, %v648
        %v905 = vpack.c.b16 %v653, %v651
        %v906 = vpack.c.b16 %v654, %v652
        %v907 = vpack.c.b16 %v657, %v655
        %v908 = vpack.c.b16 %v658, %v656
        %v909 = vpack.c.b16 %v661, %v659
        %v910 = vpack.c.b16 %v662, %v660
        %v911 = vpack.c.b16 %v665, %v663
        %v912 = vpack.c.b16 %v666, %v664
        %v913 = vpack.c.b16 %v669, %v667
        %v914 = vpack.c.b16 %v670, %v668
        %v915 = vpack.c.b16 %v673, %v671
        %v916 = vpack.c.b16 %v674, %v672
        %v917 = vpack.c.b16 %v677, %v675
        %v918 = vpack.c.b16 %v678, %v676
        %v919 = vpack.c.b16 %v681, %v679
        %v920 = vpack.c.b16 %v682, %v680
        %v921 = vpack.c.b16 %v685, %v683
        %v922 = vpack.c.b16 %v686, %v684
        %v923 = vpack.c.b16 %v689, %v687
        %v924 = vpack.c.b16 %v690, %v688
        %v925 = vpack.c.b16 %v693, %v691
        %v926 = vpack.c.b16 %v694, %v692
        %v927 = vpack.c.b16 %v697, %v695
        %v928 = vpack.c.b16 %v698, %v696
        %v929 = vpack.c.b16 %v701, %v699
        %v930 = vpack.c.b16 %v702, %v700
        %v931 = vpack.c.b16 %v705, %v703
        %v932 = vpack.c.b16 %v706, %v704
        %v933 = vpack.c.b16 %v709, %v707
        %v934 = vpack.c.b16 %v710, %v708
        %v935 = vpack.c.b16 %v713, %v711
        %v936 = vpack.c.b16 %v714, %v712
        %v937 = vpack.c.b16 %v717, %v715
        %v938 = vpack.c.b16 %v718, %v716
        %v939 = vpack.c.b16 %v721, %v719
        %v940 = vpack.c.b16 %v722, %v720
        %v941 = vpack.c.b16 %v725, %v723
        %v942 = vpack.c.b16 %v726, %v724
        %v943 = vpack.c.b16 %v729, %v727
        %v944 = vpack.c.b16 %v730, %v728
        %v945 = vpack.c.b16 %v733, %v731
        %v946 = vpack.c.b16 %v734, %v732
        %v947 = vpack.c.b16 %v737, %v735
        %v948 = vpack.c.b16 %v738, %v736
        %v949 = vpack.c.b16 %v741, %v739
        %v950 = vpack.c.b16 %v742, %v740
        %v951 = vpack.c.b16 %v745, %v743
        %v952 = vpack.c.b16 %v746, %v744
        %v953 = vpack.c.b16 %v749, %v747
        %v954 = vpack.c.b16 %v750, %v748
        %v955 = vpack.c.b16 %v753, %v751
        %v956 = vpack.c.b16 %v754, %v752
        %v957 = vpack.c.b16 %v757, %v755
        %v958 = vpack.c.b16 %v758, %v756
        %v959 = vpack.c.b16 %v761, %v759
        %v960 = vpack.c.b16 %v762, %v760
        %v961 = vpack.c.b16 %v765, %v763
        %v962 = vpack.c.b16 %v766, %v764
        %v963 = vpack.c.b16 %v769, %v767
        %v964 = vpack.c.b16 %v770, %v768
        %v965 = vpack.c.b16 %v773, %v771
        %v966 = vpack.c.b16 %v774, %v772
        %v967 = vpack.c.b16 %v777, %v775
        %v968 = vpack.c.b16 %v778, %v776
        %v969 = vpack.c.b16 %v781, %v779
        %v970 = vpack.c.b16 %v782, %v780
        %v971 = vpack.c.b16 %v785, %v783
        %v972 = vpack.c.b16 %v786, %v784
        %v973 = vpack.c.b16 %v789, %v787
        %v974 = vpack.c.b16 %v790, %v788
        %v975 = vpack.c.b16 %v793, %v791
        %v976 = vpack.c.b16 %v794, %v792
        %v977 = vpack.c.b16 %v797, %v795
        %v978 = vpack.c.b16 %v798, %v796
        %v979 = vpack.c.b16 %v801, %v799
        %v980 = vpack.c.b16 %v802, %v800
        %v981 = vpack.c.b16 %v805, %v803
        %v982 = vpack.c.b16 %v806, %v804
        %v983 = vpack.c.b16 %v809, %v807
        %v984 = vpack.c.b16 %v810, %v808
        %v985 = vpack.c.b16 %v813, %v811
        %v986 = vpack.c.b16 %v814, %v812
        %v987 = vpack.c.b16 %v817, %v815
        %v988 = vpack.c.b16 %v818, %v816
        %v989 = vpack.c.b16 %v821, %v819
        %v990 = vpack.c.b16 %v822, %v820
        %v991 = vpack.c.b16 %v825, %v823
        %v992 = vpack.c.b16 %v826, %v824
        %v993 = vpack.c.b16 %v829, %v827
        %v994 = vpack.c.b16 %v830, %v828
        %v995 = vpack.c.b16 %v833, %v831
        %v996 = vpack.c.b16 %v834, %v832
        %v997 = vpack.c.b16 %v837, %v835
        %v998 = vpack.c.b16 %v838, %v836
        %v999 = vpack.c.b16 %v841, %v839
        %v1000 = vpack.c.b16 %v842, %v840
        %v1001 = vpack.c.b16 %v845, %v843
        %v1002 = vpack.c.b16 %v846, %v844
        %v1003 = vpack.c.b16 %v849, %v847
        %v1004 = vpack.c.b16 %v850, %v848
        %v1005 = vpack.c.b16 %v853, %v851
        %v1006 = vpack.c.b16 %v854, %v852
        %v1007 = vpack.c.b16 %v857, %v855
        %v1008 = vpack.c.b16 %v858, %v856
        %v1009 = vpack.c.b16 %v861, %v859
        %v1010 = vpack.c.b16 %v862, %v860
        %v1011 = vpack.c.b16 %v865, %v863
        %v1012 = vpack.c.b16 %v866, %v864
        %v1013 = vpack.c.b16 %v869, %v867
        %v1014 = vpack.c.b16 %v870, %v868
        %v1015 = vpack.c.b16 %v873, %v871
        %v1016 = vpack.c.b16 %v874, %v872
        %v1017 = vpack.c.b16 %v877, %v875
        %v1018 = vpack.c.b16 %v878, %v876
        %v1019 = vpack.c.b16 %v881, %v879
        %v1020 = vpack.c.b16 %v882, %v880
        %v1021 = vpack.c.b16 %v885, %v883
        %v1022 = vpack.c.b16 %v886, %v884
        %v1023 = vpack.c.b16 %v889, %v887
        %v1024 = vpack.c.b16 %v890, %v888
        %v1025 = vpack.c.b16 %v893, %v891
        %v1026 = vpack.c.b16 %v894, %v892
        %v1027 = vpack.c.b16 %v897, %v895
        %v1028 = vpack.c.b16 %v898, %v896
        %v1029 = vpack.c.b16 %v901, %v899
        %v1030 = vpack.c.b16 %v902, %v900
        %v1191 = vunpack.c.l.b16 %v359
        %v1192 = vunpack.c.l.b16 %v360
        %v1193 = vunpack.c.l.b16 %v361
        %v1194 = vunpack.c.l.b16 %v362
        %v1195 = vunpack.c.l.b16 %v363
        %v1196 = vunpack.c.l.b16 %v364
        %v1197 = vunpack.c.l.b16 %v365
        %v1198 = vunpack.c.l.b16 %v366
        %v1199 = vunpack.c.l.b16 %v367
        %v1200 = vunpack.c.l.b16 %v368
        %v1201 = vunpack.c.l.b16 %v369
        %v1202 = vunpack.c.l.b16 %v370
        %v1203 = vunpack.c.l.b16 %v371
        %v1204 = vunpack.c.l.b16 %v372
        %v1205 = vunpack.c.l.b16 %v373
        %v1206 = vunpack.c.l.b16 %v374
        %v1207 = vunpack.c.l.b16 %v375
        %v1208 = vunpack.c.l.b16 %v376
        %v1209 = vunpack.c.l.b16 %v377
        %v1210 = vunpack.c.l.b16 %v378
        %v1211 = vunpack.c.l.b16 %v379
        %v1212 = vunpack.c.l.b16 %v380
        %v1213 = vunpack.c.l.b16 %v381
        %v1214 = vunpack.c.l.b16 %v382
        %v1215 = vunpack.c.l.b16 %v383
        %v1216 = vunpack.c.l.b16 %v384
        %v1217 = vunpack.c.l.b16 %v385
        %v1218 = vunpack.c.l.b16 %v386
        %v1219 = vunpack.c.l.b16 %v387
        %v1220 = vunpack.c.l.b16 %v388
        %v1221 = vunpack.c.l.b16 %v389
        %v1222 = vunpack.c.l.b16 %v390
        %v1223 = vpack.c.b16 %v1192, %v1191
        %v1224 = vpack.c.b16 %v1194, %v1193
        %v1225 = vpack.c.b16 %v1196, %v1195
        %v1226 = vpack.c.b16 %v1198, %v1197
        %v1227 = vpack.c.b16 %v1200, %v1199
        %v1228 = vpack.c.b16 %v1202, %v1201
        %v1229 = vpack.c.b16 %v1204, %v1203
        %v1230 = vpack.c.b16 %v1206, %v1205
        %v1231 = vpack.c.b16 %v1208, %v1207
        %v1232 = vpack.c.b16 %v1210, %v1209
        %v1233 = vpack.c.b16 %v1212, %v1211
        %v1234 = vpack.c.b16 %v1214, %v1213
        %v1235 = vpack.c.b16 %v1216, %v1215
        %v1236 = vpack.c.b16 %v1218, %v1217
        %v1237 = vpack.c.b16 %v1220, %v1219
        %v1238 = vpack.c.b16 %v1222, %v1221
        %1255 = vmatprep.subr.bf16.mxu0 0
        %1256 = vmatpush1.bf16.msra.mxu0 %v1223
        %1257 = vmatprep.subr.bf16.mxu0 0
        %1258 = vmatpush1.bf16.msra.mxu0 %v1224
        %1259 = vmatprep.subr.bf16.mxu0 0
        %1260 = vmatpush1.bf16.msra.mxu0 %v1225
        %1261 = vmatprep.subr.bf16.mxu0 0
        %1262 = vmatpush1.bf16.msra.mxu0 %v1226
        %1263 = vmatprep.subr.bf16.mxu0 0
        %1264 = vmatpush1.bf16.msra.mxu0 %v1227
        %1265 = vmatprep.subr.bf16.mxu0 0
        %1266 = vmatpush1.bf16.msra.mxu0 %v1228
        %1267 = vmatprep.subr.bf16.mxu0 0
        %1268 = vmatpush1.bf16.msra.mxu0 %v1229
        %1269 = vmatprep.subr.bf16.mxu0 0
        %1270 = vmatpush1.bf16.msra.mxu0 %v1230
        %1271 = vmatprep.subr.bf16.mxu0 0
        %1272 = vmatpush1.bf16.msra.mxu0 %v1231
        %1273 = vmatprep.subr.bf16.mxu0 0
        %1274 = vmatpush1.bf16.msra.mxu0 %v1232
        %1275 = vmatprep.subr.bf16.mxu0 0
        %1276 = vmatpush1.bf16.msra.mxu0 %v1233
        %1277 = vmatprep.subr.bf16.mxu0 0
        %1278 = vmatpush1.bf16.msra.mxu0 %v1234
        %1279 = vmatprep.subr.bf16.mxu0 0
        %1280 = vmatpush1.bf16.msra.mxu0 %v1235
        %1281 = vmatprep.subr.bf16.mxu0 0
        %1282 = vmatpush1.bf16.msra.mxu0 %v1236
        %1283 = vmatprep.subr.bf16.mxu0 0
        %1284 = vmatpush1.bf16.msra.mxu0 %v1237
        %1285 = vmatprep.subr.bf16.mxu0 0
        %1286 = vmatpush1.bf16.msra.mxu0 %v1238
        %1287 = vmatprep.mubr.bf16.mxu0 %v904
        %1288 = vmatmul.mubr.bf16.gmra.mrb[0].mxu0 %v903
        %v1289 = vpop.f32.mrb[0].mxu0
        %v1290 = vadd.f32 0.0, %v1289
        %v1291 = vpop.f32.mrb[0].mxu0
        %v1292 = vpop.f32.mrb[0].mxu0
        %v1293 = vadd.f32 0.0, %v1292
        %v1294 = vpop.f32.mrb[0].mxu0
        %1295 = vmatprep.mubr.bf16.mxu0 %v906
        %1296 = vmatmul.mubr.bf16.gmra.mrb[0].mxu0 %v905
        %v1297 = vpop.f32.mrb[0].mxu0
        %v1298 = vadd.f32 0.0, %v1297
        %v1299 = vpop.f32.mrb[0].mxu0
        %v1300 = vpop.f32.mrb[0].mxu0
        %v1301 = vadd.f32 0.0, %v1300
        %v1302 = vpop.f32.mrb[0].mxu0
        %1303 = vmatprep.mubr.bf16.mxu0 %v908
        %1304 = vmatmul.mubr.bf16.gmra.mrb[0].mxu0 %v907
        %v1305 = vpop.f32.mrb[0].mxu0
        %v1306 = vadd.f32 0.0, %v1305
        %v1307 = vpop.f32.mrb[0].mxu0
        %v1308 = vpop.f32.mrb[0].mxu0
        %v1309 = vadd.f32 0.0, %v1308
        %v1310 = vpop.f32.mrb[0].mxu0
        %1311 = vmatprep.mubr.bf16.mxu0 %v910
        %1312 = vmatmul.mubr.bf16.gmra.mrb[0].mxu0 %v909
        %v1313 = vpop.f32.mrb[0].mxu0
        %v1314 = vadd.f32 0.0, %v1313
        %v1315 = vpop.f32.mrb[0].mxu0
        %v1316 = vpop.f32.mrb[0].mxu0
        %v1317 = vadd.f32 0.0, %v1316
        %v1318 = vpop.f32.mrb[0].mxu0
        %1319 = vmatprep.mubr.bf16.mxu0 %v912
        %1320 = vmatmul.mubr.bf16.gmra.mrb[0].mxu0 %v911
        %v1321 = vpop.f32.mrb[0].mxu0
        %v1322 = vadd.f32 0.0, %v1321
        %v1323 = vpop.f32.mrb[0].mxu0
        %v1324 = vpop.f32.mrb[0].mxu0
        %v1325 = vadd.f32 0.0, %v1324
        %v1326 = vpop.f32.mrb[0].mxu0
        %1327 = vmatprep.mubr.bf16.mxu0 %v914
        %1328 = vmatmul.mubr.bf16.gmra.mrb[0].mxu0 %v913
        %v1329 = vpop.f32.mrb[0].mxu0
        %v1330 = vadd.f32 0.0, %v1329
        %v1331 = vpop.f32.mrb[0].mxu0
        %v1332 = vpop.f32.mrb[0].mxu0
        %v1333 = vadd.f32 0.0, %v1332
        %v1334 = vpop.f32.mrb[0].mxu0
        %1335 = vmatprep.mubr.bf16.mxu0 %v916
        %1336 = vmatmul.mubr.bf16.gmra.mrb[0].mxu0 %v915
        %v1337 = vpop.f32.mrb[0].mxu0
        %v1338 = vadd.f32 0.0, %v1337
        %v1339 = vpop.f32.mrb[0].mxu0
        %v1340 = vpop.f32.mrb[0].mxu0
        %v1341 = vadd.f32 0.0, %v1340
        %v1342 = vpop.f32.mrb[0].mxu0
        %1343 = vmatprep.mubr.bf16.mxu0 %v918
        %1344 = vmatmul.mubr.bf16.gmra.mrb[0].mxu0 %v917
        %v1345 = vpop.f32.mrb[0].mxu0
        %v1346 = vadd.f32 0.0, %v1345
        %v1347 = vpop.f32.mrb[0].mxu0
        %v1348 = vpop.f32.mrb[0].mxu0
        %v1349 = vadd.f32 0.0, %v1348
        %v1350 = vpop.f32.mrb[0].mxu0
        %1351 = vmatprep.mubr.bf16.mxu0 %v920
        %1352 = vmatmul.mubr.bf16.gmra.mrb[0].mxu0 %v919
        %v1353 = vpop.f32.mrb[0].mxu0
        %v1354 = vadd.f32 0.0, %v1353
        %v1355 = vpop.f32.mrb[0].mxu0
        %v1356 = vpop.f32.mrb[0].mxu0
        %v1357 = vadd.f32 0.0, %v1356
        %v1358 = vpop.f32.mrb[0].mxu0
        %1359 = vmatprep.mubr.bf16.mxu0 %v922
        %1360 = vmatmul.mubr.bf16.gmra.mrb[0].mxu0 %v921
        %v1361 = vpop.f32.mrb[0].mxu0
        %v1362 = vadd.f32 0.0, %v1361
        %v1363 = vpop.f32.mrb[0].mxu0
        %v1364 = vpop.f32.mrb[0].mxu0
        %v1365 = vadd.f32 0.0, %v1364
        %v1366 = vpop.f32.mrb[0].mxu0
        %1367 = vmatprep.mubr.bf16.mxu0 %v924
        %1368 = vmatmul.mubr.bf16.gmra.mrb[0].mxu0 %v923
        %v1369 = vpop.f32.mrb[0].mxu0
        %v1370 = vadd.f32 0.0, %v1369
        %v1371 = vpop.f32.mrb[0].mxu0
        %v1372 = vpop.f32.mrb[0].mxu0
        %v1373 = vadd.f32 0.0, %v1372
        %v1374 = vpop.f32.mrb[0].mxu0
        %1375 = vmatprep.mubr.bf16.mxu0 %v926
        %1376 = vmatmul.mubr.bf16.gmra.mrb[0].mxu0 %v925
        %v1377 = vpop.f32.mrb[0].mxu0
        %v1378 = vadd.f32 0.0, %v1377
        %v1379 = vpop.f32.mrb[0].mxu0
        %v1380 = vpop.f32.mrb[0].mxu0
        %v1381 = vadd.f32 0.0, %v1380
        %v1382 = vpop.f32.mrb[0].mxu0
        %1383 = vmatprep.mubr.bf16.mxu0 %v928
        %1384 = vmatmul.mubr.bf16.gmra.mrb[0].mxu0 %v927
        %v1385 = vpop.f32.mrb[0].mxu0
        %v1386 = vadd.f32 0.0, %v1385
        %v1387 = vpop.f32.mrb[0].mxu0
        %v1388 = vpop.f32.mrb[0].mxu0
        %v1389 = vadd.f32 0.0, %v1388
        %v1390 = vpop.f32.mrb[0].mxu0
        %1391 = vmatprep.mubr.bf16.mxu0 %v930
        %1392 = vmatmul.mubr.bf16.gmra.mrb[0].mxu0 %v929
        %v1393 = vpop.f32.mrb[0].mxu0
        %v1394 = vadd.f32 0.0, %v1393
        %v1395 = vpop.f32.mrb[0].mxu0
        %v1396 = vpop.f32.mrb[0].mxu0
        %v1397 = vadd.f32 0.0, %v1396
        %v1398 = vpop.f32.mrb[0].mxu0
        %1399 = vmatprep.mubr.bf16.mxu0 %v932
        %1400 = vmatmul.mubr.bf16.gmra.mrb[0].mxu0 %v931
        %v1401 = vpop.f32.mrb[0].mxu0
        %v1402 = vadd.f32 0.0, %v1401
        %v1403 = vpop.f32.mrb[0].mxu0
        %v1404 = vpop.f32.mrb[0].mxu0
        %v1405 = vadd.f32 0.0, %v1404
        %v1406 = vpop.f32.mrb[0].mxu0
        %1407 = vmatprep.mubr.bf16.mxu0 %v934
        %1408 = vmatmul.mubr.bf16.gmra.mrb[0].mxu0 %v933
        %v1409 = vpop.f32.mrb[0].mxu0
        %v1410 = vadd.f32 0.0, %v1409
        %v1411 = vpop.f32.mrb[0].mxu0
        %v1412 = vpop.f32.mrb[0].mxu0
        %v1413 = vadd.f32 0.0, %v1412
        %v1414 = vpop.f32.mrb[0].mxu0
        %1415 = vmatprep.mubr.bf16.mxu0 %v936
        %1416 = vmatmul.mubr.bf16.gmra.mrb[0].mxu0 %v935
        %v1417 = vpop.f32.mrb[0].mxu0
        %v1418 = vadd.f32 0.0, %v1417
        %v1419 = vpop.f32.mrb[0].mxu0
        %v1420 = vpop.f32.mrb[0].mxu0
        %v1421 = vadd.f32 0.0, %v1420
        %v1422 = vpop.f32.mrb[0].mxu0
        %1423 = vmatprep.mubr.bf16.mxu0 %v938
        %1424 = vmatmul.mubr.bf16.gmra.mrb[0].mxu0 %v937
        %v1425 = vpop.f32.mrb[0].mxu0
        %v1426 = vadd.f32 0.0, %v1425
        %v1427 = vpop.f32.mrb[0].mxu0
        %v1428 = vpop.f32.mrb[0].mxu0
        %v1429 = vadd.f32 0.0, %v1428
        %v1430 = vpop.f32.mrb[0].mxu0
        %1431 = vmatprep.mubr.bf16.mxu0 %v940
        %1432 = vmatmul.mubr.bf16.gmra.mrb[0].mxu0 %v939
        %v1433 = vpop.f32.mrb[0].mxu0
        %v1434 = vadd.f32 0.0, %v1433
        %v1435 = vpop.f32.mrb[0].mxu0
        %v1436 = vpop.f32.mrb[0].mxu0
        %v1437 = vadd.f32 0.0, %v1436
        %v1438 = vpop.f32.mrb[0].mxu0
        %1439 = vmatprep.mubr.bf16.mxu0 %v942
        %1440 = vmatmul.mubr.bf16.gmra.mrb[0].mxu0 %v941
        %v1441 = vpop.f32.mrb[0].mxu0
        %v1442 = vadd.f32 0.0, %v1441
        %v1443 = vpop.f32.mrb[0].mxu0
        %v1444 = vpop.f32.mrb[0].mxu0
        %v1445 = vadd.f32 0.0, %v1444
        %v1446 = vpop.f32.mrb[0].mxu0
        %1447 = vmatprep.mubr.bf16.mxu0 %v944
        %1448 = vmatmul.mubr.bf16.gmra.mrb[0].mxu0 %v943
        %v1449 = vpop.f32.mrb[0].mxu0
        %v1450 = vadd.f32 0.0, %v1449
        %v1451 = vpop.f32.mrb[0].mxu0
        %v1452 = vpop.f32.mrb[0].mxu0
        %v1453 = vadd.f32 0.0, %v1452
        %v1454 = vpop.f32.mrb[0].mxu0
        %1455 = vmatprep.mubr.bf16.mxu0 %v946
        %1456 = vmatmul.mubr.bf16.gmra.mrb[0].mxu0 %v945
        %v1457 = vpop.f32.mrb[0].mxu0
        %v1458 = vadd.f32 0.0, %v1457
        %v1459 = vpop.f32.mrb[0].mxu0
        %v1460 = vpop.f32.mrb[0].mxu0
        %v1461 = vadd.f32 0.0, %v1460
        %v1462 = vpop.f32.mrb[0].mxu0
        %1463 = vmatprep.mubr.bf16.mxu0 %v948
        %1464 = vmatmul.mubr.bf16.gmra.mrb[0].mxu0 %v947
        %v1465 = vpop.f32.mrb[0].mxu0
        %v1466 = vadd.f32 0.0, %v1465
        %v1467 = vpop.f32.mrb[0].mxu0
        %v1468 = vpop.f32.mrb[0].mxu0
        %v1469 = vadd.f32 0.0, %v1468
        %v1470 = vpop.f32.mrb[0].mxu0
        %1471 = vmatprep.mubr.bf16.mxu0 %v950
        %1472 = vmatmul.mubr.bf16.gmra.mrb[0].mxu0 %v949
        %v1473 = vpop.f32.mrb[0].mxu0
        %v1474 = vadd.f32 0.0, %v1473
        %v1475 = vpop.f32.mrb[0].mxu0
        %v1476 = vpop.f32.mrb[0].mxu0
        %v1477 = vadd.f32 0.0, %v1476
        %v1478 = vpop.f32.mrb[0].mxu0
        %1479 = vmatprep.mubr.bf16.mxu0 %v952
        %1480 = vmatmul.mubr.bf16.gmra.mrb[0].mxu0 %v951
        %v1481 = vpop.f32.mrb[0].mxu0
        %v1482 = vadd.f32 0.0, %v1481
        %v1483 = vpop.f32.mrb[0].mxu0
        %v1484 = vpop.f32.mrb[0].mxu0
        %v1485 = vadd.f32 0.0, %v1484
        %v1486 = vpop.f32.mrb[0].mxu0
        %1487 = vmatprep.mubr.bf16.mxu0 %v954
        %1488 = vmatmul.mubr.bf16.gmra.mrb[0].mxu0 %v953
        %v1489 = vpop.f32.mrb[0].mxu0
        %v1490 = vadd.f32 0.0, %v1489
        %v1491 = vpop.f32.mrb[0].mxu0
        %v1492 = vpop.f32.mrb[0].mxu0
        %v1493 = vadd.f32 0.0, %v1492
        %v1494 = vpop.f32.mrb[0].mxu0
        %1495 = vmatprep.mubr.bf16.mxu0 %v956
        %1496 = vmatmul.mubr.bf16.gmra.mrb[0].mxu0 %v955
        %v1497 = vpop.f32.mrb[0].mxu0
        %v1498 = vadd.f32 0.0, %v1497
        %v1499 = vpop.f32.mrb[0].mxu0
        %v1500 = vpop.f32.mrb[0].mxu0
        %v1501 = vadd.f32 0.0, %v1500
        %v1502 = vpop.f32.mrb[0].mxu0
        %1503 = vmatprep.mubr.bf16.mxu0 %v958
        %1504 = vmatmul.mubr.bf16.gmra.mrb[0].mxu0 %v957
        %v1505 = vpop.f32.mrb[0].mxu0
        %v1506 = vadd.f32 0.0, %v1505
        %v1507 = vpop.f32.mrb[0].mxu0
        %v1508 = vpop.f32.mrb[0].mxu0
        %v1509 = vadd.f32 0.0, %v1508
        %v1510 = vpop.f32.mrb[0].mxu0
        %1511 = vmatprep.mubr.bf16.mxu0 %v960
        %1512 = vmatmul.mubr.bf16.gmra.mrb[0].mxu0 %v959
        %v1513 = vpop.f32.mrb[0].mxu0
        %v1514 = vadd.f32 0.0, %v1513
        %v1515 = vpop.f32.mrb[0].mxu0
        %v1516 = vpop.f32.mrb[0].mxu0
        %v1517 = vadd.f32 0.0, %v1516
        %v1518 = vpop.f32.mrb[0].mxu0
        %1519 = vmatprep.mubr.bf16.mxu0 %v962
        %1520 = vmatmul.mubr.bf16.gmra.mrb[0].mxu0 %v961
        %v1521 = vpop.f32.mrb[0].mxu0
        %v1522 = vadd.f32 0.0, %v1521
        %v1523 = vpop.f32.mrb[0].mxu0
        %v1524 = vpop.f32.mrb[0].mxu0
        %v1525 = vadd.f32 0.0, %v1524
        %v1526 = vpop.f32.mrb[0].mxu0
        %1527 = vmatprep.mubr.bf16.mxu0 %v964
        %1528 = vmatmul.mubr.bf16.gmra.mrb[0].mxu0 %v963
        %v1529 = vpop.f32.mrb[0].mxu0
        %v1530 = vadd.f32 0.0, %v1529
        %v1531 = vpop.f32.mrb[0].mxu0
        %v1532 = vpop.f32.mrb[0].mxu0
        %v1533 = vadd.f32 0.0, %v1532
        %v1534 = vpop.f32.mrb[0].mxu0
        %1535 = vmatprep.mubr.bf16.mxu0 %v966
        %1536 = vmatmul.mubr.bf16.gmra.mrb[0].mxu0 %v965
        %v1537 = vpop.f32.mrb[0].mxu0
        %v1538 = vadd.f32 0.0, %v1537
        %v1539 = vpop.f32.mrb[0].mxu0
        %v1540 = vpop.f32.mrb[0].mxu0
        %v1541 = vadd.f32 0.0, %v1540
        %v1542 = vpop.f32.mrb[0].mxu0
        %1543 = vmatprep.mubr.bf16.mxu0 %v968
        %1544 = vmatmul.mubr.bf16.gmra.mrb[0].mxu0 %v967
        %v1545 = vpop.f32.mrb[0].mxu0
        %v1546 = vadd.f32 0.0, %v1545
        %v1547 = vpop.f32.mrb[0].mxu0
        %v1548 = vpop.f32.mrb[0].mxu0
        %v1549 = vadd.f32 0.0, %v1548
        %v1550 = vpop.f32.mrb[0].mxu0
        %1551 = vmatprep.mubr.bf16.mxu0 %v970
        %1552 = vmatmul.mubr.bf16.gmra.mrb[0].mxu0 %v969
        %v1553 = vpop.f32.mrb[0].mxu0
        %v1554 = vadd.f32 0.0, %v1553
        %v1555 = vpop.f32.mrb[0].mxu0
        %v1556 = vpop.f32.mrb[0].mxu0
        %v1557 = vadd.f32 0.0, %v1556
        %v1558 = vpop.f32.mrb[0].mxu0
        %1559 = vmatprep.mubr.bf16.mxu0 %v972
        %1560 = vmatmul.mubr.bf16.gmra.mrb[0].mxu0 %v971
        %v1561 = vpop.f32.mrb[0].mxu0
        %v1562 = vadd.f32 0.0, %v1561
        %v1563 = vpop.f32.mrb[0].mxu0
        %v1564 = vpop.f32.mrb[0].mxu0
        %v1565 = vadd.f32 0.0, %v1564
        %v1566 = vpop.f32.mrb[0].mxu0
        %1567 = vmatprep.mubr.bf16.mxu0 %v974
        %1568 = vmatmul.mubr.bf16.gmra.mrb[0].mxu0 %v973
        %v1569 = vpop.f32.mrb[0].mxu0
        %v1570 = vadd.f32 0.0, %v1569
        %v1571 = vpop.f32.mrb[0].mxu0
        %v1572 = vpop.f32.mrb[0].mxu0
        %v1573 = vadd.f32 0.0, %v1572
        %v1574 = vpop.f32.mrb[0].mxu0
        %1575 = vmatprep.mubr.bf16.mxu0 %v976
        %1576 = vmatmul.mubr.bf16.gmra.mrb[0].mxu0 %v975
        %v1577 = vpop.f32.mrb[0].mxu0
        %v1578 = vadd.f32 0.0, %v1577
        %v1579 = vpop.f32.mrb[0].mxu0
        %v1580 = vpop.f32.mrb[0].mxu0
        %v1581 = vadd.f32 0.0, %v1580
        %v1582 = vpop.f32.mrb[0].mxu0
        %1583 = vmatprep.mubr.bf16.mxu0 %v978
        %1584 = vmatmul.mubr.bf16.gmra.mrb[0].mxu0 %v977
        %v1585 = vpop.f32.mrb[0].mxu0
        %v1586 = vadd.f32 0.0, %v1585
        %v1587 = vpop.f32.mrb[0].mxu0
        %v1588 = vpop.f32.mrb[0].mxu0
        %v1589 = vadd.f32 0.0, %v1588
        %v1590 = vpop.f32.mrb[0].mxu0
        %1591 = vmatprep.mubr.bf16.mxu0 %v980
        %1592 = vmatmul.mubr.bf16.gmra.mrb[0].mxu0 %v979
        %v1593 = vpop.f32.mrb[0].mxu0
        %v1594 = vadd.f32 0.0, %v1593
        %v1595 = vpop.f32.mrb[0].mxu0
        %v1596 = vpop.f32.mrb[0].mxu0
        %v1597 = vadd.f32 0.0, %v1596
        %v1598 = vpop.f32.mrb[0].mxu0
        %1599 = vmatprep.mubr.bf16.mxu0 %v982
        %1600 = vmatmul.mubr.bf16.gmra.mrb[0].mxu0 %v981
        %v1601 = vpop.f32.mrb[0].mxu0
        %v1602 = vadd.f32 0.0, %v1601
        %v1603 = vpop.f32.mrb[0].mxu0
        %v1604 = vpop.f32.mrb[0].mxu0
        %v1605 = vadd.f32 0.0, %v1604
        %v1606 = vpop.f32.mrb[0].mxu0
        %1607 = vmatprep.mubr.bf16.mxu0 %v984
        %1608 = vmatmul.mubr.bf16.gmra.mrb[0].mxu0 %v983
        %v1609 = vpop.f32.mrb[0].mxu0
        %v1610 = vadd.f32 0.0, %v1609
        %v1611 = vpop.f32.mrb[0].mxu0
        %v1612 = vpop.f32.mrb[0].mxu0
        %v1613 = vadd.f32 0.0, %v1612
        %v1614 = vpop.f32.mrb[0].mxu0
        %1615 = vmatprep.mubr.bf16.mxu0 %v986
        %1616 = vmatmul.mubr.bf16.gmra.mrb[0].mxu0 %v985
        %v1617 = vpop.f32.mrb[0].mxu0
        %v1618 = vadd.f32 0.0, %v1617
        %v1619 = vpop.f32.mrb[0].mxu0
        %v1620 = vpop.f32.mrb[0].mxu0
        %v1621 = vadd.f32 0.0, %v1620
        %v1622 = vpop.f32.mrb[0].mxu0
        %1623 = vmatprep.mubr.bf16.mxu0 %v988
        %1624 = vmatmul.mubr.bf16.gmra.mrb[0].mxu0 %v987
        %v1625 = vpop.f32.mrb[0].mxu0
        %v1626 = vadd.f32 0.0, %v1625
        %v1627 = vpop.f32.mrb[0].mxu0
        %v1628 = vpop.f32.mrb[0].mxu0
        %v1629 = vadd.f32 0.0, %v1628
        %v1630 = vpop.f32.mrb[0].mxu0
        %1631 = vmatprep.mubr.bf16.mxu0 %v990
        %1632 = vmatmul.mubr.bf16.gmra.mrb[0].mxu0 %v989
        %v1633 = vpop.f32.mrb[0].mxu0
        %v1634 = vadd.f32 0.0, %v1633
        %v1635 = vpop.f32.mrb[0].mxu0
        %v1636 = vpop.f32.mrb[0].mxu0
        %v1637 = vadd.f32 0.0, %v1636
        %v1638 = vpop.f32.mrb[0].mxu0
        %1639 = vmatprep.mubr.bf16.mxu0 %v992
        %1640 = vmatmul.mubr.bf16.gmra.mrb[0].mxu0 %v991
        %v1641 = vpop.f32.mrb[0].mxu0
        %v1642 = vadd.f32 0.0, %v1641
        %v1643 = vpop.f32.mrb[0].mxu0
        %v1644 = vpop.f32.mrb[0].mxu0
        %v1645 = vadd.f32 0.0, %v1644
        %v1646 = vpop.f32.mrb[0].mxu0
        %1647 = vmatprep.mubr.bf16.mxu0 %v994
        %1648 = vmatmul.mubr.bf16.gmra.mrb[0].mxu0 %v993
        %v1649 = vpop.f32.mrb[0].mxu0
        %v1650 = vadd.f32 0.0, %v1649
        %v1651 = vpop.f32.mrb[0].mxu0
        %v1652 = vpop.f32.mrb[0].mxu0
        %v1653 = vadd.f32 0.0, %v1652
        %v1654 = vpop.f32.mrb[0].mxu0
        %1655 = vmatprep.mubr.bf16.mxu0 %v996
        %1656 = vmatmul.mubr.bf16.gmra.mrb[0].mxu0 %v995
        %v1657 = vpop.f32.mrb[0].mxu0
        %v1658 = vadd.f32 0.0, %v1657
        %v1659 = vpop.f32.mrb[0].mxu0
        %v1660 = vpop.f32.mrb[0].mxu0
        %v1661 = vadd.f32 0.0, %v1660
        %v1662 = vpop.f32.mrb[0].mxu0
        %1663 = vmatprep.mubr.bf16.mxu0 %v998
        %1664 = vmatmul.mubr.bf16.gmra.mrb[0].mxu0 %v997
        %v1665 = vpop.f32.mrb[0].mxu0
        %v1666 = vadd.f32 0.0, %v1665
        %v1667 = vpop.f32.mrb[0].mxu0
        %v1668 = vpop.f32.mrb[0].mxu0
        %v1669 = vadd.f32 0.0, %v1668
        %v1670 = vpop.f32.mrb[0].mxu0
        %1671 = vmatprep.mubr.bf16.mxu0 %v1000
        %1672 = vmatmul.mubr.bf16.gmra.mrb[0].mxu0 %v999
        %v1673 = vpop.f32.mrb[0].mxu0
        %v1674 = vadd.f32 0.0, %v1673
        %v1675 = vpop.f32.mrb[0].mxu0
        %v1676 = vpop.f32.mrb[0].mxu0
        %v1677 = vadd.f32 0.0, %v1676
        %v1678 = vpop.f32.mrb[0].mxu0
        %1679 = vmatprep.mubr.bf16.mxu0 %v1002
        %1680 = vmatmul.mubr.bf16.gmra.mrb[0].mxu0 %v1001
        %v1681 = vpop.f32.mrb[0].mxu0
        %v1682 = vadd.f32 0.0, %v1681
        %v1683 = vpop.f32.mrb[0].mxu0
        %v1684 = vpop.f32.mrb[0].mxu0
        %v1685 = vadd.f32 0.0, %v1684
        %v1686 = vpop.f32.mrb[0].mxu0
        %1687 = vmatprep.mubr.bf16.mxu0 %v1004
        %1688 = vmatmul.mubr.bf16.gmra.mrb[0].mxu0 %v1003
        %v1689 = vpop.f32.mrb[0].mxu0
        %v1690 = vadd.f32 0.0, %v1689
        %v1691 = vpop.f32.mrb[0].mxu0
        %v1692 = vpop.f32.mrb[0].mxu0
        %v1693 = vadd.f32 0.0, %v1692
        %v1694 = vpop.f32.mrb[0].mxu0
        %1695 = vmatprep.mubr.bf16.mxu0 %v1006
        %1696 = vmatmul.mubr.bf16.gmra.mrb[0].mxu0 %v1005
        %v1697 = vpop.f32.mrb[0].mxu0
        %v1698 = vadd.f32 0.0, %v1697
        %v1699 = vpop.f32.mrb[0].mxu0
        %v1700 = vpop.f32.mrb[0].mxu0
        %v1701 = vadd.f32 0.0, %v1700
        %v1702 = vpop.f32.mrb[0].mxu0
        %1703 = vmatprep.mubr.bf16.mxu0 %v1008
        %1704 = vmatmul.mubr.bf16.gmra.mrb[0].mxu0 %v1007
        %v1705 = vpop.f32.mrb[0].mxu0
        %v1706 = vadd.f32 0.0, %v1705
        %v1707 = vpop.f32.mrb[0].mxu0
        %v1708 = vpop.f32.mrb[0].mxu0
        %v1709 = vadd.f32 0.0, %v1708
        %v1710 = vpop.f32.mrb[0].mxu0
        %1711 = vmatprep.mubr.bf16.mxu0 %v1010
        %1712 = vmatmul.mubr.bf16.gmra.mrb[0].mxu0 %v1009
        %v1713 = vpop.f32.mrb[0].mxu0
        %v1714 = vadd.f32 0.0, %v1713
        %v1715 = vpop.f32.mrb[0].mxu0
        %v1716 = vpop.f32.mrb[0].mxu0
        %v1717 = vadd.f32 0.0, %v1716
        %v1718 = vpop.f32.mrb[0].mxu0
        %1719 = vmatprep.mubr.bf16.mxu0 %v1012
        %1720 = vmatmul.mubr.bf16.gmra.mrb[0].mxu0 %v1011
        %v1721 = vpop.f32.mrb[0].mxu0
        %v1722 = vadd.f32 0.0, %v1721
        %v1723 = vpop.f32.mrb[0].mxu0
        %v1724 = vpop.f32.mrb[0].mxu0
        %v1725 = vadd.f32 0.0, %v1724
        %v1726 = vpop.f32.mrb[0].mxu0
        %1727 = vmatprep.mubr.bf16.mxu0 %v1014
        %1728 = vmatmul.mubr.bf16.gmra.mrb[0].mxu0 %v1013
        %v1729 = vpop.f32.mrb[0].mxu0
        %v1730 = vadd.f32 0.0, %v1729
        %v1731 = vpop.f32.mrb[0].mxu0
        %v1732 = vpop.f32.mrb[0].mxu0
        %v1733 = vadd.f32 0.0, %v1732
        %v1734 = vpop.f32.mrb[0].mxu0
        %1735 = vmatprep.mubr.bf16.mxu0 %v1016
        %1736 = vmatmul.mubr.bf16.gmra.mrb[0].mxu0 %v1015
        %v1737 = vpop.f32.mrb[0].mxu0
        %v1738 = vadd.f32 0.0, %v1737
        %v1739 = vpop.f32.mrb[0].mxu0
        %v1740 = vpop.f32.mrb[0].mxu0
        %v1741 = vadd.f32 0.0, %v1740
        %v1742 = vpop.f32.mrb[0].mxu0
        %1743 = vmatprep.mubr.bf16.mxu0 %v1018
        %1744 = vmatmul.mubr.bf16.gmra.mrb[0].mxu0 %v1017
        %v1745 = vpop.f32.mrb[0].mxu0
        %v1746 = vadd.f32 0.0, %v1745
        %v1747 = vpop.f32.mrb[0].mxu0
        %v1748 = vpop.f32.mrb[0].mxu0
        %v1749 = vadd.f32 0.0, %v1748
        %v1750 = vpop.f32.mrb[0].mxu0
        %1751 = vmatprep.mubr.bf16.mxu0 %v1020
        %1752 = vmatmul.mubr.bf16.gmra.mrb[0].mxu0 %v1019
        %v1753 = vpop.f32.mrb[0].mxu0
        %v1754 = vadd.f32 0.0, %v1753
        %v1755 = vpop.f32.mrb[0].mxu0
        %v1756 = vpop.f32.mrb[0].mxu0
        %v1757 = vadd.f32 0.0, %v1756
        %v1758 = vpop.f32.mrb[0].mxu0
        %1759 = vmatprep.mubr.bf16.mxu0 %v1022
        %1760 = vmatmul.mubr.bf16.gmra.mrb[0].mxu0 %v1021
        %v1761 = vpop.f32.mrb[0].mxu0
        %v1762 = vadd.f32 0.0, %v1761
        %v1763 = vpop.f32.mrb[0].mxu0
        %v1764 = vpop.f32.mrb[0].mxu0
        %v1765 = vadd.f32 0.0, %v1764
        %v1766 = vpop.f32.mrb[0].mxu0
        %1767 = vmatprep.mubr.bf16.mxu0 %v1024
        %1768 = vmatmul.mubr.bf16.gmra.mrb[0].mxu0 %v1023
        %v1769 = vpop.f32.mrb[0].mxu0
        %v1770 = vadd.f32 0.0, %v1769
        %v1771 = vpop.f32.mrb[0].mxu0
        %v1772 = vpop.f32.mrb[0].mxu0
        %v1773 = vadd.f32 0.0, %v1772
        %v1774 = vpop.f32.mrb[0].mxu0
        %1775 = vmatprep.mubr.bf16.mxu0 %v1026
        %1776 = vmatmul.mubr.bf16.gmra.mrb[0].mxu0 %v1025
        %v1777 = vpop.f32.mrb[0].mxu0
        %v1778 = vadd.f32 0.0, %v1777
        %v1779 = vpop.f32.mrb[0].mxu0
        %v1780 = vpop.f32.mrb[0].mxu0
        %v1781 = vadd.f32 0.0, %v1780
        %v1782 = vpop.f32.mrb[0].mxu0
        %1783 = vmatprep.mubr.bf16.mxu0 %v1028
        %1784 = vmatmul.mubr.bf16.gmra.mrb[0].mxu0 %v1027
        %v1785 = vpop.f32.mrb[0].mxu0
        %v1786 = vadd.f32 0.0, %v1785
        %v1787 = vpop.f32.mrb[0].mxu0
        %v1788 = vpop.f32.mrb[0].mxu0
        %v1789 = vadd.f32 0.0, %v1788
        %v1790 = vpop.f32.mrb[0].mxu0
        %1791 = vmatprep.mubr.bf16.mxu0 %v1030
        %1792 = vmatmul.mubr.bf16.gmra.mrb[0].mxu0 %v1029
        %v1793 = vpop.f32.mrb[0].mxu0
        %v1794 = vadd.f32 0.0, %v1793
        %v1795 = vpop.f32.mrb[0].mxu0
        %v1796 = vpop.f32.mrb[0].mxu0
        %v1797 = vadd.f32 0.0, %v1796
        %v1798 = vpop.f32.mrb[0].mxu0
        %1799 = vdwg.mxu0
        %v1800 = vpack.c.bf16 %v1293, %v1290
        %v1801 = vpack.c.bf16 %v1301, %v1298
        %v1802 = vpack.c.bf16 %v1309, %v1306
        %v1803 = vpack.c.bf16 %v1317, %v1314
        %v1804 = vpack.c.bf16 %v1325, %v1322
        %v1805 = vpack.c.bf16 %v1333, %v1330
        %v1806 = vpack.c.bf16 %v1341, %v1338
        %v1807 = vpack.c.bf16 %v1349, %v1346
        %v1808 = vpack.c.bf16 %v1357, %v1354
        %v1809 = vpack.c.bf16 %v1365, %v1362
        %v1810 = vpack.c.bf16 %v1373, %v1370
        %v1811 = vpack.c.bf16 %v1381, %v1378
        %v1812 = vpack.c.bf16 %v1389, %v1386
        %v1813 = vpack.c.bf16 %v1397, %v1394
        %v1814 = vpack.c.bf16 %v1405, %v1402
        %v1815 = vpack.c.bf16 %v1413, %v1410
        %v1816 = vpack.c.bf16 %v1421, %v1418
        %v1817 = vpack.c.bf16 %v1429, %v1426
        %v1818 = vpack.c.bf16 %v1437, %v1434
        %v1819 = vpack.c.bf16 %v1445, %v1442
        %v1820 = vpack.c.bf16 %v1453, %v1450
        %v1821 = vpack.c.bf16 %v1461, %v1458
        %v1822 = vpack.c.bf16 %v1469, %v1466
        %v1823 = vpack.c.bf16 %v1477, %v1474
        %v1824 = vpack.c.bf16 %v1485, %v1482
        %v1825 = vpack.c.bf16 %v1493, %v1490
        %v1826 = vpack.c.bf16 %v1501, %v1498
        %v1827 = vpack.c.bf16 %v1509, %v1506
        %v1828 = vpack.c.bf16 %v1517, %v1514
        %v1829 = vpack.c.bf16 %v1525, %v1522
        %v1830 = vpack.c.bf16 %v1533, %v1530
        %v1831 = vpack.c.bf16 %v1541, %v1538
        %v1832 = vpack.c.bf16 %v1549, %v1546
        %v1833 = vpack.c.bf16 %v1557, %v1554
        %v1834 = vpack.c.bf16 %v1565, %v1562
        %v1835 = vpack.c.bf16 %v1573, %v1570
        %v1836 = vpack.c.bf16 %v1581, %v1578
        %v1837 = vpack.c.bf16 %v1589, %v1586
        %v1838 = vpack.c.bf16 %v1597, %v1594
        %v1839 = vpack.c.bf16 %v1605, %v1602
        %v1840 = vpack.c.bf16 %v1613, %v1610
        %v1841 = vpack.c.bf16 %v1621, %v1618
        %v1842 = vpack.c.bf16 %v1629, %v1626
        %v1843 = vpack.c.bf16 %v1637, %v1634
        %v1844 = vpack.c.bf16 %v1645, %v1642
        %v1845 = vpack.c.bf16 %v1653, %v1650
        %v1846 = vpack.c.bf16 %v1661, %v1658
        %v1847 = vpack.c.bf16 %v1669, %v1666
        %v1848 = vpack.c.bf16 %v1677, %v1674
        %v1849 = vpack.c.bf16 %v1685, %v1682
        %v1850 = vpack.c.bf16 %v1693, %v1690
        %v1851 = vpack.c.bf16 %v1701, %v1698
        %v1852 = vpack.c.bf16 %v1709, %v1706
        %v1853 = vpack.c.bf16 %v1717, %v1714
        %v1854 = vpack.c.bf16 %v1725, %v1722
        %v1855 = vpack.c.bf16 %v1733, %v1730
        %v1856 = vpack.c.bf16 %v1741, %v1738
        %v1857 = vpack.c.bf16 %v1749, %v1746
        %v1858 = vpack.c.bf16 %v1757, %v1754
        %v1859 = vpack.c.bf16 %v1765, %v1762
        %v1860 = vpack.c.bf16 %v1773, %v1770
        %v1861 = vpack.c.bf16 %v1781, %v1778
        %v1862 = vpack.c.bf16 %v1789, %v1786
        %v1863 = vpack.c.bf16 %v1797, %v1794
        %v1864 = vld [vmem:[%s2] sm:$0x3]
        %s1865 = scalar_lea.vmem %s2, 2
        %v1866 = vld [vmem:[%s1865] sm:$0x3]
        %vm1867 = vcmask 23552
        %v1869 = vsel %vm1867, %v1804, 0
        %v1872 = vsel %vm1867, %v1805, 0
        %v1875 = vsel %vm1867, %v1806, 0
        %v1878 = vsel %vm1867, %v1807, 0
        %vm1880 = vcmask 1040384
        %vm1881 = vcmask 1041408
        %v1882 = vsel %vm1880, 4294967295, 65535
        %v1883 = vsel %vm1881, %v1882, 0
        %v1885 = vand.u32 %v1866, %v1883
        %1887 = vmatprep.subr.bf16.mxu0 0
        %1888 = vmatpush1.bf16.msra.mxu0 %v1885
        %1889 = vmatprep.subr.bf16.mxu0 0
        %1890 = vmatpush1.bf16.msra.mxu0 0
        %1891 = vmatprep.subr.bf16.mxu0 0
        %1892 = vmatpush1.bf16.msra.mxu0 0
        %1893 = vmatprep.subr.bf16.mxu0 0
        %1894 = vmatpush1.bf16.msra.mxu0 0
        %1895 = vmatprep.subr.bf16.mxu0 0
        %1896 = vmatpush1.bf16.msra.mxu0 0
        %1897 = vmatprep.subr.bf16.mxu0 0
        %1898 = vmatpush1.bf16.msra.mxu0 0
        %1899 = vmatprep.subr.bf16.mxu0 0
        %1900 = vmatpush1.bf16.msra.mxu0 0
        %1901 = vmatprep.subr.bf16.mxu0 0
        %1902 = vmatpush1.bf16.msra.mxu0 0
        %1903 = vmatprep.subr.bf16.mxu0 0
        %1904 = vmatpush1.bf16.msra.mxu0 0
        %1905 = vmatprep.subr.bf16.mxu0 0
        %1906 = vmatpush1.bf16.msra.mxu0 0
        %1907 = vmatprep.subr.bf16.mxu0 0
        %1908 = vmatpush1.bf16.msra.mxu0 0
        %1909 = vmatprep.subr.bf16.mxu0 0
        %1910 = vmatpush1.bf16.msra.mxu0 0
        %1911 = vmatprep.subr.bf16.mxu0 0
        %1912 = vmatpush1.bf16.msra.mxu0 0
        %1913 = vmatprep.subr.bf16.mxu0 0
        %1914 = vmatpush1.bf16.msra.mxu0 0
        %1915 = vmatprep.subr.bf16.mxu0 0
        %1916 = vmatpush1.bf16.msra.mxu0 0
        %1917 = vmatprep.subr.bf16.mxu0 0
        %1918 = vmatpush1.bf16.msra.mxu0 0
        %1919 = vmatprep.mubr.bf16.mxu0 0
        %1920 = vmatmul.mubr.bf16.gmra.mrb[0].mxu0 %v1869
        %v1921 = vpop.f32.mrb[0].mxu0
        %v1922 = vadd.f32 0.0, %v1921
        %v1923 = vpop.f32.mrb[0].mxu0
        %v1924 = vpop.f32.mrb[0].mxu0
        %v1925 = vadd.f32 0.0, %v1924
        %v1926 = vpop.f32.mrb[0].mxu0
        %1927 = vmatprep.mubr.bf16.mxu0 0
        %1928 = vmatmul.mubr.bf16.gmra.mrb[0].mxu0 %v1872
        %v1929 = vpop.f32.mrb[0].mxu0
        %v1930 = vadd.f32 0.0, %v1929
        %v1931 = vpop.f32.mrb[0].mxu0
        %v1932 = vpop.f32.mrb[0].mxu0
        %v1933 = vadd.f32 0.0, %v1932
        %v1934 = vpop.f32.mrb[0].mxu0
        %1935 = vmatprep.mubr.bf16.mxu0 0
        %1936 = vmatmul.mubr.bf16.gmra.mrb[0].mxu0 %v1875
        %v1937 = vpop.f32.mrb[0].mxu0
        %v1938 = vadd.f32 0.0, %v1937
        %v1939 = vpop.f32.mrb[0].mxu0
        %v1940 = vpop.f32.mrb[0].mxu0
        %v1941 = vadd.f32 0.0, %v1940
        %v1942 = vpop.f32.mrb[0].mxu0
        %1943 = vmatprep.mubr.bf16.mxu0 0
        %1944 = vmatmul.mubr.bf16.gmra.mrb[0].mxu0 %v1878
        %v1945 = vpop.f32.mrb[0].mxu0
        %v1946 = vadd.f32 0.0, %v1945
        %v1947 = vpop.f32.mrb[0].mxu0
        %v1948 = vpop.f32.mrb[0].mxu0
        %v1949 = vadd.f32 0.0, %v1948
        %v1950 = vpop.f32.mrb[0].mxu0
        %1951 = vdwg.mxu0
        %v1953 = vsel %vm1867, %v1800, 0
        %v1956 = vsel %vm1867, %v1801, 0
        %v1959 = vsel %vm1867, %v1802, 0
        %v1962 = vsel %vm1867, %v1803, 0
        %v1965 = vand.u32 %v1864, %v1883
        %1967 = vmatprep.subr.bf16.mxu0 0
        %1968 = vmatpush1.bf16.msra.mxu0 %v1965
        %1969 = vmatprep.subr.bf16.mxu0 0
        %1970 = vmatpush1.bf16.msra.mxu0 0
        %1971 = vmatprep.subr.bf16.mxu0 0
        %1972 = vmatpush1.bf16.msra.mxu0 0
        %1973 = vmatprep.subr.bf16.mxu0 0
        %1974 = vmatpush1.bf16.msra.mxu0 0
        %1975 = vmatprep.subr.bf16.mxu0 0
        %1976 = vmatpush1.bf16.msra.mxu0 0
        %1977 = vmatprep.subr.bf16.mxu0 0
        %1978 = vmatpush1.bf16.msra.mxu0 0
        %1979 = vmatprep.subr.bf16.mxu0 0
        %1980 = vmatpush1.bf16.msra.mxu0 0
        %1981 = vmatprep.subr.bf16.mxu0 0
        %1982 = vmatpush1.bf16.msra.mxu0 0
        %1983 = vmatprep.subr.bf16.mxu0 0
        %1984 = vmatpush1.bf16.msra.mxu0 0
        %1985 = vmatprep.subr.bf16.mxu0 0
        %1986 = vmatpush1.bf16.msra.mxu0 0
        %1987 = vmatprep.subr.bf16.mxu0 0
        %1988 = vmatpush1.bf16.msra.mxu0 0
        %1989 = vmatprep.subr.bf16.mxu0 0
        %1990 = vmatpush1.bf16.msra.mxu0 0
        %1991 = vmatprep.subr.bf16.mxu0 0
        %1992 = vmatpush1.bf16.msra.mxu0 0
        %1993 = vmatprep.subr.bf16.mxu0 0
        %1994 = vmatpush1.bf16.msra.mxu0 0
        %1995 = vmatprep.subr.bf16.mxu0 0
        %1996 = vmatpush1.bf16.msra.mxu0 0
        %1997 = vmatprep.subr.bf16.mxu0 0
        %1998 = vmatpush1.bf16.msra.mxu0 0
        %1999 = vmatprep.mubr.bf16.mxu0 0
        %2000 = vmatmul.mubr.bf16.gmra.mrb[0].mxu0 %v1953
        %v2001 = vpop.f32.mrb[0].mxu0
        %v2002 = vadd.f32 %v1922, %v2001
        %v2003 = vpop.f32.mrb[0].mxu0
        %v2004 = vpop.f32.mrb[0].mxu0
        %v2005 = vadd.f32 %v1925, %v2004
        %v2006 = vpop.f32.mrb[0].mxu0
        %2007 = vmatprep.mubr.bf16.mxu0 0
        %2008 = vmatmul.mubr.bf16.gmra.mrb[0].mxu0 %v1956
        %v2009 = vpop.f32.mrb[0].mxu0
        %v2010 = vadd.f32 %v1930, %v2009
        %v2011 = vpop.f32.mrb[0].mxu0
        %v2012 = vpop.f32.mrb[0].mxu0
        %v2013 = vadd.f32 %v1933, %v2012
        %v2014 = vpop.f32.mrb[0].mxu0
        %2015 = vmatprep.mubr.bf16.mxu0 0
        %2016 = vmatmul.mubr.bf16.gmra.mrb[0].mxu0 %v1959
        %v2017 = vpop.f32.mrb[0].mxu0
        %v2018 = vadd.f32 %v1938, %v2017
        %v2019 = vpop.f32.mrb[0].mxu0
        %v2020 = vpop.f32.mrb[0].mxu0
        %v2021 = vadd.f32 %v1941, %v2020
        %v2022 = vpop.f32.mrb[0].mxu0
        %2023 = vmatprep.mubr.bf16.mxu0 0
        %2024 = vmatmul.mubr.bf16.gmra.mrb[0].mxu0 %v1962
        %v2025 = vpop.f32.mrb[0].mxu0
        %v2026 = vadd.f32 %v1946, %v2025
        %v2027 = vpop.f32.mrb[0].mxu0
        %v2028 = vpop.f32.mrb[0].mxu0
        %v2029 = vadd.f32 %v1949, %v2028
        %v2030 = vpop.f32.mrb[0].mxu0
        %2031 = vdwg.mxu0
        %s2032 = scalar_lea.vmem %s2, 4
        %v2033 = vld [vmem:[%s2032] sm:$0x3]
        %v2035 = vsel %vm1867, %v1808, 0
        %v2038 = vsel %vm1867, %v1809, 0
        %v2041 = vsel %vm1867, %v1810, 0
        %v2044 = vsel %vm1867, %v1811, 0
        %v2047 = vand.u32 %v2033, %v1883
        %2049 = vmatprep.subr.bf16.mxu0 0
        %2050 = vmatpush1.bf16.msra.mxu0 %v2047
        %2051 = vmatprep.subr.bf16.mxu0 0
        %2052 = vmatpush1.bf16.msra.mxu0 0
        %2053 = vmatprep.subr.bf16.mxu0 0
        %2054 = vmatpush1.bf16.msra.mxu0 0
        %2055 = vmatprep.subr.bf16.mxu0 0
        %2056 = vmatpush1.bf16.msra.mxu0 0
        %2057 = vmatprep.subr.bf16.mxu0 0
        %2058 = vmatpush1.bf16.msra.mxu0 0
        %2059 = vmatprep.subr.bf16.mxu0 0
        %2060 = vmatpush1.bf16.msra.mxu0 0
        %2061 = vmatprep.subr.bf16.mxu0 0
        %2062 = vmatpush1.bf16.msra.mxu0 0
        %2063 = vmatprep.subr.bf16.mxu0 0
        %2064 = vmatpush1.bf16.msra.mxu0 0
        %2065 = vmatprep.subr.bf16.mxu0 0
        %2066 = vmatpush1.bf16.msra.mxu0 0
        %2067 = vmatprep.subr.bf16.mxu0 0
        %2068 = vmatpush1.bf16.msra.mxu0 0
        %2069 = vmatprep.subr.bf16.mxu0 0
        %2070 = vmatpush1.bf16.msra.mxu0 0
        %2071 = vmatprep.subr.bf16.mxu0 0
        %2072 = vmatpush1.bf16.msra.mxu0 0
        %2073 = vmatprep.subr.bf16.mxu0 0
        %2074 = vmatpush1.bf16.msra.mxu0 0
        %2075 = vmatprep.subr.bf16.mxu0 0
        %2076 = vmatpush1.bf16.msra.mxu0 0
        %2077 = vmatprep.subr.bf16.mxu0 0
        %2078 = vmatpush1.bf16.msra.mxu0 0
        %2079 = vmatprep.subr.bf16.mxu0 0
        %2080 = vmatpush1.bf16.msra.mxu0 0
        %2081 = vmatprep.mubr.bf16.mxu0 0
        %2082 = vmatmul.mubr.bf16.gmra.mrb[0].mxu0 %v2035
        %v2083 = vpop.f32.mrb[0].mxu0
        %v2084 = vadd.f32 0.0, %v2083
        %v2085 = vpop.f32.mrb[0].mxu0
        %v2086 = vpop.f32.mrb[0].mxu0
        %v2087 = vadd.f32 0.0, %v2086
        %v2088 = vpop.f32.mrb[0].mxu0
        %2089 = vmatprep.mubr.bf16.mxu0 0
        %2090 = vmatmul.mubr.bf16.gmra.mrb[0].mxu0 %v2038
        %v2091 = vpop.f32.mrb[0].mxu0
        %v2092 = vadd.f32 0.0, %v2091
        %v2093 = vpop.f32.mrb[0].mxu0
        %v2094 = vpop.f32.mrb[0].mxu0
        %v2095 = vadd.f32 0.0, %v2094
        %v2096 = vpop.f32.mrb[0].mxu0
        %2097 = vmatprep.mubr.bf16.mxu0 0
        %2098 = vmatmul.mubr.bf16.gmra.mrb[0].mxu0 %v2041
        %v2099 = vpop.f32.mrb[0].mxu0
        %v2100 = vadd.f32 0.0, %v2099
        %v2101 = vpop.f32.mrb[0].mxu0
        %v2102 = vpop.f32.mrb[0].mxu0
        %v2103 = vadd.f32 0.0, %v2102
        %v2104 = vpop.f32.mrb[0].mxu0
        %2105 = vmatprep.mubr.bf16.mxu0 0
        %2106 = vmatmul.mubr.bf16.gmra.mrb[0].mxu0 %v2044
        %v2107 = vpop.f32.mrb[0].mxu0
        %v2108 = vadd.f32 0.0, %v2107
        %v2109 = vpop.f32.mrb[0].mxu0
        %v2110 = vpop.f32.mrb[0].mxu0
        %v2111 = vadd.f32 0.0, %v2110
        %v2112 = vpop.f32.mrb[0].mxu0
        %2113 = vdwg.mxu0
        %v2114 = vadd.f32 %v2002, %v2084
        %v2115 = vadd.f32 %v2005, %v2087
        %v2116 = vadd.f32 %v2010, %v2092
        %v2117 = vadd.f32 %v2013, %v2095
        %v2118 = vadd.f32 %v2018, %v2100
        %v2119 = vadd.f32 %v2021, %v2103
        %v2120 = vadd.f32 %v2026, %v2108
        %v2121 = vadd.f32 %v2029, %v2111
        %s2122 = scalar_lea.vmem %s2, 6
        %v2123 = vld [vmem:[%s2122] sm:$0x3]
        %v2125 = vsel %vm1867, %v1812, 0
        %v2128 = vsel %vm1867, %v1813, 0
        %v2131 = vsel %vm1867, %v1814, 0
        %v2134 = vsel %vm1867, %v1815, 0
        %v2137 = vand.u32 %v2123, %v1883
        %2139 = vmatprep.subr.bf16.mxu0 0
        %2140 = vmatpush1.bf16.msra.mxu0 %v2137
        %2141 = vmatprep.subr.bf16.mxu0 0
        %2142 = vmatpush1.bf16.msra.mxu0 0
        %2143 = vmatprep.subr.bf16.mxu0 0
        %2144 = vmatpush1.bf16.msra.mxu0 0
        %2145 = vmatprep.subr.bf16.mxu0 0
        %2146 = vmatpush1.bf16.msra.mxu0 0
        %2147 = vmatprep.subr.bf16.mxu0 0
        %2148 = vmatpush1.bf16.msra.mxu0 0
        %2149 = vmatprep.subr.bf16.mxu0 0
        %2150 = vmatpush1.bf16.msra.mxu0 0
        %2151 = vmatprep.subr.bf16.mxu0 0
        %2152 = vmatpush1.bf16.msra.mxu0 0
        %2153 = vmatprep.subr.bf16.mxu0 0
        %2154 = vmatpush1.bf16.msra.mxu0 0
        %2155 = vmatprep.subr.bf16.mxu0 0
        %2156 = vmatpush1.bf16.msra.mxu0 0
        %2157 = vmatprep.subr.bf16.mxu0 0
        %2158 = vmatpush1.bf16.msra.mxu0 0
        %2159 = vmatprep.subr.bf16.mxu0 0
        %2160 = vmatpush1.bf16.msra.mxu0 0
        %2161 = vmatprep.subr.bf16.mxu0 0
        %2162 = vmatpush1.bf16.msra.mxu0 0
        %2163 = vmatprep.subr.bf16.mxu0 0
        %2164 = vmatpush1.bf16.msra.mxu0 0
        %2165 = vmatprep.subr.bf16.mxu0 0
        %2166 = vmatpush1.bf16.msra.mxu0 0
        %2167 = vmatprep.subr.bf16.mxu0 0
        %2168 = vmatpush1.bf16.msra.mxu0 0
        %2169 = vmatprep.subr.bf16.mxu0 0
        %2170 = vmatpush1.bf16.msra.mxu0 0
        %2171 = vmatprep.mubr.bf16.mxu0 0
        %2172 = vmatmul.mubr.bf16.gmra.mrb[0].mxu0 %v2125
        %v2173 = vpop.f32.mrb[0].mxu0
        %v2174 = vadd.f32 0.0, %v2173
        %v2175 = vpop.f32.mrb[0].mxu0
        %v2176 = vpop.f32.mrb[0].mxu0
        %v2177 = vadd.f32 0.0, %v2176
        %v2178 = vpop.f32.mrb[0].mxu0
        %2179 = vmatprep.mubr.bf16.mxu0 0
        %2180 = vmatmul.mubr.bf16.gmra.mrb[0].mxu0 %v2128
        %v2181 = vpop.f32.mrb[0].mxu0
        %v2182 = vadd.f32 0.0, %v2181
        %v2183 = vpop.f32.mrb[0].mxu0
        %v2184 = vpop.f32.mrb[0].mxu0
        %v2185 = vadd.f32 0.0, %v2184
        %v2186 = vpop.f32.mrb[0].mxu0
        %2187 = vmatprep.mubr.bf16.mxu0 0
        %2188 = vmatmul.mubr.bf16.gmra.mrb[0].mxu0 %v2131
        %v2189 = vpop.f32.mrb[0].mxu0
        %v2190 = vadd.f32 0.0, %v2189
        %v2191 = vpop.f32.mrb[0].mxu0
        %v2192 = vpop.f32.mrb[0].mxu0
        %v2193 = vadd.f32 0.0, %v2192
        %v2194 = vpop.f32.mrb[0].mxu0
        %2195 = vmatprep.mubr.bf16.mxu0 0
        %2196 = vmatmul.mubr.bf16.gmra.mrb[0].mxu0 %v2134
        %v2197 = vpop.f32.mrb[0].mxu0
        %v2198 = vadd.f32 0.0, %v2197
        %v2199 = vpop.f32.mrb[0].mxu0
        %v2200 = vpop.f32.mrb[0].mxu0
        %v2201 = vadd.f32 0.0, %v2200
        %v2202 = vpop.f32.mrb[0].mxu0
        %2203 = vdwg.mxu0
        %v2204 = vadd.f32 %v2114, %v2174
        %v2205 = vadd.f32 %v2115, %v2177
        %v2206 = vadd.f32 %v2116, %v2182
        %v2207 = vadd.f32 %v2117, %v2185
        %v2208 = vadd.f32 %v2118, %v2190
        %v2209 = vadd.f32 %v2119, %v2193
        %v2210 = vadd.f32 %v2120, %v2198
        %v2211 = vadd.f32 %v2121, %v2201
        %s2212 = scalar_lea.vmem %s2, 8
        %v2213 = vld [vmem:[%s2212] sm:$0x3]
        %v2215 = vsel %vm1867, %v1816, 0
        %v2218 = vsel %vm1867, %v1817, 0
        %v2221 = vsel %vm1867, %v1818, 0
        %v2224 = vsel %vm1867, %v1819, 0
        %v2227 = vand.u32 %v2213, %v1883
        %2229 = vmatprep.subr.bf16.mxu0 0
        %2230 = vmatpush1.bf16.msra.mxu0 %v2227
        %2231 = vmatprep.subr.bf16.mxu0 0
        %2232 = vmatpush1.bf16.msra.mxu0 0
        %2233 = vmatprep.subr.bf16.mxu0 0
        %2234 = vmatpush1.bf16.msra.mxu0 0
        %2235 = vmatprep.subr.bf16.mxu0 0
        %2236 = vmatpush1.bf16.msra.mxu0 0
        %2237 = vmatprep.subr.bf16.mxu0 0
        %2238 = vmatpush1.bf16.msra.mxu0 0
        %2239 = vmatprep.subr.bf16.mxu0 0
        %2240 = vmatpush1.bf16.msra.mxu0 0
        %2241 = vmatprep.subr.bf16.mxu0 0
        %2242 = vmatpush1.bf16.msra.mxu0 0
        %2243 = vmatprep.subr.bf16.mxu0 0
        %2244 = vmatpush1.bf16.msra.mxu0 0
        %2245 = vmatprep.subr.bf16.mxu0 0
        %2246 = vmatpush1.bf16.msra.mxu0 0
        %2247 = vmatprep.subr.bf16.mxu0 0
        %2248 = vmatpush1.bf16.msra.mxu0 0
        %2249 = vmatprep.subr.bf16.mxu0 0
        %2250 = vmatpush1.bf16.msra.mxu0 0
        %2251 = vmatprep.subr.bf16.mxu0 0
        %2252 = vmatpush1.bf16.msra.mxu0 0
        %2253 = vmatprep.subr.bf16.mxu0 0
        %2254 = vmatpush1.bf16.msra.mxu0 0
        %2255 = vmatprep.subr.bf16.mxu0 0
        %2256 = vmatpush1.bf16.msra.mxu0 0
        %2257 = vmatprep.subr.bf16.mxu0 0
        %2258 = vmatpush1.bf16.msra.mxu0 0
        %2259 = vmatprep.subr.bf16.mxu0 0
        %2260 = vmatpush1.bf16.msra.mxu0 0
        %2261 = vmatprep.mubr.bf16.mxu0 0
        %2262 = vmatmul.mubr.bf16.gmra.mrb[0].mxu0 %v2215
        %v2263 = vpop.f32.mrb[0].mxu0
        %v2264 = vadd.f32 0.0, %v2263
        %v2265 = vpop.f32.mrb[0].mxu0
        %v2266 = vpop.f32.mrb[0].mxu0
        %v2267 = vadd.f32 0.0, %v2266
        %v2268 = vpop.f32.mrb[0].mxu0
        %2269 = vmatprep.mubr.bf16.mxu0 0
        %2270 = vmatmul.mubr.bf16.gmra.mrb[0].mxu0 %v2218
        %v2271 = vpop.f32.mrb[0].mxu0
        %v2272 = vadd.f32 0.0, %v2271
        %v2273 = vpop.f32.mrb[0].mxu0
        %v2274 = vpop.f32.mrb[0].mxu0
        %v2275 = vadd.f32 0.0, %v2274
        %v2276 = vpop.f32.mrb[0].mxu0
        %2277 = vmatprep.mubr.bf16.mxu0 0
        %2278 = vmatmul.mubr.bf16.gmra.mrb[0].mxu0 %v2221
        %v2279 = vpop.f32.mrb[0].mxu0
        %v2280 = vadd.f32 0.0, %v2279
        %v2281 = vpop.f32.mrb[0].mxu0
        %v2282 = vpop.f32.mrb[0].mxu0
        %v2283 = vadd.f32 0.0, %v2282
        %v2284 = vpop.f32.mrb[0].mxu0
        %2285 = vmatprep.mubr.bf16.mxu0 0
        %2286 = vmatmul.mubr.bf16.gmra.mrb[0].mxu0 %v2224
        %v2287 = vpop.f32.mrb[0].mxu0
        %v2288 = vadd.f32 0.0, %v2287
        %v2289 = vpop.f32.mrb[0].mxu0
        %v2290 = vpop.f32.mrb[0].mxu0
        %v2291 = vadd.f32 0.0, %v2290
        %v2292 = vpop.f32.mrb[0].mxu0
        %2293 = vdwg.mxu0
        %v2294 = vadd.f32 %v2204, %v2264
        %v2295 = vadd.f32 %v2205, %v2267
        %v2296 = vadd.f32 %v2206, %v2272
        %v2297 = vadd.f32 %v2207, %v2275
        %v2298 = vadd.f32 %v2208, %v2280
        %v2299 = vadd.f32 %v2209, %v2283
        %v2300 = vadd.f32 %v2210, %v2288
        %v2301 = vadd.f32 %v2211, %v2291
        %s2302 = scalar_lea.vmem %s2, 10
        %v2303 = vld [vmem:[%s2302] sm:$0x3]
        %v2305 = vsel %vm1867, %v1820, 0
        %v2308 = vsel %vm1867, %v1821, 0
        %v2311 = vsel %vm1867, %v1822, 0
        %v2314 = vsel %vm1867, %v1823, 0
        %v2317 = vand.u32 %v2303, %v1883
        %2319 = vmatprep.subr.bf16.mxu0 0
        %2320 = vmatpush1.bf16.msra.mxu0 %v2317
        %2321 = vmatprep.subr.bf16.mxu0 0
        %2322 = vmatpush1.bf16.msra.mxu0 0
        %2323 = vmatprep.subr.bf16.mxu0 0
        %2324 = vmatpush1.bf16.msra.mxu0 0
        %2325 = vmatprep.subr.bf16.mxu0 0
        %2326 = vmatpush1.bf16.msra.mxu0 0
        %2327 = vmatprep.subr.bf16.mxu0 0
        %2328 = vmatpush1.bf16.msra.mxu0 0
        %2329 = vmatprep.subr.bf16.mxu0 0
        %2330 = vmatpush1.bf16.msra.mxu0 0
        %2331 = vmatprep.subr.bf16.mxu0 0
        %2332 = vmatpush1.bf16.msra.mxu0 0
        %2333 = vmatprep.subr.bf16.mxu0 0
        %2334 = vmatpush1.bf16.msra.mxu0 0
        %2335 = vmatprep.subr.bf16.mxu0 0
        %2336 = vmatpush1.bf16.msra.mxu0 0
        %2337 = vmatprep.subr.bf16.mxu0 0
        %2338 = vmatpush1.bf16.msra.mxu0 0
        %2339 = vmatprep.subr.bf16.mxu0 0
        %2340 = vmatpush1.bf16.msra.mxu0 0
        %2341 = vmatprep.subr.bf16.mxu0 0
        %2342 = vmatpush1.bf16.msra.mxu0 0
        %2343 = vmatprep.subr.bf16.mxu0 0
        %2344 = vmatpush1.bf16.msra.mxu0 0
        %2345 = vmatprep.subr.bf16.mxu0 0
        %2346 = vmatpush1.bf16.msra.mxu0 0
        %2347 = vmatprep.subr.bf16.mxu0 0
        %2348 = vmatpush1.bf16.msra.mxu0 0
        %2349 = vmatprep.subr.bf16.mxu0 0
        %2350 = vmatpush1.bf16.msra.mxu0 0
        %2351 = vmatprep.mubr.bf16.mxu0 0
        %2352 = vmatmul.mubr.bf16.gmra.mrb[0].mxu0 %v2305
        %v2353 = vpop.f32.mrb[0].mxu0
        %v2354 = vadd.f32 0.0, %v2353
        %v2355 = vpop.f32.mrb[0].mxu0
        %v2356 = vpop.f32.mrb[0].mxu0
        %v2357 = vadd.f32 0.0, %v2356
        %v2358 = vpop.f32.mrb[0].mxu0
        %2359 = vmatprep.mubr.bf16.mxu0 0
        %2360 = vmatmul.mubr.bf16.gmra.mrb[0].mxu0 %v2308
        %v2361 = vpop.f32.mrb[0].mxu0
        %v2362 = vadd.f32 0.0, %v2361
        %v2363 = vpop.f32.mrb[0].mxu0
        %v2364 = vpop.f32.mrb[0].mxu0
        %v2365 = vadd.f32 0.0, %v2364
        %v2366 = vpop.f32.mrb[0].mxu0
        %2367 = vmatprep.mubr.bf16.mxu0 0
        %2368 = vmatmul.mubr.bf16.gmra.mrb[0].mxu0 %v2311
        %v2369 = vpop.f32.mrb[0].mxu0
        %v2370 = vadd.f32 0.0, %v2369
        %v2371 = vpop.f32.mrb[0].mxu0
        %v2372 = vpop.f32.mrb[0].mxu0
        %v2373 = vadd.f32 0.0, %v2372
        %v2374 = vpop.f32.mrb[0].mxu0
        %2375 = vmatprep.mubr.bf16.mxu0 0
        %2376 = vmatmul.mubr.bf16.gmra.mrb[0].mxu0 %v2314
        %v2377 = vpop.f32.mrb[0].mxu0
        %v2378 = vadd.f32 0.0, %v2377
        %v2379 = vpop.f32.mrb[0].mxu0
        %v2380 = vpop.f32.mrb[0].mxu0
        %v2381 = vadd.f32 0.0, %v2380
        %v2382 = vpop.f32.mrb[0].mxu0
        %2383 = vdwg.mxu0
        %v2384 = vadd.f32 %v2294, %v2354
        %v2385 = vadd.f32 %v2295, %v2357
        %v2386 = vadd.f32 %v2296, %v2362
        %v2387 = vadd.f32 %v2297, %v2365
        %v2388 = vadd.f32 %v2298, %v2370
        %v2389 = vadd.f32 %v2299, %v2373
        %v2390 = vadd.f32 %v2300, %v2378
        %v2391 = vadd.f32 %v2301, %v2381
        %s2392 = scalar_lea.vmem %s2, 12
        %v2393 = vld [vmem:[%s2392] sm:$0x3]
        %v2395 = vsel %vm1867, %v1824, 0
        %v2398 = vsel %vm1867, %v1825, 0
        %v2401 = vsel %vm1867, %v1826, 0
        %v2404 = vsel %vm1867, %v1827, 0
        %v2407 = vand.u32 %v2393, %v1883
        %2409 = vmatprep.subr.bf16.mxu0 0
        %2410 = vmatpush1.bf16.msra.mxu0 %v2407
        %2411 = vmatprep.subr.bf16.mxu0 0
        %2412 = vmatpush1.bf16.msra.mxu0 0
        %2413 = vmatprep.subr.bf16.mxu0 0
        %2414 = vmatpush1.bf16.msra.mxu0 0
        %2415 = vmatprep.subr.bf16.mxu0 0
        %2416 = vmatpush1.bf16.msra.mxu0 0
        %2417 = vmatprep.subr.bf16.mxu0 0
        %2418 = vmatpush1.bf16.msra.mxu0 0
        %2419 = vmatprep.subr.bf16.mxu0 0
        %2420 = vmatpush1.bf16.msra.mxu0 0
        %2421 = vmatprep.subr.bf16.mxu0 0
        %2422 = vmatpush1.bf16.msra.mxu0 0
        %2423 = vmatprep.subr.bf16.mxu0 0
        %2424 = vmatpush1.bf16.msra.mxu0 0
        %2425 = vmatprep.subr.bf16.mxu0 0
        %2426 = vmatpush1.bf16.msra.mxu0 0
        %2427 = vmatprep.subr.bf16.mxu0 0
        %2428 = vmatpush1.bf16.msra.mxu0 0
        %2429 = vmatprep.subr.bf16.mxu0 0
        %2430 = vmatpush1.bf16.msra.mxu0 0
        %2431 = vmatprep.subr.bf16.mxu0 0
        %2432 = vmatpush1.bf16.msra.mxu0 0
        %2433 = vmatprep.subr.bf16.mxu0 0
        %2434 = vmatpush1.bf16.msra.mxu0 0
        %2435 = vmatprep.subr.bf16.mxu0 0
        %2436 = vmatpush1.bf16.msra.mxu0 0
        %2437 = vmatprep.subr.bf16.mxu0 0
        %2438 = vmatpush1.bf16.msra.mxu0 0
        %2439 = vmatprep.subr.bf16.mxu0 0
        %2440 = vmatpush1.bf16.msra.mxu0 0
        %2441 = vmatprep.mubr.bf16.mxu0 0
        %2442 = vmatmul.mubr.bf16.gmra.mrb[0].mxu0 %v2395
        %v2443 = vpop.f32.mrb[0].mxu0
        %v2444 = vadd.f32 0.0, %v2443
        %v2445 = vpop.f32.mrb[0].mxu0
        %v2446 = vpop.f32.mrb[0].mxu0
        %v2447 = vadd.f32 0.0, %v2446
        %v2448 = vpop.f32.mrb[0].mxu0
        %2449 = vmatprep.mubr.bf16.mxu0 0
        %2450 = vmatmul.mubr.bf16.gmra.mrb[0].mxu0 %v2398
        %v2451 = vpop.f32.mrb[0].mxu0
        %v2452 = vadd.f32 0.0, %v2451
        %v2453 = vpop.f32.mrb[0].mxu0
        %v2454 = vpop.f32.mrb[0].mxu0
        %v2455 = vadd.f32 0.0, %v2454
        %v2456 = vpop.f32.mrb[0].mxu0
        %2457 = vmatprep.mubr.bf16.mxu0 0
        %2458 = vmatmul.mubr.bf16.gmra.mrb[0].mxu0 %v2401
        %v2459 = vpop.f32.mrb[0].mxu0
        %v2460 = vadd.f32 0.0, %v2459
        %v2461 = vpop.f32.mrb[0].mxu0
        %v2462 = vpop.f32.mrb[0].mxu0
        %v2463 = vadd.f32 0.0, %v2462
        %v2464 = vpop.f32.mrb[0].mxu0
        %2465 = vmatprep.mubr.bf16.mxu0 0
        %2466 = vmatmul.mubr.bf16.gmra.mrb[0].mxu0 %v2404
        %v2467 = vpop.f32.mrb[0].mxu0
        %v2468 = vadd.f32 0.0, %v2467
        %v2469 = vpop.f32.mrb[0].mxu0
        %v2470 = vpop.f32.mrb[0].mxu0
        %v2471 = vadd.f32 0.0, %v2470
        %v2472 = vpop.f32.mrb[0].mxu0
        %2473 = vdwg.mxu0
        %v2474 = vadd.f32 %v2384, %v2444
        %v2475 = vadd.f32 %v2385, %v2447
        %v2476 = vadd.f32 %v2386, %v2452
        %v2477 = vadd.f32 %v2387, %v2455
        %v2478 = vadd.f32 %v2388, %v2460
        %v2479 = vadd.f32 %v2389, %v2463
        %v2480 = vadd.f32 %v2390, %v2468
        %v2481 = vadd.f32 %v2391, %v2471
        %s2482 = scalar_lea.vmem %s2, 14
        %v2483 = vld [vmem:[%s2482] sm:$0x3]
        %v2485 = vsel %vm1867, %v1828, 0
        %v2488 = vsel %vm1867, %v1829, 0
        %v2491 = vsel %vm1867, %v1830, 0
        %v2494 = vsel %vm1867, %v1831, 0
        %v2497 = vand.u32 %v2483, %v1883
        %2499 = vmatprep.subr.bf16.mxu0 0
        %2500 = vmatpush1.bf16.msra.mxu0 %v2497
        %2501 = vmatprep.subr.bf16.mxu0 0
        %2502 = vmatpush1.bf16.msra.mxu0 0
        %2503 = vmatprep.subr.bf16.mxu0 0
        %2504 = vmatpush1.bf16.msra.mxu0 0
        %2505 = vmatprep.subr.bf16.mxu0 0
        %2506 = vmatpush1.bf16.msra.mxu0 0
        %2507 = vmatprep.subr.bf16.mxu0 0
        %2508 = vmatpush1.bf16.msra.mxu0 0
        %2509 = vmatprep.subr.bf16.mxu0 0
        %2510 = vmatpush1.bf16.msra.mxu0 0
        %2511 = vmatprep.subr.bf16.mxu0 0
        %2512 = vmatpush1.bf16.msra.mxu0 0
        %2513 = vmatprep.subr.bf16.mxu0 0
        %2514 = vmatpush1.bf16.msra.mxu0 0
        %2515 = vmatprep.subr.bf16.mxu0 0
        %2516 = vmatpush1.bf16.msra.mxu0 0
        %2517 = vmatprep.subr.bf16.mxu0 0
        %2518 = vmatpush1.bf16.msra.mxu0 0
        %2519 = vmatprep.subr.bf16.mxu0 0
        %2520 = vmatpush1.bf16.msra.mxu0 0
        %2521 = vmatprep.subr.bf16.mxu0 0
        %2522 = vmatpush1.bf16.msra.mxu0 0
        %2523 = vmatprep.subr.bf16.mxu0 0
        %2524 = vmatpush1.bf16.msra.mxu0 0
        %2525 = vmatprep.subr.bf16.mxu0 0
        %2526 = vmatpush1.bf16.msra.mxu0 0
        %2527 = vmatprep.subr.bf16.mxu0 0
        %2528 = vmatpush1.bf16.msra.mxu0 0
        %2529 = vmatprep.subr.bf16.mxu0 0
        %2530 = vmatpush1.bf16.msra.mxu0 0
        %2531 = vmatprep.mubr.bf16.mxu0 0
        %2532 = vmatmul.mubr.bf16.gmra.mrb[0].mxu0 %v2485
        %v2533 = vpop.f32.mrb[0].mxu0
        %v2534 = vadd.f32 0.0, %v2533
        %v2535 = vpop.f32.mrb[0].mxu0
        %v2536 = vpop.f32.mrb[0].mxu0
        %v2537 = vadd.f32 0.0, %v2536
        %v2538 = vpop.f32.mrb[0].mxu0
        %2539 = vmatprep.mubr.bf16.mxu0 0
        %2540 = vmatmul.mubr.bf16.gmra.mrb[0].mxu0 %v2488
        %v2541 = vpop.f32.mrb[0].mxu0
        %v2542 = vadd.f32 0.0, %v2541
        %v2543 = vpop.f32.mrb[0].mxu0
        %v2544 = vpop.f32.mrb[0].mxu0
        %v2545 = vadd.f32 0.0, %v2544
        %v2546 = vpop.f32.mrb[0].mxu0
        %2547 = vmatprep.mubr.bf16.mxu0 0
        %2548 = vmatmul.mubr.bf16.gmra.mrb[0].mxu0 %v2491
        %v2549 = vpop.f32.mrb[0].mxu0
        %v2550 = vadd.f32 0.0, %v2549
        %v2551 = vpop.f32.mrb[0].mxu0
        %v2552 = vpop.f32.mrb[0].mxu0
        %v2553 = vadd.f32 0.0, %v2552
        %v2554 = vpop.f32.mrb[0].mxu0
        %2555 = vmatprep.mubr.bf16.mxu0 0
        %2556 = vmatmul.mubr.bf16.gmra.mrb[0].mxu0 %v2494
        %v2557 = vpop.f32.mrb[0].mxu0
        %v2558 = vadd.f32 0.0, %v2557
        %v2559 = vpop.f32.mrb[0].mxu0
        %v2560 = vpop.f32.mrb[0].mxu0
        %v2561 = vadd.f32 0.0, %v2560
        %v2562 = vpop.f32.mrb[0].mxu0
        %2563 = vdwg.mxu0
        %v2564 = vadd.f32 %v2474, %v2534
        %v2565 = vadd.f32 %v2475, %v2537
        %v2566 = vadd.f32 %v2476, %v2542
        %v2567 = vadd.f32 %v2477, %v2545
        %v2568 = vadd.f32 %v2478, %v2550
        %v2569 = vadd.f32 %v2479, %v2553
        %v2570 = vadd.f32 %v2480, %v2558
        %v2571 = vadd.f32 %v2481, %v2561
        %s2572 = scalar_lea.vmem %s2, 16
        %v2573 = vld [vmem:[%s2572] sm:$0x3]
        %v2575 = vsel %vm1867, %v1832, 0
        %v2578 = vsel %vm1867, %v1833, 0
        %v2581 = vsel %vm1867, %v1834, 0
        %v2584 = vsel %vm1867, %v1835, 0
        %v2587 = vand.u32 %v2573, %v1883
        %2589 = vmatprep.subr.bf16.mxu0 0
        %2590 = vmatpush1.bf16.msra.mxu0 %v2587
        %2591 = vmatprep.subr.bf16.mxu0 0
        %2592 = vmatpush1.bf16.msra.mxu0 0
        %2593 = vmatprep.subr.bf16.mxu0 0
        %2594 = vmatpush1.bf16.msra.mxu0 0
        %2595 = vmatprep.subr.bf16.mxu0 0
        %2596 = vmatpush1.bf16.msra.mxu0 0
        %2597 = vmatprep.subr.bf16.mxu0 0
        %2598 = vmatpush1.bf16.msra.mxu0 0
        %2599 = vmatprep.subr.bf16.mxu0 0
        %2600 = vmatpush1.bf16.msra.mxu0 0
        %2601 = vmatprep.subr.bf16.mxu0 0
        %2602 = vmatpush1.bf16.msra.mxu0 0
        %2603 = vmatprep.subr.bf16.mxu0 0
        %2604 = vmatpush1.bf16.msra.mxu0 0
        %2605 = vmatprep.subr.bf16.mxu0 0
        %2606 = vmatpush1.bf16.msra.mxu0 0
        %2607 = vmatprep.subr.bf16.mxu0 0
        %2608 = vmatpush1.bf16.msra.mxu0 0
        %2609 = vmatprep.subr.bf16.mxu0 0
        %2610 = vmatpush1.bf16.msra.mxu0 0
        %2611 = vmatprep.subr.bf16.mxu0 0
        %2612 = vmatpush1.bf16.msra.mxu0 0
        %2613 = vmatprep.subr.bf16.mxu0 0
        %2614 = vmatpush1.bf16.msra.mxu0 0
        %2615 = vmatprep.subr.bf16.mxu0 0
        %2616 = vmatpush1.bf16.msra.mxu0 0
        %2617 = vmatprep.subr.bf16.mxu0 0
        %2618 = vmatpush1.bf16.msra.mxu0 0
        %2619 = vmatprep.subr.bf16.mxu0 0
        %2620 = vmatpush1.bf16.msra.mxu0 0
        %2621 = vmatprep.mubr.bf16.mxu0 0
        %2622 = vmatmul.mubr.bf16.gmra.mrb[0].mxu0 %v2575
        %v2623 = vpop.f32.mrb[0].mxu0
        %v2624 = vadd.f32 0.0, %v2623
        %v2625 = vpop.f32.mrb[0].mxu0
        %v2626 = vpop.f32.mrb[0].mxu0
        %v2627 = vadd.f32 0.0, %v2626
        %v2628 = vpop.f32.mrb[0].mxu0
        %2629 = vmatprep.mubr.bf16.mxu0 0
        %2630 = vmatmul.mubr.bf16.gmra.mrb[0].mxu0 %v2578
        %v2631 = vpop.f32.mrb[0].mxu0
        %v2632 = vadd.f32 0.0, %v2631
        %v2633 = vpop.f32.mrb[0].mxu0
        %v2634 = vpop.f32.mrb[0].mxu0
        %v2635 = vadd.f32 0.0, %v2634
        %v2636 = vpop.f32.mrb[0].mxu0
        %2637 = vmatprep.mubr.bf16.mxu0 0
        %2638 = vmatmul.mubr.bf16.gmra.mrb[0].mxu0 %v2581
        %v2639 = vpop.f32.mrb[0].mxu0
        %v2640 = vadd.f32 0.0, %v2639
        %v2641 = vpop.f32.mrb[0].mxu0
        %v2642 = vpop.f32.mrb[0].mxu0
        %v2643 = vadd.f32 0.0, %v2642
        %v2644 = vpop.f32.mrb[0].mxu0
        %2645 = vmatprep.mubr.bf16.mxu0 0
        %2646 = vmatmul.mubr.bf16.gmra.mrb[0].mxu0 %v2584
        %v2647 = vpop.f32.mrb[0].mxu0
        %v2648 = vadd.f32 0.0, %v2647
        %v2649 = vpop.f32.mrb[0].mxu0
        %v2650 = vpop.f32.mrb[0].mxu0
        %v2651 = vadd.f32 0.0, %v2650
        %v2652 = vpop.f32.mrb[0].mxu0
        %2653 = vdwg.mxu0
        %v2654 = vadd.f32 %v2564, %v2624
        %v2655 = vadd.f32 %v2565, %v2627
        %v2656 = vadd.f32 %v2566, %v2632
        %v2657 = vadd.f32 %v2567, %v2635
        %v2658 = vadd.f32 %v2568, %v2640
        %v2659 = vadd.f32 %v2569, %v2643
        %v2660 = vadd.f32 %v2570, %v2648
        %v2661 = vadd.f32 %v2571, %v2651
        %s2662 = scalar_lea.vmem %s2, 18
        %v2663 = vld [vmem:[%s2662] sm:$0x3]
        %v2665 = vsel %vm1867, %v1836, 0
        %v2668 = vsel %vm1867, %v1837, 0
        %v2671 = vsel %vm1867, %v1838, 0
        %v2674 = vsel %vm1867, %v1839, 0
        %v2677 = vand.u32 %v2663, %v1883
        %2679 = vmatprep.subr.bf16.mxu0 0
        %2680 = vmatpush1.bf16.msra.mxu0 %v2677
        %2681 = vmatprep.subr.bf16.mxu0 0
        %2682 = vmatpush1.bf16.msra.mxu0 0
        %2683 = vmatprep.subr.bf16.mxu0 0
        %2684 = vmatpush1.bf16.msra.mxu0 0
        %2685 = vmatprep.subr.bf16.mxu0 0
        %2686 = vmatpush1.bf16.msra.mxu0 0
        %2687 = vmatprep.subr.bf16.mxu0 0
        %2688 = vmatpush1.bf16.msra.mxu0 0
        %2689 = vmatprep.subr.bf16.mxu0 0
        %2690 = vmatpush1.bf16.msra.mxu0 0
        %2691 = vmatprep.subr.bf16.mxu0 0
        %2692 = vmatpush1.bf16.msra.mxu0 0
        %2693 = vmatprep.subr.bf16.mxu0 0
        %2694 = vmatpush1.bf16.msra.mxu0 0
        %2695 = vmatprep.subr.bf16.mxu0 0
        %2696 = vmatpush1.bf16.msra.mxu0 0
        %2697 = vmatprep.subr.bf16.mxu0 0
        %2698 = vmatpush1.bf16.msra.mxu0 0
        %2699 = vmatprep.subr.bf16.mxu0 0
        %2700 = vmatpush1.bf16.msra.mxu0 0
        %2701 = vmatprep.subr.bf16.mxu0 0
        %2702 = vmatpush1.bf16.msra.mxu0 0
        %2703 = vmatprep.subr.bf16.mxu0 0
        %2704 = vmatpush1.bf16.msra.mxu0 0
        %2705 = vmatprep.subr.bf16.mxu0 0
        %2706 = vmatpush1.bf16.msra.mxu0 0
        %2707 = vmatprep.subr.bf16.mxu0 0
        %2708 = vmatpush1.bf16.msra.mxu0 0
        %2709 = vmatprep.subr.bf16.mxu0 0
        %2710 = vmatpush1.bf16.msra.mxu0 0
        %2711 = vmatprep.mubr.bf16.mxu0 0
        %2712 = vmatmul.mubr.bf16.gmra.mrb[0].mxu0 %v2665
        %v2713 = vpop.f32.mrb[0].mxu0
        %v2714 = vadd.f32 0.0, %v2713
        %v2715 = vpop.f32.mrb[0].mxu0
        %v2716 = vpop.f32.mrb[0].mxu0
        %v2717 = vadd.f32 0.0, %v2716
        %v2718 = vpop.f32.mrb[0].mxu0
        %2719 = vmatprep.mubr.bf16.mxu0 0
        %2720 = vmatmul.mubr.bf16.gmra.mrb[0].mxu0 %v2668
        %v2721 = vpop.f32.mrb[0].mxu0
        %v2722 = vadd.f32 0.0, %v2721
        %v2723 = vpop.f32.mrb[0].mxu0
        %v2724 = vpop.f32.mrb[0].mxu0
        %v2725 = vadd.f32 0.0, %v2724
        %v2726 = vpop.f32.mrb[0].mxu0
        %2727 = vmatprep.mubr.bf16.mxu0 0
        %2728 = vmatmul.mubr.bf16.gmra.mrb[0].mxu0 %v2671
        %v2729 = vpop.f32.mrb[0].mxu0
        %v2730 = vadd.f32 0.0, %v2729
        %v2731 = vpop.f32.mrb[0].mxu0
        %v2732 = vpop.f32.mrb[0].mxu0
        %v2733 = vadd.f32 0.0, %v2732
        %v2734 = vpop.f32.mrb[0].mxu0
        %2735 = vmatprep.mubr.bf16.mxu0 0
        %2736 = vmatmul.mubr.bf16.gmra.mrb[0].mxu0 %v2674
        %v2737 = vpop.f32.mrb[0].mxu0
        %v2738 = vadd.f32 0.0, %v2737
        %v2739 = vpop.f32.mrb[0].mxu0
        %v2740 = vpop.f32.mrb[0].mxu0
        %v2741 = vadd.f32 0.0, %v2740
        %v2742 = vpop.f32.mrb[0].mxu0
        %2743 = vdwg.mxu0
        %v2744 = vadd.f32 %v2654, %v2714
        %v2745 = vadd.f32 %v2655, %v2717
        %v2746 = vadd.f32 %v2656, %v2722
        %v2747 = vadd.f32 %v2657, %v2725
        %v2748 = vadd.f32 %v2658, %v2730
        %v2749 = vadd.f32 %v2659, %v2733
        %v2750 = vadd.f32 %v2660, %v2738
        %v2751 = vadd.f32 %v2661, %v2741
        %s2752 = scalar_lea.vmem %s2, 20
        %v2753 = vld [vmem:[%s2752] sm:$0x3]
        %v2755 = vsel %vm1867, %v1840, 0
        %v2758 = vsel %vm1867, %v1841, 0
        %v2761 = vsel %vm1867, %v1842, 0
        %v2764 = vsel %vm1867, %v1843, 0
        %v2767 = vand.u32 %v2753, %v1883
        %2769 = vmatprep.subr.bf16.mxu0 0
        %2770 = vmatpush1.bf16.msra.mxu0 %v2767
        %2771 = vmatprep.subr.bf16.mxu0 0
        %2772 = vmatpush1.bf16.msra.mxu0 0
        %2773 = vmatprep.subr.bf16.mxu0 0
        %2774 = vmatpush1.bf16.msra.mxu0 0
        %2775 = vmatprep.subr.bf16.mxu0 0
        %2776 = vmatpush1.bf16.msra.mxu0 0
        %2777 = vmatprep.subr.bf16.mxu0 0
        %2778 = vmatpush1.bf16.msra.mxu0 0
        %2779 = vmatprep.subr.bf16.mxu0 0
        %2780 = vmatpush1.bf16.msra.mxu0 0
        %2781 = vmatprep.subr.bf16.mxu0 0
        %2782 = vmatpush1.bf16.msra.mxu0 0
        %2783 = vmatprep.subr.bf16.mxu0 0
        %2784 = vmatpush1.bf16.msra.mxu0 0
        %2785 = vmatprep.subr.bf16.mxu0 0
        %2786 = vmatpush1.bf16.msra.mxu0 0
        %2787 = vmatprep.subr.bf16.mxu0 0
        %2788 = vmatpush1.bf16.msra.mxu0 0
        %2789 = vmatprep.subr.bf16.mxu0 0
        %2790 = vmatpush1.bf16.msra.mxu0 0
        %2791 = vmatprep.subr.bf16.mxu0 0
        %2792 = vmatpush1.bf16.msra.mxu0 0
        %2793 = vmatprep.subr.bf16.mxu0 0
        %2794 = vmatpush1.bf16.msra.mxu0 0
        %2795 = vmatprep.subr.bf16.mxu0 0
        %2796 = vmatpush1.bf16.msra.mxu0 0
        %2797 = vmatprep.subr.bf16.mxu0 0
        %2798 = vmatpush1.bf16.msra.mxu0 0
        %2799 = vmatprep.subr.bf16.mxu0 0
        %2800 = vmatpush1.bf16.msra.mxu0 0
        %2801 = vmatprep.mubr.bf16.mxu0 0
        %2802 = vmatmul.mubr.bf16.gmra.mrb[0].mxu0 %v2755
        %v2803 = vpop.f32.mrb[0].mxu0
        %v2804 = vadd.f32 0.0, %v2803
        %v2805 = vpop.f32.mrb[0].mxu0
        %v2806 = vpop.f32.mrb[0].mxu0
        %v2807 = vadd.f32 0.0, %v2806
        %v2808 = vpop.f32.mrb[0].mxu0
        %2809 = vmatprep.mubr.bf16.mxu0 0
        %2810 = vmatmul.mubr.bf16.gmra.mrb[0].mxu0 %v2758
        %v2811 = vpop.f32.mrb[0].mxu0
        %v2812 = vadd.f32 0.0, %v2811
        %v2813 = vpop.f32.mrb[0].mxu0
        %v2814 = vpop.f32.mrb[0].mxu0
        %v2815 = vadd.f32 0.0, %v2814
        %v2816 = vpop.f32.mrb[0].mxu0
        %2817 = vmatprep.mubr.bf16.mxu0 0
        %2818 = vmatmul.mubr.bf16.gmra.mrb[0].mxu0 %v2761
        %v2819 = vpop.f32.mrb[0].mxu0
        %v2820 = vadd.f32 0.0, %v2819
        %v2821 = vpop.f32.mrb[0].mxu0
        %v2822 = vpop.f32.mrb[0].mxu0
        %v2823 = vadd.f32 0.0, %v2822
        %v2824 = vpop.f32.mrb[0].mxu0
        %2825 = vmatprep.mubr.bf16.mxu0 0
        %2826 = vmatmul.mubr.bf16.gmra.mrb[0].mxu0 %v2764
        %v2827 = vpop.f32.mrb[0].mxu0
        %v2828 = vadd.f32 0.0, %v2827
        %v2829 = vpop.f32.mrb[0].mxu0
        %v2830 = vpop.f32.mrb[0].mxu0
        %v2831 = vadd.f32 0.0, %v2830
        %v2832 = vpop.f32.mrb[0].mxu0
        %2833 = vdwg.mxu0
        %v2834 = vadd.f32 %v2744, %v2804
        %v2835 = vadd.f32 %v2745, %v2807
        %v2836 = vadd.f32 %v2746, %v2812
        %v2837 = vadd.f32 %v2747, %v2815
        %v2838 = vadd.f32 %v2748, %v2820
        %v2839 = vadd.f32 %v2749, %v2823
        %v2840 = vadd.f32 %v2750, %v2828
        %v2841 = vadd.f32 %v2751, %v2831
        %s2842 = scalar_lea.vmem %s2, 22
        %v2843 = vld [vmem:[%s2842] sm:$0x3]
        %v2845 = vsel %vm1867, %v1844, 0
        %v2848 = vsel %vm1867, %v1845, 0
        %v2851 = vsel %vm1867, %v1846, 0
        %v2854 = vsel %vm1867, %v1847, 0
        %v2857 = vand.u32 %v2843, %v1883
        %2859 = vmatprep.subr.bf16.mxu0 0
        %2860 = vmatpush1.bf16.msra.mxu0 %v2857
        %2861 = vmatprep.subr.bf16.mxu0 0
        %2862 = vmatpush1.bf16.msra.mxu0 0
        %2863 = vmatprep.subr.bf16.mxu0 0
        %2864 = vmatpush1.bf16.msra.mxu0 0
        %2865 = vmatprep.subr.bf16.mxu0 0
        %2866 = vmatpush1.bf16.msra.mxu0 0
        %2867 = vmatprep.subr.bf16.mxu0 0
        %2868 = vmatpush1.bf16.msra.mxu0 0
        %2869 = vmatprep.subr.bf16.mxu0 0
        %2870 = vmatpush1.bf16.msra.mxu0 0
        %2871 = vmatprep.subr.bf16.mxu0 0
        %2872 = vmatpush1.bf16.msra.mxu0 0
        %2873 = vmatprep.subr.bf16.mxu0 0
        %2874 = vmatpush1.bf16.msra.mxu0 0
        %2875 = vmatprep.subr.bf16.mxu0 0
        %2876 = vmatpush1.bf16.msra.mxu0 0
        %2877 = vmatprep.subr.bf16.mxu0 0
        %2878 = vmatpush1.bf16.msra.mxu0 0
        %2879 = vmatprep.subr.bf16.mxu0 0
        %2880 = vmatpush1.bf16.msra.mxu0 0
        %2881 = vmatprep.subr.bf16.mxu0 0
        %2882 = vmatpush1.bf16.msra.mxu0 0
        %2883 = vmatprep.subr.bf16.mxu0 0
        %2884 = vmatpush1.bf16.msra.mxu0 0
        %2885 = vmatprep.subr.bf16.mxu0 0
        %2886 = vmatpush1.bf16.msra.mxu0 0
        %2887 = vmatprep.subr.bf16.mxu0 0
        %2888 = vmatpush1.bf16.msra.mxu0 0
        %2889 = vmatprep.subr.bf16.mxu0 0
        %2890 = vmatpush1.bf16.msra.mxu0 0
        %2891 = vmatprep.mubr.bf16.mxu0 0
        %2892 = vmatmul.mubr.bf16.gmra.mrb[0].mxu0 %v2845
        %v2893 = vpop.f32.mrb[0].mxu0
        %v2894 = vadd.f32 0.0, %v2893
        %v2895 = vpop.f32.mrb[0].mxu0
        %v2896 = vpop.f32.mrb[0].mxu0
        %v2897 = vadd.f32 0.0, %v2896
        %v2898 = vpop.f32.mrb[0].mxu0
        %2899 = vmatprep.mubr.bf16.mxu0 0
        %2900 = vmatmul.mubr.bf16.gmra.mrb[0].mxu0 %v2848
        %v2901 = vpop.f32.mrb[0].mxu0
        %v2902 = vadd.f32 0.0, %v2901
        %v2903 = vpop.f32.mrb[0].mxu0
        %v2904 = vpop.f32.mrb[0].mxu0
        %v2905 = vadd.f32 0.0, %v2904
        %v2906 = vpop.f32.mrb[0].mxu0
        %2907 = vmatprep.mubr.bf16.mxu0 0
        %2908 = vmatmul.mubr.bf16.gmra.mrb[0].mxu0 %v2851
        %v2909 = vpop.f32.mrb[0].mxu0
        %v2910 = vadd.f32 0.0, %v2909
        %v2911 = vpop.f32.mrb[0].mxu0
        %v2912 = vpop.f32.mrb[0].mxu0
        %v2913 = vadd.f32 0.0, %v2912
        %v2914 = vpop.f32.mrb[0].mxu0
        %2915 = vmatprep.mubr.bf16.mxu0 0
        %2916 = vmatmul.mubr.bf16.gmra.mrb[0].mxu0 %v2854
        %v2917 = vpop.f32.mrb[0].mxu0
        %v2918 = vadd.f32 0.0, %v2917
        %v2919 = vpop.f32.mrb[0].mxu0
        %v2920 = vpop.f32.mrb[0].mxu0
        %v2921 = vadd.f32 0.0, %v2920
        %v2922 = vpop.f32.mrb[0].mxu0
        %2923 = vdwg.mxu0
        %v2924 = vadd.f32 %v2834, %v2894
        %v2925 = vadd.f32 %v2835, %v2897
        %v2926 = vadd.f32 %v2836, %v2902
        %v2927 = vadd.f32 %v2837, %v2905
        %v2928 = vadd.f32 %v2838, %v2910
        %v2929 = vadd.f32 %v2839, %v2913
        %v2930 = vadd.f32 %v2840, %v2918
        %v2931 = vadd.f32 %v2841, %v2921
        %s2932 = scalar_lea.vmem %s2, 24
        %v2933 = vld [vmem:[%s2932] sm:$0x3]
        %v2935 = vsel %vm1867, %v1848, 0
        %v2938 = vsel %vm1867, %v1849, 0
        %v2941 = vsel %vm1867, %v1850, 0
        %v2944 = vsel %vm1867, %v1851, 0
        %v2947 = vand.u32 %v2933, %v1883
        %2949 = vmatprep.subr.bf16.mxu0 0
        %2950 = vmatpush1.bf16.msra.mxu0 %v2947
        %2951 = vmatprep.subr.bf16.mxu0 0
        %2952 = vmatpush1.bf16.msra.mxu0 0
        %2953 = vmatprep.subr.bf16.mxu0 0
        %2954 = vmatpush1.bf16.msra.mxu0 0
        %2955 = vmatprep.subr.bf16.mxu0 0
        %2956 = vmatpush1.bf16.msra.mxu0 0
        %2957 = vmatprep.subr.bf16.mxu0 0
        %2958 = vmatpush1.bf16.msra.mxu0 0
        %2959 = vmatprep.subr.bf16.mxu0 0
        %2960 = vmatpush1.bf16.msra.mxu0 0
        %2961 = vmatprep.subr.bf16.mxu0 0
        %2962 = vmatpush1.bf16.msra.mxu0 0
        %2963 = vmatprep.subr.bf16.mxu0 0
        %2964 = vmatpush1.bf16.msra.mxu0 0
        %2965 = vmatprep.subr.bf16.mxu0 0
        %2966 = vmatpush1.bf16.msra.mxu0 0
        %2967 = vmatprep.subr.bf16.mxu0 0
        %2968 = vmatpush1.bf16.msra.mxu0 0
        %2969 = vmatprep.subr.bf16.mxu0 0
        %2970 = vmatpush1.bf16.msra.mxu0 0
        %2971 = vmatprep.subr.bf16.mxu0 0
        %2972 = vmatpush1.bf16.msra.mxu0 0
        %2973 = vmatprep.subr.bf16.mxu0 0
        %2974 = vmatpush1.bf16.msra.mxu0 0
        %2975 = vmatprep.subr.bf16.mxu0 0
        %2976 = vmatpush1.bf16.msra.mxu0 0
        %2977 = vmatprep.subr.bf16.mxu0 0
        %2978 = vmatpush1.bf16.msra.mxu0 0
        %2979 = vmatprep.subr.bf16.mxu0 0
        %2980 = vmatpush1.bf16.msra.mxu0 0
        %2981 = vmatprep.mubr.bf16.mxu0 0
        %2982 = vmatmul.mubr.bf16.gmra.mrb[0].mxu0 %v2935
        %v2983 = vpop.f32.mrb[0].mxu0
        %v2984 = vadd.f32 0.0, %v2983
        %v2985 = vpop.f32.mrb[0].mxu0
        %v2986 = vpop.f32.mrb[0].mxu0
        %v2987 = vadd.f32 0.0, %v2986
        %v2988 = vpop.f32.mrb[0].mxu0
        %2989 = vmatprep.mubr.bf16.mxu0 0
        %2990 = vmatmul.mubr.bf16.gmra.mrb[0].mxu0 %v2938
        %v2991 = vpop.f32.mrb[0].mxu0
        %v2992 = vadd.f32 0.0, %v2991
        %v2993 = vpop.f32.mrb[0].mxu0
        %v2994 = vpop.f32.mrb[0].mxu0
        %v2995 = vadd.f32 0.0, %v2994
        %v2996 = vpop.f32.mrb[0].mxu0
        %2997 = vmatprep.mubr.bf16.mxu0 0
        %2998 = vmatmul.mubr.bf16.gmra.mrb[0].mxu0 %v2941
        %v2999 = vpop.f32.mrb[0].mxu0
        %v3000 = vadd.f32 0.0, %v2999
        %v3001 = vpop.f32.mrb[0].mxu0
        %v3002 = vpop.f32.mrb[0].mxu0
        %v3003 = vadd.f32 0.0, %v3002
        %v3004 = vpop.f32.mrb[0].mxu0
        %3005 = vmatprep.mubr.bf16.mxu0 0
        %3006 = vmatmul.mubr.bf16.gmra.mrb[0].mxu0 %v2944
        %v3007 = vpop.f32.mrb[0].mxu0
        %v3008 = vadd.f32 0.0, %v3007
        %v3009 = vpop.f32.mrb[0].mxu0
        %v3010 = vpop.f32.mrb[0].mxu0
        %v3011 = vadd.f32 0.0, %v3010
        %v3012 = vpop.f32.mrb[0].mxu0
        %3013 = vdwg.mxu0
        %v3014 = vadd.f32 %v2924, %v2984
        %v3015 = vadd.f32 %v2925, %v2987
        %v3016 = vadd.f32 %v2926, %v2992
        %v3017 = vadd.f32 %v2927, %v2995
        %v3018 = vadd.f32 %v2928, %v3000
        %v3019 = vadd.f32 %v2929, %v3003
        %v3020 = vadd.f32 %v2930, %v3008
        %v3021 = vadd.f32 %v2931, %v3011
        %s3022 = scalar_lea.vmem %s2, 26
        %v3023 = vld [vmem:[%s3022] sm:$0x3]
        %v3025 = vsel %vm1867, %v1852, 0
        %v3028 = vsel %vm1867, %v1853, 0
        %v3031 = vsel %vm1867, %v1854, 0
        %v3034 = vsel %vm1867, %v1855, 0
        %v3037 = vand.u32 %v3023, %v1883
        %3039 = vmatprep.subr.bf16.mxu0 0
        %3040 = vmatpush1.bf16.msra.mxu0 %v3037
        %3041 = vmatprep.subr.bf16.mxu0 0
        %3042 = vmatpush1.bf16.msra.mxu0 0
        %3043 = vmatprep.subr.bf16.mxu0 0
        %3044 = vmatpush1.bf16.msra.mxu0 0
        %3045 = vmatprep.subr.bf16.mxu0 0
        %3046 = vmatpush1.bf16.msra.mxu0 0
        %3047 = vmatprep.subr.bf16.mxu0 0
        %3048 = vmatpush1.bf16.msra.mxu0 0
        %3049 = vmatprep.subr.bf16.mxu0 0
        %3050 = vmatpush1.bf16.msra.mxu0 0
        %3051 = vmatprep.subr.bf16.mxu0 0
        %3052 = vmatpush1.bf16.msra.mxu0 0
        %3053 = vmatprep.subr.bf16.mxu0 0
        %3054 = vmatpush1.bf16.msra.mxu0 0
        %3055 = vmatprep.subr.bf16.mxu0 0
        %3056 = vmatpush1.bf16.msra.mxu0 0
        %3057 = vmatprep.subr.bf16.mxu0 0
        %3058 = vmatpush1.bf16.msra.mxu0 0
        %3059 = vmatprep.subr.bf16.mxu0 0
        %3060 = vmatpush1.bf16.msra.mxu0 0
        %3061 = vmatprep.subr.bf16.mxu0 0
        %3062 = vmatpush1.bf16.msra.mxu0 0
        %3063 = vmatprep.subr.bf16.mxu0 0
        %3064 = vmatpush1.bf16.msra.mxu0 0
        %3065 = vmatprep.subr.bf16.mxu0 0
        %3066 = vmatpush1.bf16.msra.mxu0 0
        %3067 = vmatprep.subr.bf16.mxu0 0
        %3068 = vmatpush1.bf16.msra.mxu0 0
        %3069 = vmatprep.subr.bf16.mxu0 0
        %3070 = vmatpush1.bf16.msra.mxu0 0
        %3071 = vmatprep.mubr.bf16.mxu0 0
        %3072 = vmatmul.mubr.bf16.gmra.mrb[0].mxu0 %v3025
        %v3073 = vpop.f32.mrb[0].mxu0
        %v3074 = vadd.f32 0.0, %v3073
        %v3075 = vpop.f32.mrb[0].mxu0
        %v3076 = vpop.f32.mrb[0].mxu0
        %v3077 = vadd.f32 0.0, %v3076
        %v3078 = vpop.f32.mrb[0].mxu0
        %3079 = vmatprep.mubr.bf16.mxu0 0
        %3080 = vmatmul.mubr.bf16.gmra.mrb[0].mxu0 %v3028
        %v3081 = vpop.f32.mrb[0].mxu0
        %v3082 = vadd.f32 0.0, %v3081
        %v3083 = vpop.f32.mrb[0].mxu0
        %v3084 = vpop.f32.mrb[0].mxu0
        %v3085 = vadd.f32 0.0, %v3084
        %v3086 = vpop.f32.mrb[0].mxu0
        %3087 = vmatprep.mubr.bf16.mxu0 0
        %3088 = vmatmul.mubr.bf16.gmra.mrb[0].mxu0 %v3031
        %v3089 = vpop.f32.mrb[0].mxu0
        %v3090 = vadd.f32 0.0, %v3089
        %v3091 = vpop.f32.mrb[0].mxu0
        %v3092 = vpop.f32.mrb[0].mxu0
        %v3093 = vadd.f32 0.0, %v3092
        %v3094 = vpop.f32.mrb[0].mxu0
        %3095 = vmatprep.mubr.bf16.mxu0 0
        %3096 = vmatmul.mubr.bf16.gmra.mrb[0].mxu0 %v3034
        %v3097 = vpop.f32.mrb[0].mxu0
        %v3098 = vadd.f32 0.0, %v3097
        %v3099 = vpop.f32.mrb[0].mxu0
        %v3100 = vpop.f32.mrb[0].mxu0
        %v3101 = vadd.f32 0.0, %v3100
        %v3102 = vpop.f32.mrb[0].mxu0
        %3103 = vdwg.mxu0
        %v3104 = vadd.f32 %v3014, %v3074
        %v3105 = vadd.f32 %v3015, %v3077
        %v3106 = vadd.f32 %v3016, %v3082
        %v3107 = vadd.f32 %v3017, %v3085
        %v3108 = vadd.f32 %v3018, %v3090
        %v3109 = vadd.f32 %v3019, %v3093
        %v3110 = vadd.f32 %v3020, %v3098
        %v3111 = vadd.f32 %v3021, %v3101
        %s3112 = scalar_lea.vmem %s2, 28
        %v3113 = vld [vmem:[%s3112] sm:$0x3]
        %v3115 = vsel %vm1867, %v1856, 0
        %v3118 = vsel %vm1867, %v1857, 0
        %v3121 = vsel %vm1867, %v1858, 0
        %v3124 = vsel %vm1867, %v1859, 0
        %v3127 = vand.u32 %v3113, %v1883
        %3129 = vmatprep.subr.bf16.mxu0 0
        %3130 = vmatpush1.bf16.msra.mxu0 %v3127
        %3131 = vmatprep.subr.bf16.mxu0 0
        %3132 = vmatpush1.bf16.msra.mxu0 0
        %3133 = vmatprep.subr.bf16.mxu0 0
        %3134 = vmatpush1.bf16.msra.mxu0 0
        %3135 = vmatprep.subr.bf16.mxu0 0
        %3136 = vmatpush1.bf16.msra.mxu0 0
        %3137 = vmatprep.subr.bf16.mxu0 0
        %3138 = vmatpush1.bf16.msra.mxu0 0
        %3139 = vmatprep.subr.bf16.mxu0 0
        %3140 = vmatpush1.bf16.msra.mxu0 0
        %3141 = vmatprep.subr.bf16.mxu0 0
        %3142 = vmatpush1.bf16.msra.mxu0 0
        %3143 = vmatprep.subr.bf16.mxu0 0
        %3144 = vmatpush1.bf16.msra.mxu0 0
        %3145 = vmatprep.subr.bf16.mxu0 0
        %3146 = vmatpush1.bf16.msra.mxu0 0
        %3147 = vmatprep.subr.bf16.mxu0 0
        %3148 = vmatpush1.bf16.msra.mxu0 0
        %3149 = vmatprep.subr.bf16.mxu0 0
        %3150 = vmatpush1.bf16.msra.mxu0 0
        %3151 = vmatprep.subr.bf16.mxu0 0
        %3152 = vmatpush1.bf16.msra.mxu0 0
        %3153 = vmatprep.subr.bf16.mxu0 0
        %3154 = vmatpush1.bf16.msra.mxu0 0
        %3155 = vmatprep.subr.bf16.mxu0 0
        %3156 = vmatpush1.bf16.msra.mxu0 0
        %3157 = vmatprep.subr.bf16.mxu0 0
        %3158 = vmatpush1.bf16.msra.mxu0 0
        %3159 = vmatprep.subr.bf16.mxu0 0
        %3160 = vmatpush1.bf16.msra.mxu0 0
        %3161 = vmatprep.mubr.bf16.mxu0 0
        %3162 = vmatmul.mubr.bf16.gmra.mrb[0].mxu0 %v3115
        %v3163 = vpop.f32.mrb[0].mxu0
        %v3164 = vadd.f32 0.0, %v3163
        %v3165 = vpop.f32.mrb[0].mxu0
        %v3166 = vpop.f32.mrb[0].mxu0
        %v3167 = vadd.f32 0.0, %v3166
        %v3168 = vpop.f32.mrb[0].mxu0
        %3169 = vmatprep.mubr.bf16.mxu0 0
        %3170 = vmatmul.mubr.bf16.gmra.mrb[0].mxu0 %v3118
        %v3171 = vpop.f32.mrb[0].mxu0
        %v3172 = vadd.f32 0.0, %v3171
        %v3173 = vpop.f32.mrb[0].mxu0
        %v3174 = vpop.f32.mrb[0].mxu0
        %v3175 = vadd.f32 0.0, %v3174
        %v3176 = vpop.f32.mrb[0].mxu0
        %3177 = vmatprep.mubr.bf16.mxu0 0
        %3178 = vmatmul.mubr.bf16.gmra.mrb[0].mxu0 %v3121
        %v3179 = vpop.f32.mrb[0].mxu0
        %v3180 = vadd.f32 0.0, %v3179
        %v3181 = vpop.f32.mrb[0].mxu0
        %v3182 = vpop.f32.mrb[0].mxu0
        %v3183 = vadd.f32 0.0, %v3182
        %v3184 = vpop.f32.mrb[0].mxu0
        %3185 = vmatprep.mubr.bf16.mxu0 0
        %3186 = vmatmul.mubr.bf16.gmra.mrb[0].mxu0 %v3124
        %v3187 = vpop.f32.mrb[0].mxu0
        %v3188 = vadd.f32 0.0, %v3187
        %v3189 = vpop.f32.mrb[0].mxu0
        %v3190 = vpop.f32.mrb[0].mxu0
        %v3191 = vadd.f32 0.0, %v3190
        %v3192 = vpop.f32.mrb[0].mxu0
        %3193 = vdwg.mxu0
        %v3194 = vadd.f32 %v3104, %v3164
        %v3195 = vadd.f32 %v3105, %v3167
        %v3196 = vadd.f32 %v3106, %v3172
        %v3197 = vadd.f32 %v3107, %v3175
        %v3198 = vadd.f32 %v3108, %v3180
        %v3199 = vadd.f32 %v3109, %v3183
        %v3200 = vadd.f32 %v3110, %v3188
        %v3201 = vadd.f32 %v3111, %v3191
        %s3202 = scalar_lea.vmem %s2, 30
        %v3203 = vld [vmem:[%s3202] sm:$0x3]
        %v3205 = vsel %vm1867, %v1860, 0
        %v3208 = vsel %vm1867, %v1861, 0
        %v3211 = vsel %vm1867, %v1862, 0
        %v3214 = vsel %vm1867, %v1863, 0
        %v3217 = vand.u32 %v3203, %v1883
        %3219 = vmatprep.subr.bf16.mxu0 0
        %3220 = vmatpush1.bf16.msra.mxu0 %v3217
        %3221 = vmatprep.subr.bf16.mxu0 0
        %3222 = vmatpush1.bf16.msra.mxu0 0
        %3223 = vmatprep.subr.bf16.mxu0 0
        %3224 = vmatpush1.bf16.msra.mxu0 0
        %3225 = vmatprep.subr.bf16.mxu0 0
        %3226 = vmatpush1.bf16.msra.mxu0 0
        %3227 = vmatprep.subr.bf16.mxu0 0
        %3228 = vmatpush1.bf16.msra.mxu0 0
        %3229 = vmatprep.subr.bf16.mxu0 0
        %3230 = vmatpush1.bf16.msra.mxu0 0
        %3231 = vmatprep.subr.bf16.mxu0 0
        %3232 = vmatpush1.bf16.msra.mxu0 0
        %3233 = vmatprep.subr.bf16.mxu0 0
        %3234 = vmatpush1.bf16.msra.mxu0 0
        %3235 = vmatprep.subr.bf16.mxu0 0
        %3236 = vmatpush1.bf16.msra.mxu0 0
        %3237 = vmatprep.subr.bf16.mxu0 0
        %3238 = vmatpush1.bf16.msra.mxu0 0
        %3239 = vmatprep.subr.bf16.mxu0 0
        %3240 = vmatpush1.bf16.msra.mxu0 0
        %3241 = vmatprep.subr.bf16.mxu0 0
        %3242 = vmatpush1.bf16.msra.mxu0 0
        %3243 = vmatprep.subr.bf16.mxu0 0
        %3244 = vmatpush1.bf16.msra.mxu0 0
        %3245 = vmatprep.subr.bf16.mxu0 0
        %3246 = vmatpush1.bf16.msra.mxu0 0
        %3247 = vmatprep.subr.bf16.mxu0 0
        %3248 = vmatpush1.bf16.msra.mxu0 0
        %3249 = vmatprep.subr.bf16.mxu0 0
        %3250 = vmatpush1.bf16.msra.mxu0 0
        %3251 = vmatprep.mubr.bf16.mxu0 0
        %3252 = vmatmul.mubr.bf16.gmra.mrb[0].mxu0 %v3205
        %v3253 = vpop.f32.mrb[0].mxu0
        %v3254 = vadd.f32 0.0, %v3253
        %v3255 = vpop.f32.mrb[0].mxu0
        %v3256 = vpop.f32.mrb[0].mxu0
        %v3257 = vadd.f32 0.0, %v3256
        %v3258 = vpop.f32.mrb[0].mxu0
        %3259 = vmatprep.mubr.bf16.mxu0 0
        %3260 = vmatmul.mubr.bf16.gmra.mrb[0].mxu0 %v3208
        %v3261 = vpop.f32.mrb[0].mxu0
        %v3262 = vadd.f32 0.0, %v3261
        %v3263 = vpop.f32.mrb[0].mxu0
        %v3264 = vpop.f32.mrb[0].mxu0
        %v3265 = vadd.f32 0.0, %v3264
        %v3266 = vpop.f32.mrb[0].mxu0
        %3267 = vmatprep.mubr.bf16.mxu0 0
        %3268 = vmatmul.mubr.bf16.gmra.mrb[0].mxu0 %v3211
        %v3269 = vpop.f32.mrb[0].mxu0
        %v3270 = vadd.f32 0.0, %v3269
        %v3271 = vpop.f32.mrb[0].mxu0
        %v3272 = vpop.f32.mrb[0].mxu0
        %v3273 = vadd.f32 0.0, %v3272
        %v3274 = vpop.f32.mrb[0].mxu0
        %3275 = vmatprep.mubr.bf16.mxu0 0
        %3276 = vmatmul.mubr.bf16.gmra.mrb[0].mxu0 %v3214
        %v3277 = vpop.f32.mrb[0].mxu0
        %v3278 = vadd.f32 0.0, %v3277
        %v3279 = vpop.f32.mrb[0].mxu0
        %v3280 = vpop.f32.mrb[0].mxu0
        %v3281 = vadd.f32 0.0, %v3280
        %v3282 = vpop.f32.mrb[0].mxu0
        %3283 = vdwg.mxu0
        %v3284 = vadd.f32 %v3194, %v3254
        %v3285 = vadd.f32 %v3195, %v3257
        %v3286 = vadd.f32 %v3196, %v3262
        %v3287 = vadd.f32 %v3197, %v3265
        %v3288 = vadd.f32 %v3198, %v3270
        %v3289 = vadd.f32 %v3199, %v3273
        %v3290 = vadd.f32 %v3200, %v3278
        %v3291 = vadd.f32 %v3201, %v3281
        %v3292 = vld [vmem:[%s3] sm:$0x1]
        %v3294 = vlaneseq
        %v3295 = vshrl.u32 %v3294, 7
        %v3296 = vsub.s32 0, %v3295
        %v3297 = vrot.slane %v3292, %v3296
        %v3299 = vadd.f32 %v3284, %v3297
        %v3300 = vadd.f32 %v3285, %v3297
        %v3301 = vadd.f32 %v3286, %v3297
        %v3302 = vadd.f32 %v3287, %v3297
        %v3303 = vadd.f32 %v3288, %v3297
        %v3304 = vadd.f32 %v3289, %v3297
        %v3305 = vadd.f32 %v3290, %v3297
        %v3306 = vadd.f32 %v3291, %v3297
        %v3307 = vmax.f32 %v3299, 0.0
        %v3308 = vmax.f32 %v3300, 0.0
        %v3309 = vmax.f32 %v3301, 0.0
        %v3310 = vmax.f32 %v3302, 0.0
        %v3311 = vmax.f32 %v3303, 0.0
        %v3312 = vmax.f32 %v3304, 0.0
        %v3313 = vmax.f32 %v3305, 0.0
        %v3314 = vmax.f32 %v3306, 0.0
        %v3315 = vpack.c.bf16 %v3308, %v3307
        %v3316 = vpack.c.bf16 %v3310, %v3309
        %v3317 = vpack.c.bf16 %v3312, %v3311
        %v3318 = vpack.c.bf16 %v3314, %v3313
        %v3319 = vld [vmem:[%s4] sm:$0xf]
        %v3320 = vld [vmem:[%s4 + $0x4] sm:$0xf]
        %v3321 = vld [vmem:[%s4 + $0x8] sm:$0xf]
        %v3322 = vld [vmem:[%s4 + $0xc] sm:$0xf]
        %v3323 = vld [vmem:[%s4 + $0x10] sm:$0xf]
        %v3324 = vld [vmem:[%s4 + $0x14] sm:$0xf]
        %v3325 = vld [vmem:[%s4 + $0x18] sm:$0xf]
        %v3326 = vld [vmem:[%s4 + $0x1c] sm:$0xf]
        %v3327 = vld [vmem:[%s4 + $0x20] sm:$0xf]
        %v3328 = vld [vmem:[%s4 + $0x24] sm:$0xf]
        %v3329 = vld [vmem:[%s4 + $0x28] sm:$0xf]
        %v3330 = vld [vmem:[%s4 + $0x2c] sm:$0xf]
        %v3331 = vld [vmem:[%s4 + $0x30] sm:$0xf]
        %v3332 = vld [vmem:[%s4 + $0x34] sm:$0xf]
        %v3333 = vld [vmem:[%s4 + $0x38] sm:$0xf]
        %v3334 = vld [vmem:[%s4 + $0x3c] sm:$0xf]
        %v3335 = vld [vmem:[%s4 + $0x40] sm:$0xf]
        %v3336 = vld [vmem:[%s4 + $0x44] sm:$0xf]
        %v3337 = vld [vmem:[%s4 + $0x48] sm:$0xf]
        %v3338 = vld [vmem:[%s4 + $0x4c] sm:$0xf]
        %v3339 = vld [vmem:[%s4 + $0x50] sm:$0xf]
        %v3340 = vld [vmem:[%s4 + $0x54] sm:$0xf]
        %v3341 = vld [vmem:[%s4 + $0x58] sm:$0xf]
        %v3342 = vld [vmem:[%s4 + $0x5c] sm:$0xf]
        %v3343 = vld [vmem:[%s4 + $0x60] sm:$0xf]
        %v3344 = vld [vmem:[%s4 + $0x64] sm:$0xf]
        %v3345 = vld [vmem:[%s4 + $0x68] sm:$0xf]
        %v3346 = vld [vmem:[%s4 + $0x6c] sm:$0xf]
        %v3347 = vld [vmem:[%s4 + $0x70] sm:$0xf]
        %v3348 = vld [vmem:[%s4 + $0x74] sm:$0xf]
        %v3349 = vld [vmem:[%s4 + $0x78] sm:$0xf]
        %v3350 = vld [vmem:[%s4 + $0x7c] sm:$0xf]
        %v3383 = vunpack.c.l.b16 %v3319
        %v3384 = vunpack.c.l.b16 %v3320
        %v3385 = vunpack.c.l.b16 %v3321
        %v3386 = vunpack.c.l.b16 %v3322
        %v3387 = vunpack.c.l.b16 %v3323
        %v3388 = vunpack.c.l.b16 %v3324
        %v3389 = vunpack.c.l.b16 %v3325
        %v3390 = vunpack.c.l.b16 %v3326
        %v3391 = vunpack.c.l.b16 %v3327
        %v3392 = vunpack.c.l.b16 %v3328
        %v3393 = vunpack.c.l.b16 %v3329
        %v3394 = vunpack.c.l.b16 %v3330
        %v3395 = vunpack.c.l.b16 %v3331
        %v3396 = vunpack.c.l.b16 %v3332
        %v3397 = vunpack.c.l.b16 %v3333
        %v3398 = vunpack.c.l.b16 %v3334
        %v3399 = vunpack.c.l.b16 %v3335
        %v3400 = vunpack.c.l.b16 %v3336
        %v3401 = vunpack.c.l.b16 %v3337
        %v3402 = vunpack.c.l.b16 %v3338
        %v3403 = vunpack.c.l.b16 %v3339
        %v3404 = vunpack.c.l.b16 %v3340
        %v3405 = vunpack.c.l.b16 %v3341
        %v3406 = vunpack.c.l.b16 %v3342
        %v3407 = vunpack.c.l.b16 %v3343
        %v3408 = vunpack.c.l.b16 %v3344
        %v3409 = vunpack.c.l.b16 %v3345
        %v3410 = vunpack.c.l.b16 %v3346
        %v3411 = vunpack.c.l.b16 %v3347
        %v3412 = vunpack.c.l.b16 %v3348
        %v3413 = vunpack.c.l.b16 %v3349
        %v3414 = vunpack.c.l.b16 %v3350
        %v3415 = vpack.c.b16 %v3384, %v3383
        %v3416 = vpack.c.b16 %v3386, %v3385
        %v3417 = vpack.c.b16 %v3388, %v3387
        %v3418 = vpack.c.b16 %v3390, %v3389
        %v3419 = vpack.c.b16 %v3392, %v3391
        %v3420 = vpack.c.b16 %v3394, %v3393
        %v3421 = vpack.c.b16 %v3396, %v3395
        %v3422 = vpack.c.b16 %v3398, %v3397
        %v3423 = vpack.c.b16 %v3400, %v3399
        %v3424 = vpack.c.b16 %v3402, %v3401
        %v3425 = vpack.c.b16 %v3404, %v3403
        %v3426 = vpack.c.b16 %v3406, %v3405
        %v3427 = vpack.c.b16 %v3408, %v3407
        %v3428 = vpack.c.b16 %v3410, %v3409
        %v3429 = vpack.c.b16 %v3412, %v3411
        %v3430 = vpack.c.b16 %v3414, %v3413
        %vm3431 = vcmask 523264
        %v3433 = vsel %vm3431, %v3415, 0
        %v3436 = vsel %vm3431, %v3416, 0
        %v3439 = vsel %vm3431, %v3417, 0
        %v3442 = vsel %vm3431, %v3418, 0
        %v3445 = vsel %vm3431, %v3419, 0
        %v3448 = vsel %vm3431, %v3420, 0
        %v3451 = vsel %vm3431, %v3421, 0
        %v3454 = vsel %vm3431, %v3422, 0
        %v3457 = vsel %vm3431, %v3423, 0
        %v3460 = vsel %vm3431, %v3424, 0
        %v3463 = vsel %vm3431, %v3425, 0
        %v3466 = vsel %vm3431, %v3426, 0
        %v3469 = vsel %vm3431, %v3427, 0
        %v3472 = vsel %vm3431, %v3428, 0
        %v3475 = vsel %vm3431, %v3429, 0
        %v3478 = vsel %vm3431, %v3430, 0
        %3480 = vmatprep.subr.bf16.mxu0 0
        %3481 = vmatpush1.bf16.msra.mxu0 %v3315
        %3482 = vmatprep.subr.bf16.mxu0 0
        %3483 = vmatpush1.bf16.msra.mxu0 %v3316
        %3484 = vmatprep.subr.bf16.mxu0 0
        %3485 = vmatpush1.bf16.msra.mxu0 %v3317
        %3486 = vmatprep.subr.bf16.mxu0 0
        %3487 = vmatpush1.bf16.msra.mxu0 %v3318
        %3488 = vmatprep.subr.bf16.mxu0 0
        %3489 = vmatpush1.bf16.msra.mxu0 0
        %3490 = vmatprep.subr.bf16.mxu0 0
        %3491 = vmatpush1.bf16.msra.mxu0 0
        %3492 = vmatprep.subr.bf16.mxu0 0
        %3493 = vmatpush1.bf16.msra.mxu0 0
        %3494 = vmatprep.subr.bf16.mxu0 0
        %3495 = vmatpush1.bf16.msra.mxu0 0
        %3496 = vmatprep.subr.bf16.mxu0 0
        %3497 = vmatpush1.bf16.msra.mxu0 0
        %3498 = vmatprep.subr.bf16.mxu0 0
        %3499 = vmatpush1.bf16.msra.mxu0 0
        %3500 = vmatprep.subr.bf16.mxu0 0
        %3501 = vmatpush1.bf16.msra.mxu0 0
        %3502 = vmatprep.subr.bf16.mxu0 0
        %3503 = vmatpush1.bf16.msra.mxu0 0
        %3504 = vmatprep.subr.bf16.mxu0 0
        %3505 = vmatpush1.bf16.msra.mxu0 0
        %3506 = vmatprep.subr.bf16.mxu0 0
        %3507 = vmatpush1.bf16.msra.mxu0 0
        %3508 = vmatprep.subr.bf16.mxu0 0
        %3509 = vmatpush1.bf16.msra.mxu0 0
        %3510 = vmatprep.subr.bf16.mxu0 0
        %3511 = vmatpush1.bf16.msra.mxu0 0
        %3512 = vmatprep.mubr.bf16.mxu0 0
        %3513 = vmatmul.mubr.bf16.gmra.mrb[0].mxu0 %v3433
        %v3514 = vpop.f32.mrb[0].mxu0
        %v3515 = vadd.f32 0.0, %v3514
        %v3516 = vpop.f32.mrb[0].mxu0
        %v3517 = vpop.f32.mrb[0].mxu0
        %v3518 = vadd.f32 0.0, %v3517
        %v3519 = vpop.f32.mrb[0].mxu0
        %3520 = vmatprep.mubr.bf16.mxu0 0
        %3521 = vmatmul.mubr.bf16.gmra.mrb[0].mxu0 %v3436
        %v3522 = vpop.f32.mrb[0].mxu0
        %v3523 = vadd.f32 0.0, %v3522
        %v3524 = vpop.f32.mrb[0].mxu0
        %v3525 = vpop.f32.mrb[0].mxu0
        %v3526 = vadd.f32 0.0, %v3525
        %v3527 = vpop.f32.mrb[0].mxu0
        %3528 = vmatprep.mubr.bf16.mxu0 0
        %3529 = vmatmul.mubr.bf16.gmra.mrb[0].mxu0 %v3439
        %v3530 = vpop.f32.mrb[0].mxu0
        %v3531 = vadd.f32 0.0, %v3530
        %v3532 = vpop.f32.mrb[0].mxu0
        %v3533 = vpop.f32.mrb[0].mxu0
        %v3534 = vadd.f32 0.0, %v3533
        %v3535 = vpop.f32.mrb[0].mxu0
        %3536 = vmatprep.mubr.bf16.mxu0 0
        %3537 = vmatmul.mubr.bf16.gmra.mrb[0].mxu0 %v3442
        %v3538 = vpop.f32.mrb[0].mxu0
        %v3539 = vadd.f32 0.0, %v3538
        %v3540 = vpop.f32.mrb[0].mxu0
        %v3541 = vpop.f32.mrb[0].mxu0
        %v3542 = vadd.f32 0.0, %v3541
        %v3543 = vpop.f32.mrb[0].mxu0
        %3544 = vmatprep.mubr.bf16.mxu0 0
        %3545 = vmatmul.mubr.bf16.gmra.mrb[0].mxu0 %v3445
        %v3546 = vpop.f32.mrb[0].mxu0
        %v3547 = vadd.f32 0.0, %v3546
        %v3548 = vpop.f32.mrb[0].mxu0
        %v3549 = vpop.f32.mrb[0].mxu0
        %v3550 = vadd.f32 0.0, %v3549
        %v3551 = vpop.f32.mrb[0].mxu0
        %3552 = vmatprep.mubr.bf16.mxu0 0
        %3553 = vmatmul.mubr.bf16.gmra.mrb[0].mxu0 %v3448
        %v3554 = vpop.f32.mrb[0].mxu0
        %v3555 = vadd.f32 0.0, %v3554
        %v3556 = vpop.f32.mrb[0].mxu0
        %v3557 = vpop.f32.mrb[0].mxu0
        %v3558 = vadd.f32 0.0, %v3557
        %v3559 = vpop.f32.mrb[0].mxu0
        %3560 = vmatprep.mubr.bf16.mxu0 0
        %3561 = vmatmul.mubr.bf16.gmra.mrb[0].mxu0 %v3451
        %v3562 = vpop.f32.mrb[0].mxu0
        %v3563 = vadd.f32 0.0, %v3562
        %v3564 = vpop.f32.mrb[0].mxu0
        %v3565 = vpop.f32.mrb[0].mxu0
        %v3566 = vadd.f32 0.0, %v3565
        %v3567 = vpop.f32.mrb[0].mxu0
        %3568 = vmatprep.mubr.bf16.mxu0 0
        %3569 = vmatmul.mubr.bf16.gmra.mrb[0].mxu0 %v3454
        %v3570 = vpop.f32.mrb[0].mxu0
        %v3571 = vadd.f32 0.0, %v3570
        %v3572 = vpop.f32.mrb[0].mxu0
        %v3573 = vpop.f32.mrb[0].mxu0
        %v3574 = vadd.f32 0.0, %v3573
        %v3575 = vpop.f32.mrb[0].mxu0
        %3576 = vmatprep.mubr.bf16.mxu0 0
        %3577 = vmatmul.mubr.bf16.gmra.mrb[0].mxu0 %v3457
        %v3578 = vpop.f32.mrb[0].mxu0
        %v3579 = vadd.f32 0.0, %v3578
        %v3580 = vpop.f32.mrb[0].mxu0
        %v3581 = vpop.f32.mrb[0].mxu0
        %v3582 = vadd.f32 0.0, %v3581
        %v3583 = vpop.f32.mrb[0].mxu0
        %3584 = vmatprep.mubr.bf16.mxu0 0
        %3585 = vmatmul.mubr.bf16.gmra.mrb[0].mxu0 %v3460
        %v3586 = vpop.f32.mrb[0].mxu0
        %v3587 = vadd.f32 0.0, %v3586
        %v3588 = vpop.f32.mrb[0].mxu0
        %v3589 = vpop.f32.mrb[0].mxu0
        %v3590 = vadd.f32 0.0, %v3589
        %v3591 = vpop.f32.mrb[0].mxu0
        %3592 = vmatprep.mubr.bf16.mxu0 0
        %3593 = vmatmul.mubr.bf16.gmra.mrb[0].mxu0 %v3463
        %v3594 = vpop.f32.mrb[0].mxu0
        %v3595 = vadd.f32 0.0, %v3594
        %v3596 = vpop.f32.mrb[0].mxu0
        %v3597 = vpop.f32.mrb[0].mxu0
        %v3598 = vadd.f32 0.0, %v3597
        %v3599 = vpop.f32.mrb[0].mxu0
        %3600 = vmatprep.mubr.bf16.mxu0 0
        %3601 = vmatmul.mubr.bf16.gmra.mrb[0].mxu0 %v3466
        %v3602 = vpop.f32.mrb[0].mxu0
        %v3603 = vadd.f32 0.0, %v3602
        %v3604 = vpop.f32.mrb[0].mxu0
        %v3605 = vpop.f32.mrb[0].mxu0
        %v3606 = vadd.f32 0.0, %v3605
        %v3607 = vpop.f32.mrb[0].mxu0
        %3608 = vmatprep.mubr.bf16.mxu0 0
        %3609 = vmatmul.mubr.bf16.gmra.mrb[0].mxu0 %v3469
        %v3610 = vpop.f32.mrb[0].mxu0
        %v3611 = vadd.f32 0.0, %v3610
        %v3612 = vpop.f32.mrb[0].mxu0
        %v3613 = vpop.f32.mrb[0].mxu0
        %v3614 = vadd.f32 0.0, %v3613
        %v3615 = vpop.f32.mrb[0].mxu0
        %3616 = vmatprep.mubr.bf16.mxu0 0
        %3617 = vmatmul.mubr.bf16.gmra.mrb[0].mxu0 %v3472
        %v3618 = vpop.f32.mrb[0].mxu0
        %v3619 = vadd.f32 0.0, %v3618
        %v3620 = vpop.f32.mrb[0].mxu0
        %v3621 = vpop.f32.mrb[0].mxu0
        %v3622 = vadd.f32 0.0, %v3621
        %v3623 = vpop.f32.mrb[0].mxu0
        %3624 = vmatprep.mubr.bf16.mxu0 0
        %3625 = vmatmul.mubr.bf16.gmra.mrb[0].mxu0 %v3475
        %v3626 = vpop.f32.mrb[0].mxu0
        %v3627 = vadd.f32 0.0, %v3626
        %v3628 = vpop.f32.mrb[0].mxu0
        %v3629 = vpop.f32.mrb[0].mxu0
        %v3630 = vadd.f32 0.0, %v3629
        %v3631 = vpop.f32.mrb[0].mxu0
        %3632 = vmatprep.mubr.bf16.mxu0 0
        %3633 = vmatmul.mubr.bf16.gmra.mrb[0].mxu0 %v3478
        %v3634 = vpop.f32.mrb[0].mxu0
        %v3635 = vadd.f32 0.0, %v3634
        %v3636 = vpop.f32.mrb[0].mxu0
        %v3637 = vpop.f32.mrb[0].mxu0
        %v3638 = vadd.f32 0.0, %v3637
        %v3639 = vpop.f32.mrb[0].mxu0
        %3640 = vdwg.mxu0
        %v3641 = vpack.c.bf16 %v3518, %v3515
        %v3642 = vpack.c.bf16 %v3526, %v3523
        %v3643 = vpack.c.bf16 %v3534, %v3531
        %v3644 = vpack.c.bf16 %v3542, %v3539
        %v3645 = vpack.c.bf16 %v3550, %v3547
        %v3646 = vpack.c.bf16 %v3558, %v3555
        %v3647 = vpack.c.bf16 %v3566, %v3563
        %v3648 = vpack.c.bf16 %v3574, %v3571
        %v3649 = vpack.c.bf16 %v3582, %v3579
        %v3650 = vpack.c.bf16 %v3590, %v3587
        %v3651 = vpack.c.bf16 %v3598, %v3595
        %v3652 = vpack.c.bf16 %v3606, %v3603
        %v3653 = vpack.c.bf16 %v3614, %v3611
        %v3654 = vpack.c.bf16 %v3622, %v3619
        %v3655 = vpack.c.bf16 %v3630, %v3627
        %v3656 = vpack.c.bf16 %v3638, %v3635
        %v3657 = vld [vmem:[%s5] sm:$0xf]
        %v3658 = vld [vmem:[%s5 + $0x4] sm:$0xf]
        %v3659 = vld [vmem:[%s5 + $0x8] sm:$0xf]
        %v3660 = vld [vmem:[%s5 + $0xc] sm:$0xf]
        %s3661 = scalar_lea.vmem %s5, 16
        %v3662 = vld [vmem:[%s3661] sm:$0xf]
        %v3663 = vld [vmem:[%s3661 + $0x4] sm:$0xf]
        %v3664 = vld [vmem:[%s3661 + $0x8] sm:$0xf]
        %v3665 = vld [vmem:[%s3661 + $0xc] sm:$0xf]
        %v3670 = vunpack.c.l.b16 %v3662
        %v3671 = vunpack.c.l.b16 %v3663
        %v3672 = vunpack.c.l.b16 %v3664
        %v3673 = vunpack.c.l.b16 %v3665
        %v3674 = vpack.c.b16 %v3671, %v3670
        %v3675 = vpack.c.b16 %v3673, %v3672
        %vm3678 = vcmask 261120
        %v3680 = vsel %vm3678, %v3642, 0
        %3682 = vmatprep.subr.bf16.mxu0 0
        %3683 = vmatpush1.bf16.msra.mxu0 %v3674
        %3684 = vmatprep.subr.bf16.mxu0 0
        %3685 = vmatpush1.bf16.msra.mxu0 %v3675
        %3686 = vmatprep.subr.bf16.mxu0 0
        %3687 = vmatpush1.bf16.msra.mxu0 0
        %3688 = vmatprep.subr.bf16.mxu0 0
        %3689 = vmatpush1.bf16.msra.mxu0 0
        %3690 = vmatprep.subr.bf16.mxu0 0
        %3691 = vmatpush1.bf16.msra.mxu0 0
        %3692 = vmatprep.subr.bf16.mxu0 0
        %3693 = vmatpush1.bf16.msra.mxu0 0
        %3694 = vmatprep.subr.bf16.mxu0 0
        %3695 = vmatpush1.bf16.msra.mxu0 0
        %3696 = vmatprep.subr.bf16.mxu0 0
        %3697 = vmatpush1.bf16.msra.mxu0 0
        %3698 = vmatprep.subr.bf16.mxu0 0
        %3699 = vmatpush1.bf16.msra.mxu0 0
        %3700 = vmatprep.subr.bf16.mxu0 0
        %3701 = vmatpush1.bf16.msra.mxu0 0
        %3702 = vmatprep.subr.bf16.mxu0 0
        %3703 = vmatpush1.bf16.msra.mxu0 0
        %3704 = vmatprep.subr.bf16.mxu0 0
        %3705 = vmatpush1.bf16.msra.mxu0 0
        %3706 = vmatprep.subr.bf16.mxu0 0
        %3707 = vmatpush1.bf16.msra.mxu0 0
        %3708 = vmatprep.subr.bf16.mxu0 0
        %3709 = vmatpush1.bf16.msra.mxu0 0
        %3710 = vmatprep.subr.bf16.mxu0 0
        %3711 = vmatpush1.bf16.msra.mxu0 0
        %3712 = vmatprep.subr.bf16.mxu0 0
        %3713 = vmatpush1.bf16.msra.mxu0 0
        %3714 = vmatprep.mubr.bf16.mxu0 0
        %3715 = vmatmul.mubr.bf16.gmra.mrb[0].mxu0 %v3680
        %v3716 = vpop.f32.mrb[0].mxu0
        %v3717 = vadd.f32 0.0, %v3716
        %v3718 = vpop.f32.mrb[0].mxu0
        %v3719 = vpop.f32.mrb[0].mxu0
        %v3720 = vadd.f32 0.0, %v3719
        %v3721 = vpop.f32.mrb[0].mxu0
        %3722 = vdwg.mxu0
        %v3727 = vunpack.c.l.b16 %v3657
        %v3728 = vunpack.c.l.b16 %v3658
        %v3729 = vunpack.c.l.b16 %v3659
        %v3730 = vunpack.c.l.b16 %v3660
        %v3731 = vpack.c.b16 %v3728, %v3727
        %v3732 = vpack.c.b16 %v3730, %v3729
        %v3736 = vsel %vm3678, %v3641, 0
        %3738 = vmatprep.subr.bf16.mxu0 0
        %3739 = vmatpush1.bf16.msra.mxu0 %v3731
        %3740 = vmatprep.subr.bf16.mxu0 0
        %3741 = vmatpush1.bf16.msra.mxu0 %v3732
        %3742 = vmatprep.subr.bf16.mxu0 0
        %3743 = vmatpush1.bf16.msra.mxu0 0
        %3744 = vmatprep.subr.bf16.mxu0 0
        %3745 = vmatpush1.bf16.msra.mxu0 0
        %3746 = vmatprep.subr.bf16.mxu0 0
        %3747 = vmatpush1.bf16.msra.mxu0 0
        %3748 = vmatprep.subr.bf16.mxu0 0
        %3749 = vmatpush1.bf16.msra.mxu0 0
        %3750 = vmatprep.subr.bf16.mxu0 0
        %3751 = vmatpush1.bf16.msra.mxu0 0
        %3752 = vmatprep.subr.bf16.mxu0 0
        %3753 = vmatpush1.bf16.msra.mxu0 0
        %3754 = vmatprep.subr.bf16.mxu0 0
        %3755 = vmatpush1.bf16.msra.mxu0 0
        %3756 = vmatprep.subr.bf16.mxu0 0
        %3757 = vmatpush1.bf16.msra.mxu0 0
        %3758 = vmatprep.subr.bf16.mxu0 0
        %3759 = vmatpush1.bf16.msra.mxu0 0
        %3760 = vmatprep.subr.bf16.mxu0 0
        %3761 = vmatpush1.bf16.msra.mxu0 0
        %3762 = vmatprep.subr.bf16.mxu0 0
        %3763 = vmatpush1.bf16.msra.mxu0 0
        %3764 = vmatprep.subr.bf16.mxu0 0
        %3765 = vmatpush1.bf16.msra.mxu0 0
        %3766 = vmatprep.subr.bf16.mxu0 0
        %3767 = vmatpush1.bf16.msra.mxu0 0
        %3768 = vmatprep.subr.bf16.mxu0 0
        %3769 = vmatpush1.bf16.msra.mxu0 0
        %3770 = vmatprep.mubr.bf16.mxu0 0
        %3771 = vmatmul.mubr.bf16.gmra.mrb[0].mxu0 %v3736
        %v3772 = vpop.f32.mrb[0].mxu0
        %v3773 = vadd.f32 %v3717, %v3772
        %v3774 = vpop.f32.mrb[0].mxu0
        %v3775 = vpop.f32.mrb[0].mxu0
        %v3776 = vadd.f32 %v3720, %v3775
        %v3777 = vpop.f32.mrb[0].mxu0
        %3778 = vdwg.mxu0
        %s3779 = scalar_lea.vmem %s5, 32
        %v3780 = vld [vmem:[%s3779] sm:$0xf]
        %v3781 = vld [vmem:[%s3779 + $0x4] sm:$0xf]
        %v3782 = vld [vmem:[%s3779 + $0x8] sm:$0xf]
        %v3783 = vld [vmem:[%s3779 + $0xc] sm:$0xf]
        %v3788 = vunpack.c.l.b16 %v3780
        %v3789 = vunpack.c.l.b16 %v3781
        %v3790 = vunpack.c.l.b16 %v3782
        %v3791 = vunpack.c.l.b16 %v3783
        %v3792 = vpack.c.b16 %v3789, %v3788
        %v3793 = vpack.c.b16 %v3791, %v3790
        %v3797 = vsel %vm3678, %v3643, 0
        %3799 = vmatprep.subr.bf16.mxu0 0
        %3800 = vmatpush1.bf16.msra.mxu0 %v3792
        %3801 = vmatprep.subr.bf16.mxu0 0
        %3802 = vmatpush1.bf16.msra.mxu0 %v3793
        %3803 = vmatprep.subr.bf16.mxu0 0
        %3804 = vmatpush1.bf16.msra.mxu0 0
        %3805 = vmatprep.subr.bf16.mxu0 0
        %3806 = vmatpush1.bf16.msra.mxu0 0
        %3807 = vmatprep.subr.bf16.mxu0 0
        %3808 = vmatpush1.bf16.msra.mxu0 0
        %3809 = vmatprep.subr.bf16.mxu0 0
        %3810 = vmatpush1.bf16.msra.mxu0 0
        %3811 = vmatprep.subr.bf16.mxu0 0
        %3812 = vmatpush1.bf16.msra.mxu0 0
        %3813 = vmatprep.subr.bf16.mxu0 0
        %3814 = vmatpush1.bf16.msra.mxu0 0
        %3815 = vmatprep.subr.bf16.mxu0 0
        %3816 = vmatpush1.bf16.msra.mxu0 0
        %3817 = vmatprep.subr.bf16.mxu0 0
        %3818 = vmatpush1.bf16.msra.mxu0 0
        %3819 = vmatprep.subr.bf16.mxu0 0
        %3820 = vmatpush1.bf16.msra.mxu0 0
        %3821 = vmatprep.subr.bf16.mxu0 0
        %3822 = vmatpush1.bf16.msra.mxu0 0
        %3823 = vmatprep.subr.bf16.mxu0 0
        %3824 = vmatpush1.bf16.msra.mxu0 0
        %3825 = vmatprep.subr.bf16.mxu0 0
        %3826 = vmatpush1.bf16.msra.mxu0 0
        %3827 = vmatprep.subr.bf16.mxu0 0
        %3828 = vmatpush1.bf16.msra.mxu0 0
        %3829 = vmatprep.subr.bf16.mxu0 0
        %3830 = vmatpush1.bf16.msra.mxu0 0
        %3831 = vmatprep.mubr.bf16.mxu0 0
        %3832 = vmatmul.mubr.bf16.gmra.mrb[0].mxu0 %v3797
        %v3833 = vpop.f32.mrb[0].mxu0
        %v3834 = vadd.f32 0.0, %v3833
        %v3835 = vpop.f32.mrb[0].mxu0
        %v3836 = vpop.f32.mrb[0].mxu0
        %v3837 = vadd.f32 0.0, %v3836
        %v3838 = vpop.f32.mrb[0].mxu0
        %3839 = vdwg.mxu0
        %v3840 = vadd.f32 %v3773, %v3834
        %v3841 = vadd.f32 %v3776, %v3837
        %s3842 = scalar_lea.vmem %s5, 48
        %v3843 = vld [vmem:[%s3842] sm:$0xf]
        %v3844 = vld [vmem:[%s3842 + $0x4] sm:$0xf]
        %v3845 = vld [vmem:[%s3842 + $0x8] sm:$0xf]
        %v3846 = vld [vmem:[%s3842 + $0xc] sm:$0xf]
        %v3851 = vunpack.c.l.b16 %v3843
        %v3852 = vunpack.c.l.b16 %v3844
        %v3853 = vunpack.c.l.b16 %v3845
        %v3854 = vunpack.c.l.b16 %v3846
        %v3855 = vpack.c.b16 %v3852, %v3851
        %v3856 = vpack.c.b16 %v3854, %v3853
        %v3860 = vsel %vm3678, %v3644, 0
        %3862 = vmatprep.subr.bf16.mxu0 0
        %3863 = vmatpush1.bf16.msra.mxu0 %v3855
        %3864 = vmatprep.subr.bf16.mxu0 0
        %3865 = vmatpush1.bf16.msra.mxu0 %v3856
        %3866 = vmatprep.subr.bf16.mxu0 0
        %3867 = vmatpush1.bf16.msra.mxu0 0
        %3868 = vmatprep.subr.bf16.mxu0 0
        %3869 = vmatpush1.bf16.msra.mxu0 0
        %3870 = vmatprep.subr.bf16.mxu0 0
        %3871 = vmatpush1.bf16.msra.mxu0 0
        %3872 = vmatprep.subr.bf16.mxu0 0
        %3873 = vmatpush1.bf16.msra.mxu0 0
        %3874 = vmatprep.subr.bf16.mxu0 0
        %3875 = vmatpush1.bf16.msra.mxu0 0
        %3876 = vmatprep.subr.bf16.mxu0 0
        %3877 = vmatpush1.bf16.msra.mxu0 0
        %3878 = vmatprep.subr.bf16.mxu0 0
        %3879 = vmatpush1.bf16.msra.mxu0 0
        %3880 = vmatprep.subr.bf16.mxu0 0
        %3881 = vmatpush1.bf16.msra.mxu0 0
        %3882 = vmatprep.subr.bf16.mxu0 0
        %3883 = vmatpush1.bf16.msra.mxu0 0
        %3884 = vmatprep.subr.bf16.mxu0 0
        %3885 = vmatpush1.bf16.msra.mxu0 0
        %3886 = vmatprep.subr.bf16.mxu0 0
        %3887 = vmatpush1.bf16.msra.mxu0 0
        %3888 = vmatprep.subr.bf16.mxu0 0
        %3889 = vmatpush1.bf16.msra.mxu0 0
        %3890 = vmatprep.subr.bf16.mxu0 0
        %3891 = vmatpush1.bf16.msra.mxu0 0
        %3892 = vmatprep.subr.bf16.mxu0 0
        %3893 = vmatpush1.bf16.msra.mxu0 0
        %3894 = vmatprep.mubr.bf16.mxu0 0
        %3895 = vmatmul.mubr.bf16.gmra.mrb[0].mxu0 %v3860
        %v3896 = vpop.f32.mrb[0].mxu0
        %v3897 = vadd.f32 0.0, %v3896
        %v3898 = vpop.f32.mrb[0].mxu0
        %v3899 = vpop.f32.mrb[0].mxu0
        %v3900 = vadd.f32 0.0, %v3899
        %v3901 = vpop.f32.mrb[0].mxu0
        %3902 = vdwg.mxu0
        %v3903 = vadd.f32 %v3840, %v3897
        %v3904 = vadd.f32 %v3841, %v3900
        %s3905 = scalar_lea.vmem %s5, 64
        %v3906 = vld [vmem:[%s3905] sm:$0xf]
        %v3907 = vld [vmem:[%s3905 + $0x4] sm:$0xf]
        %v3908 = vld [vmem:[%s3905 + $0x8] sm:$0xf]
        %v3909 = vld [vmem:[%s3905 + $0xc] sm:$0xf]
        %v3914 = vunpack.c.l.b16 %v3906
        %v3915 = vunpack.c.l.b16 %v3907
        %v3916 = vunpack.c.l.b16 %v3908
        %v3917 = vunpack.c.l.b16 %v3909
        %v3918 = vpack.c.b16 %v3915, %v3914
        %v3919 = vpack.c.b16 %v3917, %v3916
        %v3923 = vsel %vm3678, %v3645, 0
        %3925 = vmatprep.subr.bf16.mxu0 0
        %3926 = vmatpush1.bf16.msra.mxu0 %v3918
        %3927 = vmatprep.subr.bf16.mxu0 0
        %3928 = vmatpush1.bf16.msra.mxu0 %v3919
        %3929 = vmatprep.subr.bf16.mxu0 0
        %3930 = vmatpush1.bf16.msra.mxu0 0
        %3931 = vmatprep.subr.bf16.mxu0 0
        %3932 = vmatpush1.bf16.msra.mxu0 0
        %3933 = vmatprep.subr.bf16.mxu0 0
        %3934 = vmatpush1.bf16.msra.mxu0 0
        %3935 = vmatprep.subr.bf16.mxu0 0
        %3936 = vmatpush1.bf16.msra.mxu0 0
        %3937 = vmatprep.subr.bf16.mxu0 0
        %3938 = vmatpush1.bf16.msra.mxu0 0
        %3939 = vmatprep.subr.bf16.mxu0 0
        %3940 = vmatpush1.bf16.msra.mxu0 0
        %3941 = vmatprep.subr.bf16.mxu0 0
        %3942 = vmatpush1.bf16.msra.mxu0 0
        %3943 = vmatprep.subr.bf16.mxu0 0
        %3944 = vmatpush1.bf16.msra.mxu0 0
        %3945 = vmatprep.subr.bf16.mxu0 0
        %3946 = vmatpush1.bf16.msra.mxu0 0
        %3947 = vmatprep.subr.bf16.mxu0 0
        %3948 = vmatpush1.bf16.msra.mxu0 0
        %3949 = vmatprep.subr.bf16.mxu0 0
        %3950 = vmatpush1.bf16.msra.mxu0 0
        %3951 = vmatprep.subr.bf16.mxu0 0
        %3952 = vmatpush1.bf16.msra.mxu0 0
        %3953 = vmatprep.subr.bf16.mxu0 0
        %3954 = vmatpush1.bf16.msra.mxu0 0
        %3955 = vmatprep.subr.bf16.mxu0 0
        %3956 = vmatpush1.bf16.msra.mxu0 0
        %3957 = vmatprep.mubr.bf16.mxu0 0
        %3958 = vmatmul.mubr.bf16.gmra.mrb[0].mxu0 %v3923
        %v3959 = vpop.f32.mrb[0].mxu0
        %v3960 = vadd.f32 0.0, %v3959
        %v3961 = vpop.f32.mrb[0].mxu0
        %v3962 = vpop.f32.mrb[0].mxu0
        %v3963 = vadd.f32 0.0, %v3962
        %v3964 = vpop.f32.mrb[0].mxu0
        %3965 = vdwg.mxu0
        %v3966 = vadd.f32 %v3903, %v3960
        %v3967 = vadd.f32 %v3904, %v3963
        %s3968 = scalar_lea.vmem %s5, 80
        %v3969 = vld [vmem:[%s3968] sm:$0xf]
        %v3970 = vld [vmem:[%s3968 + $0x4] sm:$0xf]
        %v3971 = vld [vmem:[%s3968 + $0x8] sm:$0xf]
        %v3972 = vld [vmem:[%s3968 + $0xc] sm:$0xf]
        %v3977 = vunpack.c.l.b16 %v3969
        %v3978 = vunpack.c.l.b16 %v3970
        %v3979 = vunpack.c.l.b16 %v3971
        %v3980 = vunpack.c.l.b16 %v3972
        %v3981 = vpack.c.b16 %v3978, %v3977
        %v3982 = vpack.c.b16 %v3980, %v3979
        %v3986 = vsel %vm3678, %v3646, 0
        %3988 = vmatprep.subr.bf16.mxu0 0
        %3989 = vmatpush1.bf16.msra.mxu0 %v3981
        %3990 = vmatprep.subr.bf16.mxu0 0
        %3991 = vmatpush1.bf16.msra.mxu0 %v3982
        %3992 = vmatprep.subr.bf16.mxu0 0
        %3993 = vmatpush1.bf16.msra.mxu0 0
        %3994 = vmatprep.subr.bf16.mxu0 0
        %3995 = vmatpush1.bf16.msra.mxu0 0
        %3996 = vmatprep.subr.bf16.mxu0 0
        %3997 = vmatpush1.bf16.msra.mxu0 0
        %3998 = vmatprep.subr.bf16.mxu0 0
        %3999 = vmatpush1.bf16.msra.mxu0 0
        %4000 = vmatprep.subr.bf16.mxu0 0
        %4001 = vmatpush1.bf16.msra.mxu0 0
        %4002 = vmatprep.subr.bf16.mxu0 0
        %4003 = vmatpush1.bf16.msra.mxu0 0
        %4004 = vmatprep.subr.bf16.mxu0 0
        %4005 = vmatpush1.bf16.msra.mxu0 0
        %4006 = vmatprep.subr.bf16.mxu0 0
        %4007 = vmatpush1.bf16.msra.mxu0 0
        %4008 = vmatprep.subr.bf16.mxu0 0
        %4009 = vmatpush1.bf16.msra.mxu0 0
        %4010 = vmatprep.subr.bf16.mxu0 0
        %4011 = vmatpush1.bf16.msra.mxu0 0
        %4012 = vmatprep.subr.bf16.mxu0 0
        %4013 = vmatpush1.bf16.msra.mxu0 0
        %4014 = vmatprep.subr.bf16.mxu0 0
        %4015 = vmatpush1.bf16.msra.mxu0 0
        %4016 = vmatprep.subr.bf16.mxu0 0
        %4017 = vmatpush1.bf16.msra.mxu0 0
        %4018 = vmatprep.subr.bf16.mxu0 0
        %4019 = vmatpush1.bf16.msra.mxu0 0
        %4020 = vmatprep.mubr.bf16.mxu0 0
        %4021 = vmatmul.mubr.bf16.gmra.mrb[0].mxu0 %v3986
        %v4022 = vpop.f32.mrb[0].mxu0
        %v4023 = vadd.f32 0.0, %v4022
        %v4024 = vpop.f32.mrb[0].mxu0
        %v4025 = vpop.f32.mrb[0].mxu0
        %v4026 = vadd.f32 0.0, %v4025
        %v4027 = vpop.f32.mrb[0].mxu0
        %4028 = vdwg.mxu0
        %v4029 = vadd.f32 %v3966, %v4023
        %v4030 = vadd.f32 %v3967, %v4026
        %s4031 = scalar_lea.vmem %s5, 96
        %v4032 = vld [vmem:[%s4031] sm:$0xf]
        %v4033 = vld [vmem:[%s4031 + $0x4] sm:$0xf]
        %v4034 = vld [vmem:[%s4031 + $0x8] sm:$0xf]
        %v4035 = vld [vmem:[%s4031 + $0xc] sm:$0xf]
        %v4040 = vunpack.c.l.b16 %v4032
        %v4041 = vunpack.c.l.b16 %v4033
        %v4042 = vunpack.c.l.b16 %v4034
        %v4043 = vunpack.c.l.b16 %v4035
        %v4044 = vpack.c.b16 %v4041, %v4040
        %v4045 = vpack.c.b16 %v4043, %v4042
        %v4049 = vsel %vm3678, %v3647, 0
        %4051 = vmatprep.subr.bf16.mxu0 0
        %4052 = vmatpush1.bf16.msra.mxu0 %v4044
        %4053 = vmatprep.subr.bf16.mxu0 0
        %4054 = vmatpush1.bf16.msra.mxu0 %v4045
        %4055 = vmatprep.subr.bf16.mxu0 0
        %4056 = vmatpush1.bf16.msra.mxu0 0
        %4057 = vmatprep.subr.bf16.mxu0 0
        %4058 = vmatpush1.bf16.msra.mxu0 0
        %4059 = vmatprep.subr.bf16.mxu0 0
        %4060 = vmatpush1.bf16.msra.mxu0 0
        %4061 = vmatprep.subr.bf16.mxu0 0
        %4062 = vmatpush1.bf16.msra.mxu0 0
        %4063 = vmatprep.subr.bf16.mxu0 0
        %4064 = vmatpush1.bf16.msra.mxu0 0
        %4065 = vmatprep.subr.bf16.mxu0 0
        %4066 = vmatpush1.bf16.msra.mxu0 0
        %4067 = vmatprep.subr.bf16.mxu0 0
        %4068 = vmatpush1.bf16.msra.mxu0 0
        %4069 = vmatprep.subr.bf16.mxu0 0
        %4070 = vmatpush1.bf16.msra.mxu0 0
        %4071 = vmatprep.subr.bf16.mxu0 0
        %4072 = vmatpush1.bf16.msra.mxu0 0
        %4073 = vmatprep.subr.bf16.mxu0 0
        %4074 = vmatpush1.bf16.msra.mxu0 0
        %4075 = vmatprep.subr.bf16.mxu0 0
        %4076 = vmatpush1.bf16.msra.mxu0 0
        %4077 = vmatprep.subr.bf16.mxu0 0
        %4078 = vmatpush1.bf16.msra.mxu0 0
        %4079 = vmatprep.subr.bf16.mxu0 0
        %4080 = vmatpush1.bf16.msra.mxu0 0
        %4081 = vmatprep.subr.bf16.mxu0 0
        %4082 = vmatpush1.bf16.msra.mxu0 0
        %4083 = vmatprep.mubr.bf16.mxu0 0
        %4084 = vmatmul.mubr.bf16.gmra.mrb[0].mxu0 %v4049
        %v4085 = vpop.f32.mrb[0].mxu0
        %v4086 = vadd.f32 0.0, %v4085
        %v4087 = vpop.f32.mrb[0].mxu0
        %v4088 = vpop.f32.mrb[0].mxu0
        %v4089 = vadd.f32 0.0, %v4088
        %v4090 = vpop.f32.mrb[0].mxu0
        %4091 = vdwg.mxu0
        %v4092 = vadd.f32 %v4029, %v4086
        %v4093 = vadd.f32 %v4030, %v4089
        %s4094 = scalar_lea.vmem %s5, 112
        %v4095 = vld [vmem:[%s4094] sm:$0xf]
        %v4096 = vld [vmem:[%s4094 + $0x4] sm:$0xf]
        %v4097 = vld [vmem:[%s4094 + $0x8] sm:$0xf]
        %v4098 = vld [vmem:[%s4094 + $0xc] sm:$0xf]
        %v4103 = vunpack.c.l.b16 %v4095
        %v4104 = vunpack.c.l.b16 %v4096
        %v4105 = vunpack.c.l.b16 %v4097
        %v4106 = vunpack.c.l.b16 %v4098
        %v4107 = vpack.c.b16 %v4104, %v4103
        %v4108 = vpack.c.b16 %v4106, %v4105
        %v4112 = vsel %vm3678, %v3648, 0
        %4114 = vmatprep.subr.bf16.mxu0 0
        %4115 = vmatpush1.bf16.msra.mxu0 %v4107
        %4116 = vmatprep.subr.bf16.mxu0 0
        %4117 = vmatpush1.bf16.msra.mxu0 %v4108
        %4118 = vmatprep.subr.bf16.mxu0 0
        %4119 = vmatpush1.bf16.msra.mxu0 0
        %4120 = vmatprep.subr.bf16.mxu0 0
        %4121 = vmatpush1.bf16.msra.mxu0 0
        %4122 = vmatprep.subr.bf16.mxu0 0
        %4123 = vmatpush1.bf16.msra.mxu0 0
        %4124 = vmatprep.subr.bf16.mxu0 0
        %4125 = vmatpush1.bf16.msra.mxu0 0
        %4126 = vmatprep.subr.bf16.mxu0 0
        %4127 = vmatpush1.bf16.msra.mxu0 0
        %4128 = vmatprep.subr.bf16.mxu0 0
        %4129 = vmatpush1.bf16.msra.mxu0 0
        %4130 = vmatprep.subr.bf16.mxu0 0
        %4131 = vmatpush1.bf16.msra.mxu0 0
        %4132 = vmatprep.subr.bf16.mxu0 0
        %4133 = vmatpush1.bf16.msra.mxu0 0
        %4134 = vmatprep.subr.bf16.mxu0 0
        %4135 = vmatpush1.bf16.msra.mxu0 0
        %4136 = vmatprep.subr.bf16.mxu0 0
        %4137 = vmatpush1.bf16.msra.mxu0 0
        %4138 = vmatprep.subr.bf16.mxu0 0
        %4139 = vmatpush1.bf16.msra.mxu0 0
        %4140 = vmatprep.subr.bf16.mxu0 0
        %4141 = vmatpush1.bf16.msra.mxu0 0
        %4142 = vmatprep.subr.bf16.mxu0 0
        %4143 = vmatpush1.bf16.msra.mxu0 0
        %4144 = vmatprep.subr.bf16.mxu0 0
        %4145 = vmatpush1.bf16.msra.mxu0 0
        %4146 = vmatprep.mubr.bf16.mxu0 0
        %4147 = vmatmul.mubr.bf16.gmra.mrb[0].mxu0 %v4112
        %v4148 = vpop.f32.mrb[0].mxu0
        %v4149 = vadd.f32 0.0, %v4148
        %v4150 = vpop.f32.mrb[0].mxu0
        %v4151 = vpop.f32.mrb[0].mxu0
        %v4152 = vadd.f32 0.0, %v4151
        %v4153 = vpop.f32.mrb[0].mxu0
        %4154 = vdwg.mxu0
        %v4155 = vadd.f32 %v4092, %v4149
        %v4156 = vadd.f32 %v4093, %v4152
        %s4157 = scalar_lea.vmem %s5, 128
        %v4158 = vld [vmem:[%s4157] sm:$0xf]
        %v4159 = vld [vmem:[%s4157 + $0x4] sm:$0xf]
        %v4160 = vld [vmem:[%s4157 + $0x8] sm:$0xf]
        %v4161 = vld [vmem:[%s4157 + $0xc] sm:$0xf]
        %v4166 = vunpack.c.l.b16 %v4158
        %v4167 = vunpack.c.l.b16 %v4159
        %v4168 = vunpack.c.l.b16 %v4160
        %v4169 = vunpack.c.l.b16 %v4161
        %v4170 = vpack.c.b16 %v4167, %v4166
        %v4171 = vpack.c.b16 %v4169, %v4168
        %v4175 = vsel %vm3678, %v3649, 0
        %4177 = vmatprep.subr.bf16.mxu0 0
        %4178 = vmatpush1.bf16.msra.mxu0 %v4170
        %4179 = vmatprep.subr.bf16.mxu0 0
        %4180 = vmatpush1.bf16.msra.mxu0 %v4171
        %4181 = vmatprep.subr.bf16.mxu0 0
        %4182 = vmatpush1.bf16.msra.mxu0 0
        %4183 = vmatprep.subr.bf16.mxu0 0
        %4184 = vmatpush1.bf16.msra.mxu0 0
        %4185 = vmatprep.subr.bf16.mxu0 0
        %4186 = vmatpush1.bf16.msra.mxu0 0
        %4187 = vmatprep.subr.bf16.mxu0 0
        %4188 = vmatpush1.bf16.msra.mxu0 0
        %4189 = vmatprep.subr.bf16.mxu0 0
        %4190 = vmatpush1.bf16.msra.mxu0 0
        %4191 = vmatprep.subr.bf16.mxu0 0
        %4192 = vmatpush1.bf16.msra.mxu0 0
        %4193 = vmatprep.subr.bf16.mxu0 0
        %4194 = vmatpush1.bf16.msra.mxu0 0
        %4195 = vmatprep.subr.bf16.mxu0 0
        %4196 = vmatpush1.bf16.msra.mxu0 0
        %4197 = vmatprep.subr.bf16.mxu0 0
        %4198 = vmatpush1.bf16.msra.mxu0 0
        %4199 = vmatprep.subr.bf16.mxu0 0
        %4200 = vmatpush1.bf16.msra.mxu0 0
        %4201 = vmatprep.subr.bf16.mxu0 0
        %4202 = vmatpush1.bf16.msra.mxu0 0
        %4203 = vmatprep.subr.bf16.mxu0 0
        %4204 = vmatpush1.bf16.msra.mxu0 0
        %4205 = vmatprep.subr.bf16.mxu0 0
        %4206 = vmatpush1.bf16.msra.mxu0 0
        %4207 = vmatprep.subr.bf16.mxu0 0
        %4208 = vmatpush1.bf16.msra.mxu0 0
        %4209 = vmatprep.mubr.bf16.mxu0 0
        %4210 = vmatmul.mubr.bf16.gmra.mrb[0].mxu0 %v4175
        %v4211 = vpop.f32.mrb[0].mxu0
        %v4212 = vadd.f32 0.0, %v4211
        %v4213 = vpop.f32.mrb[0].mxu0
        %v4214 = vpop.f32.mrb[0].mxu0
        %v4215 = vadd.f32 0.0, %v4214
        %v4216 = vpop.f32.mrb[0].mxu0
        %4217 = vdwg.mxu0
        %v4218 = vadd.f32 %v4155, %v4212
        %v4219 = vadd.f32 %v4156, %v4215
        %s4220 = scalar_lea.vmem %s5, 144
        %v4221 = vld [vmem:[%s4220] sm:$0xf]
        %v4222 = vld [vmem:[%s4220 + $0x4] sm:$0xf]
        %v4223 = vld [vmem:[%s4220 + $0x8] sm:$0xf]
        %v4224 = vld [vmem:[%s4220 + $0xc] sm:$0xf]
        %v4229 = vunpack.c.l.b16 %v4221
        %v4230 = vunpack.c.l.b16 %v4222
        %v4231 = vunpack.c.l.b16 %v4223
        %v4232 = vunpack.c.l.b16 %v4224
        %v4233 = vpack.c.b16 %v4230, %v4229
        %v4234 = vpack.c.b16 %v4232, %v4231
        %v4238 = vsel %vm3678, %v3650, 0
        %4240 = vmatprep.subr.bf16.mxu0 0
        %4241 = vmatpush1.bf16.msra.mxu0 %v4233
        %4242 = vmatprep.subr.bf16.mxu0 0
        %4243 = vmatpush1.bf16.msra.mxu0 %v4234
        %4244 = vmatprep.subr.bf16.mxu0 0
        %4245 = vmatpush1.bf16.msra.mxu0 0
        %4246 = vmatprep.subr.bf16.mxu0 0
        %4247 = vmatpush1.bf16.msra.mxu0 0
        %4248 = vmatprep.subr.bf16.mxu0 0
        %4249 = vmatpush1.bf16.msra.mxu0 0
        %4250 = vmatprep.subr.bf16.mxu0 0
        %4251 = vmatpush1.bf16.msra.mxu0 0
        %4252 = vmatprep.subr.bf16.mxu0 0
        %4253 = vmatpush1.bf16.msra.mxu0 0
        %4254 = vmatprep.subr.bf16.mxu0 0
        %4255 = vmatpush1.bf16.msra.mxu0 0
        %4256 = vmatprep.subr.bf16.mxu0 0
        %4257 = vmatpush1.bf16.msra.mxu0 0
        %4258 = vmatprep.subr.bf16.mxu0 0
        %4259 = vmatpush1.bf16.msra.mxu0 0
        %4260 = vmatprep.subr.bf16.mxu0 0
        %4261 = vmatpush1.bf16.msra.mxu0 0
        %4262 = vmatprep.subr.bf16.mxu0 0
        %4263 = vmatpush1.bf16.msra.mxu0 0
        %4264 = vmatprep.subr.bf16.mxu0 0
        %4265 = vmatpush1.bf16.msra.mxu0 0
        %4266 = vmatprep.subr.bf16.mxu0 0
        %4267 = vmatpush1.bf16.msra.mxu0 0
        %4268 = vmatprep.subr.bf16.mxu0 0
        %4269 = vmatpush1.bf16.msra.mxu0 0
        %4270 = vmatprep.subr.bf16.mxu0 0
        %4271 = vmatpush1.bf16.msra.mxu0 0
        %4272 = vmatprep.mubr.bf16.mxu0 0
        %4273 = vmatmul.mubr.bf16.gmra.mrb[0].mxu0 %v4238
        %v4274 = vpop.f32.mrb[0].mxu0
        %v4275 = vadd.f32 0.0, %v4274
        %v4276 = vpop.f32.mrb[0].mxu0
        %v4277 = vpop.f32.mrb[0].mxu0
        %v4278 = vadd.f32 0.0, %v4277
        %v4279 = vpop.f32.mrb[0].mxu0
        %4280 = vdwg.mxu0
        %v4281 = vadd.f32 %v4218, %v4275
        %v4282 = vadd.f32 %v4219, %v4278
        %s4283 = scalar_lea.vmem %s5, 160
        %v4284 = vld [vmem:[%s4283] sm:$0xf]
        %v4285 = vld [vmem:[%s4283 + $0x4] sm:$0xf]
        %v4286 = vld [vmem:[%s4283 + $0x8] sm:$0xf]
        %v4287 = vld [vmem:[%s4283 + $0xc] sm:$0xf]
        %v4292 = vunpack.c.l.b16 %v4284
        %v4293 = vunpack.c.l.b16 %v4285
        %v4294 = vunpack.c.l.b16 %v4286
        %v4295 = vunpack.c.l.b16 %v4287
        %v4296 = vpack.c.b16 %v4293, %v4292
        %v4297 = vpack.c.b16 %v4295, %v4294
        %v4301 = vsel %vm3678, %v3651, 0
        %4303 = vmatprep.subr.bf16.mxu0 0
        %4304 = vmatpush1.bf16.msra.mxu0 %v4296
        %4305 = vmatprep.subr.bf16.mxu0 0
        %4306 = vmatpush1.bf16.msra.mxu0 %v4297
        %4307 = vmatprep.subr.bf16.mxu0 0
        %4308 = vmatpush1.bf16.msra.mxu0 0
        %4309 = vmatprep.subr.bf16.mxu0 0
        %4310 = vmatpush1.bf16.msra.mxu0 0
        %4311 = vmatprep.subr.bf16.mxu0 0
        %4312 = vmatpush1.bf16.msra.mxu0 0
        %4313 = vmatprep.subr.bf16.mxu0 0
        %4314 = vmatpush1.bf16.msra.mxu0 0
        %4315 = vmatprep.subr.bf16.mxu0 0
        %4316 = vmatpush1.bf16.msra.mxu0 0
        %4317 = vmatprep.subr.bf16.mxu0 0
        %4318 = vmatpush1.bf16.msra.mxu0 0
        %4319 = vmatprep.subr.bf16.mxu0 0
        %4320 = vmatpush1.bf16.msra.mxu0 0
        %4321 = vmatprep.subr.bf16.mxu0 0
        %4322 = vmatpush1.bf16.msra.mxu0 0
        %4323 = vmatprep.subr.bf16.mxu0 0
        %4324 = vmatpush1.bf16.msra.mxu0 0
        %4325 = vmatprep.subr.bf16.mxu0 0
        %4326 = vmatpush1.bf16.msra.mxu0 0
        %4327 = vmatprep.subr.bf16.mxu0 0
        %4328 = vmatpush1.bf16.msra.mxu0 0
        %4329 = vmatprep.subr.bf16.mxu0 0
        %4330 = vmatpush1.bf16.msra.mxu0 0
        %4331 = vmatprep.subr.bf16.mxu0 0
        %4332 = vmatpush1.bf16.msra.mxu0 0
        %4333 = vmatprep.subr.bf16.mxu0 0
        %4334 = vmatpush1.bf16.msra.mxu0 0
        %4335 = vmatprep.mubr.bf16.mxu0 0
        %4336 = vmatmul.mubr.bf16.gmra.mrb[0].mxu0 %v4301
        %v4337 = vpop.f32.mrb[0].mxu0
        %v4338 = vadd.f32 0.0, %v4337
        %v4339 = vpop.f32.mrb[0].mxu0
        %v4340 = vpop.f32.mrb[0].mxu0
        %v4341 = vadd.f32 0.0, %v4340
        %v4342 = vpop.f32.mrb[0].mxu0
        %4343 = vdwg.mxu0
        %v4344 = vadd.f32 %v4281, %v4338
        %v4345 = vadd.f32 %v4282, %v4341
        %s4346 = scalar_lea.vmem %s5, 176
        %v4347 = vld [vmem:[%s4346] sm:$0xf]
        %v4348 = vld [vmem:[%s4346 + $0x4] sm:$0xf]
        %v4349 = vld [vmem:[%s4346 + $0x8] sm:$0xf]
        %v4350 = vld [vmem:[%s4346 + $0xc] sm:$0xf]
        %v4355 = vunpack.c.l.b16 %v4347
        %v4356 = vunpack.c.l.b16 %v4348
        %v4357 = vunpack.c.l.b16 %v4349
        %v4358 = vunpack.c.l.b16 %v4350
        %v4359 = vpack.c.b16 %v4356, %v4355
        %v4360 = vpack.c.b16 %v4358, %v4357
        %v4364 = vsel %vm3678, %v3652, 0
        %4366 = vmatprep.subr.bf16.mxu0 0
        %4367 = vmatpush1.bf16.msra.mxu0 %v4359
        %4368 = vmatprep.subr.bf16.mxu0 0
        %4369 = vmatpush1.bf16.msra.mxu0 %v4360
        %4370 = vmatprep.subr.bf16.mxu0 0
        %4371 = vmatpush1.bf16.msra.mxu0 0
        %4372 = vmatprep.subr.bf16.mxu0 0
        %4373 = vmatpush1.bf16.msra.mxu0 0
        %4374 = vmatprep.subr.bf16.mxu0 0
        %4375 = vmatpush1.bf16.msra.mxu0 0
        %4376 = vmatprep.subr.bf16.mxu0 0
        %4377 = vmatpush1.bf16.msra.mxu0 0
        %4378 = vmatprep.subr.bf16.mxu0 0
        %4379 = vmatpush1.bf16.msra.mxu0 0
        %4380 = vmatprep.subr.bf16.mxu0 0
        %4381 = vmatpush1.bf16.msra.mxu0 0
        %4382 = vmatprep.subr.bf16.mxu0 0
        %4383 = vmatpush1.bf16.msra.mxu0 0
        %4384 = vmatprep.subr.bf16.mxu0 0
        %4385 = vmatpush1.bf16.msra.mxu0 0
        %4386 = vmatprep.subr.bf16.mxu0 0
        %4387 = vmatpush1.bf16.msra.mxu0 0
        %4388 = vmatprep.subr.bf16.mxu0 0
        %4389 = vmatpush1.bf16.msra.mxu0 0
        %4390 = vmatprep.subr.bf16.mxu0 0
        %4391 = vmatpush1.bf16.msra.mxu0 0
        %4392 = vmatprep.subr.bf16.mxu0 0
        %4393 = vmatpush1.bf16.msra.mxu0 0
        %4394 = vmatprep.subr.bf16.mxu0 0
        %4395 = vmatpush1.bf16.msra.mxu0 0
        %4396 = vmatprep.subr.bf16.mxu0 0
        %4397 = vmatpush1.bf16.msra.mxu0 0
        %4398 = vmatprep.mubr.bf16.mxu0 0
        %4399 = vmatmul.mubr.bf16.gmra.mrb[0].mxu0 %v4364
        %v4400 = vpop.f32.mrb[0].mxu0
        %v4401 = vadd.f32 0.0, %v4400
        %v4402 = vpop.f32.mrb[0].mxu0
        %v4403 = vpop.f32.mrb[0].mxu0
        %v4404 = vadd.f32 0.0, %v4403
        %v4405 = vpop.f32.mrb[0].mxu0
        %4406 = vdwg.mxu0
        %v4407 = vadd.f32 %v4344, %v4401
        %v4408 = vadd.f32 %v4345, %v4404
        %s4409 = scalar_lea.vmem %s5, 192
        %v4410 = vld [vmem:[%s4409] sm:$0xf]
        %v4411 = vld [vmem:[%s4409 + $0x4] sm:$0xf]
        %v4412 = vld [vmem:[%s4409 + $0x8] sm:$0xf]
        %v4413 = vld [vmem:[%s4409 + $0xc] sm:$0xf]
        %v4418 = vunpack.c.l.b16 %v4410
        %v4419 = vunpack.c.l.b16 %v4411
        %v4420 = vunpack.c.l.b16 %v4412
        %v4421 = vunpack.c.l.b16 %v4413
        %v4422 = vpack.c.b16 %v4419, %v4418
        %v4423 = vpack.c.b16 %v4421, %v4420
        %v4427 = vsel %vm3678, %v3653, 0
        %4429 = vmatprep.subr.bf16.mxu0 0
        %4430 = vmatpush1.bf16.msra.mxu0 %v4422
        %4431 = vmatprep.subr.bf16.mxu0 0
        %4432 = vmatpush1.bf16.msra.mxu0 %v4423
        %4433 = vmatprep.subr.bf16.mxu0 0
        %4434 = vmatpush1.bf16.msra.mxu0 0
        %4435 = vmatprep.subr.bf16.mxu0 0
        %4436 = vmatpush1.bf16.msra.mxu0 0
        %4437 = vmatprep.subr.bf16.mxu0 0
        %4438 = vmatpush1.bf16.msra.mxu0 0
        %4439 = vmatprep.subr.bf16.mxu0 0
        %4440 = vmatpush1.bf16.msra.mxu0 0
        %4441 = vmatprep.subr.bf16.mxu0 0
        %4442 = vmatpush1.bf16.msra.mxu0 0
        %4443 = vmatprep.subr.bf16.mxu0 0
        %4444 = vmatpush1.bf16.msra.mxu0 0
        %4445 = vmatprep.subr.bf16.mxu0 0
        %4446 = vmatpush1.bf16.msra.mxu0 0
        %4447 = vmatprep.subr.bf16.mxu0 0
        %4448 = vmatpush1.bf16.msra.mxu0 0
        %4449 = vmatprep.subr.bf16.mxu0 0
        %4450 = vmatpush1.bf16.msra.mxu0 0
        %4451 = vmatprep.subr.bf16.mxu0 0
        %4452 = vmatpush1.bf16.msra.mxu0 0
        %4453 = vmatprep.subr.bf16.mxu0 0
        %4454 = vmatpush1.bf16.msra.mxu0 0
        %4455 = vmatprep.subr.bf16.mxu0 0
        %4456 = vmatpush1.bf16.msra.mxu0 0
        %4457 = vmatprep.subr.bf16.mxu0 0
        %4458 = vmatpush1.bf16.msra.mxu0 0
        %4459 = vmatprep.subr.bf16.mxu0 0
        %4460 = vmatpush1.bf16.msra.mxu0 0
        %4461 = vmatprep.mubr.bf16.mxu0 0
        %4462 = vmatmul.mubr.bf16.gmra.mrb[0].mxu0 %v4427
        %v4463 = vpop.f32.mrb[0].mxu0
        %v4464 = vadd.f32 0.0, %v4463
        %v4465 = vpop.f32.mrb[0].mxu0
        %v4466 = vpop.f32.mrb[0].mxu0
        %v4467 = vadd.f32 0.0, %v4466
        %v4468 = vpop.f32.mrb[0].mxu0
        %4469 = vdwg.mxu0
        %v4470 = vadd.f32 %v4407, %v4464
        %v4471 = vadd.f32 %v4408, %v4467
        %s4472 = scalar_lea.vmem %s5, 208
        %v4473 = vld [vmem:[%s4472] sm:$0xf]
        %v4474 = vld [vmem:[%s4472 + $0x4] sm:$0xf]
        %v4475 = vld [vmem:[%s4472 + $0x8] sm:$0xf]
        %v4476 = vld [vmem:[%s4472 + $0xc] sm:$0xf]
        %v4481 = vunpack.c.l.b16 %v4473
        %v4482 = vunpack.c.l.b16 %v4474
        %v4483 = vunpack.c.l.b16 %v4475
        %v4484 = vunpack.c.l.b16 %v4476
        %v4485 = vpack.c.b16 %v4482, %v4481
        %v4486 = vpack.c.b16 %v4484, %v4483
        %v4490 = vsel %vm3678, %v3654, 0
        %4492 = vmatprep.subr.bf16.mxu0 0
        %4493 = vmatpush1.bf16.msra.mxu0 %v4485
        %4494 = vmatprep.subr.bf16.mxu0 0
        %4495 = vmatpush1.bf16.msra.mxu0 %v4486
        %4496 = vmatprep.subr.bf16.mxu0 0
        %4497 = vmatpush1.bf16.msra.mxu0 0
        %4498 = vmatprep.subr.bf16.mxu0 0
        %4499 = vmatpush1.bf16.msra.mxu0 0
        %4500 = vmatprep.subr.bf16.mxu0 0
        %4501 = vmatpush1.bf16.msra.mxu0 0
        %4502 = vmatprep.subr.bf16.mxu0 0
        %4503 = vmatpush1.bf16.msra.mxu0 0
        %4504 = vmatprep.subr.bf16.mxu0 0
        %4505 = vmatpush1.bf16.msra.mxu0 0
        %4506 = vmatprep.subr.bf16.mxu0 0
        %4507 = vmatpush1.bf16.msra.mxu0 0
        %4508 = vmatprep.subr.bf16.mxu0 0
        %4509 = vmatpush1.bf16.msra.mxu0 0
        %4510 = vmatprep.subr.bf16.mxu0 0
        %4511 = vmatpush1.bf16.msra.mxu0 0
        %4512 = vmatprep.subr.bf16.mxu0 0
        %4513 = vmatpush1.bf16.msra.mxu0 0
        %4514 = vmatprep.subr.bf16.mxu0 0
        %4515 = vmatpush1.bf16.msra.mxu0 0
        %4516 = vmatprep.subr.bf16.mxu0 0
        %4517 = vmatpush1.bf16.msra.mxu0 0
        %4518 = vmatprep.subr.bf16.mxu0 0
        %4519 = vmatpush1.bf16.msra.mxu0 0
        %4520 = vmatprep.subr.bf16.mxu0 0
        %4521 = vmatpush1.bf16.msra.mxu0 0
        %4522 = vmatprep.subr.bf16.mxu0 0
        %4523 = vmatpush1.bf16.msra.mxu0 0
        %4524 = vmatprep.mubr.bf16.mxu0 0
        %4525 = vmatmul.mubr.bf16.gmra.mrb[0].mxu0 %v4490
        %v4526 = vpop.f32.mrb[0].mxu0
        %v4527 = vadd.f32 0.0, %v4526
        %v4528 = vpop.f32.mrb[0].mxu0
        %v4529 = vpop.f32.mrb[0].mxu0
        %v4530 = vadd.f32 0.0, %v4529
        %v4531 = vpop.f32.mrb[0].mxu0
        %4532 = vdwg.mxu0
        %v4533 = vadd.f32 %v4470, %v4527
        %v4534 = vadd.f32 %v4471, %v4530
        %s4535 = scalar_lea.vmem %s5, 224
        %v4536 = vld [vmem:[%s4535] sm:$0xf]
        %v4537 = vld [vmem:[%s4535 + $0x4] sm:$0xf]
        %v4538 = vld [vmem:[%s4535 + $0x8] sm:$0xf]
        %v4539 = vld [vmem:[%s4535 + $0xc] sm:$0xf]
        %v4544 = vunpack.c.l.b16 %v4536
        %v4545 = vunpack.c.l.b16 %v4537
        %v4546 = vunpack.c.l.b16 %v4538
        %v4547 = vunpack.c.l.b16 %v4539
        %v4548 = vpack.c.b16 %v4545, %v4544
        %v4549 = vpack.c.b16 %v4547, %v4546
        %v4553 = vsel %vm3678, %v3655, 0
        %4555 = vmatprep.subr.bf16.mxu0 0
        %4556 = vmatpush1.bf16.msra.mxu0 %v4548
        %4557 = vmatprep.subr.bf16.mxu0 0
        %4558 = vmatpush1.bf16.msra.mxu0 %v4549
        %4559 = vmatprep.subr.bf16.mxu0 0
        %4560 = vmatpush1.bf16.msra.mxu0 0
        %4561 = vmatprep.subr.bf16.mxu0 0
        %4562 = vmatpush1.bf16.msra.mxu0 0
        %4563 = vmatprep.subr.bf16.mxu0 0
        %4564 = vmatpush1.bf16.msra.mxu0 0
        %4565 = vmatprep.subr.bf16.mxu0 0
        %4566 = vmatpush1.bf16.msra.mxu0 0
        %4567 = vmatprep.subr.bf16.mxu0 0
        %4568 = vmatpush1.bf16.msra.mxu0 0
        %4569 = vmatprep.subr.bf16.mxu0 0
        %4570 = vmatpush1.bf16.msra.mxu0 0
        %4571 = vmatprep.subr.bf16.mxu0 0
        %4572 = vmatpush1.bf16.msra.mxu0 0
        %4573 = vmatprep.subr.bf16.mxu0 0
        %4574 = vmatpush1.bf16.msra.mxu0 0
        %4575 = vmatprep.subr.bf16.mxu0 0
        %4576 = vmatpush1.bf16.msra.mxu0 0
        %4577 = vmatprep.subr.bf16.mxu0 0
        %4578 = vmatpush1.bf16.msra.mxu0 0
        %4579 = vmatprep.subr.bf16.mxu0 0
        %4580 = vmatpush1.bf16.msra.mxu0 0
        %4581 = vmatprep.subr.bf16.mxu0 0
        %4582 = vmatpush1.bf16.msra.mxu0 0
        %4583 = vmatprep.subr.bf16.mxu0 0
        %4584 = vmatpush1.bf16.msra.mxu0 0
        %4585 = vmatprep.subr.bf16.mxu0 0
        %4586 = vmatpush1.bf16.msra.mxu0 0
        %4587 = vmatprep.mubr.bf16.mxu0 0
        %4588 = vmatmul.mubr.bf16.gmra.mrb[0].mxu0 %v4553
        %v4589 = vpop.f32.mrb[0].mxu0
        %v4590 = vadd.f32 0.0, %v4589
        %v4591 = vpop.f32.mrb[0].mxu0
        %v4592 = vpop.f32.mrb[0].mxu0
        %v4593 = vadd.f32 0.0, %v4592
        %v4594 = vpop.f32.mrb[0].mxu0
        %4595 = vdwg.mxu0
        %v4596 = vadd.f32 %v4533, %v4590
        %v4597 = vadd.f32 %v4534, %v4593
        %s4598 = scalar_lea.vmem %s5, 240
        %v4599 = vld [vmem:[%s4598] sm:$0xf]
        %v4600 = vld [vmem:[%s4598 + $0x4] sm:$0xf]
        %v4601 = vld [vmem:[%s4598 + $0x8] sm:$0xf]
        %v4602 = vld [vmem:[%s4598 + $0xc] sm:$0xf]
        %v4607 = vunpack.c.l.b16 %v4599
        %v4608 = vunpack.c.l.b16 %v4600
        %v4609 = vunpack.c.l.b16 %v4601
        %v4610 = vunpack.c.l.b16 %v4602
        %v4611 = vpack.c.b16 %v4608, %v4607
        %v4612 = vpack.c.b16 %v4610, %v4609
        %v4616 = vsel %vm3678, %v3656, 0
        %4618 = vmatprep.subr.bf16.mxu0 0
        %4619 = vmatpush1.bf16.msra.mxu0 %v4611
        %4620 = vmatprep.subr.bf16.mxu0 0
        %4621 = vmatpush1.bf16.msra.mxu0 %v4612
        %4622 = vmatprep.subr.bf16.mxu0 0
        %4623 = vmatpush1.bf16.msra.mxu0 0
        %4624 = vmatprep.subr.bf16.mxu0 0
        %4625 = vmatpush1.bf16.msra.mxu0 0
        %4626 = vmatprep.subr.bf16.mxu0 0
        %4627 = vmatpush1.bf16.msra.mxu0 0
        %4628 = vmatprep.subr.bf16.mxu0 0
        %4629 = vmatpush1.bf16.msra.mxu0 0
        %4630 = vmatprep.subr.bf16.mxu0 0
        %4631 = vmatpush1.bf16.msra.mxu0 0
        %4632 = vmatprep.subr.bf16.mxu0 0
        %4633 = vmatpush1.bf16.msra.mxu0 0
        %4634 = vmatprep.subr.bf16.mxu0 0
        %4635 = vmatpush1.bf16.msra.mxu0 0
        %4636 = vmatprep.subr.bf16.mxu0 0
        %4637 = vmatpush1.bf16.msra.mxu0 0
        %4638 = vmatprep.subr.bf16.mxu0 0
        %4639 = vmatpush1.bf16.msra.mxu0 0
        %4640 = vmatprep.subr.bf16.mxu0 0
        %4641 = vmatpush1.bf16.msra.mxu0 0
        %4642 = vmatprep.subr.bf16.mxu0 0
        %4643 = vmatpush1.bf16.msra.mxu0 0
        %4644 = vmatprep.subr.bf16.mxu0 0
        %4645 = vmatpush1.bf16.msra.mxu0 0
        %4646 = vmatprep.subr.bf16.mxu0 0
        %4647 = vmatpush1.bf16.msra.mxu0 0
        %4648 = vmatprep.subr.bf16.mxu0 0
        %4649 = vmatpush1.bf16.msra.mxu0 0
        %4650 = vmatprep.mubr.bf16.mxu0 0
        %4651 = vmatmul.mubr.bf16.gmra.mrb[0].mxu0 %v4616
        %v4652 = vpop.f32.mrb[0].mxu0
        %v4653 = vadd.f32 0.0, %v4652
        %v4654 = vpop.f32.mrb[0].mxu0
        %v4655 = vpop.f32.mrb[0].mxu0
        %v4656 = vadd.f32 0.0, %v4655
        %v4657 = vpop.f32.mrb[0].mxu0
        %4658 = vdwg.mxu0
        %v4659 = vadd.f32 %v4596, %v4653
        %v4660 = vadd.f32 %v4597, %v4656
        %v4661 = vld [vmem:[%s6] sm:$0x1]
        %v4663 = vlaneseq
        %v4664 = vshrl.u32 %v4663, 7
        %v4665 = vsub.s32 0, %v4664
        %v4666 = vrot.slane %v4661, %v4665
        %v4668 = vadd.f32 %v4659, %v4666
        %v4669 = vadd.f32 %v4660, %v4666
        %v4670 = vmax.f32 %v4668, 0.0
        %v4671 = vmax.f32 %v4669, 0.0
        %v4672 = vpack.c.bf16 %v4671, %v4670
        %v4673 = vld [vmem:[%s7] sm:$0xf]
        %v4674 = vld [vmem:[%s7 + $0x4] sm:$0xf]
        %v4675 = vld [vmem:[%s7 + $0x8] sm:$0xf]
        %v4676 = vld [vmem:[%s7 + $0xc] sm:$0xf]
        %v4677 = vld [vmem:[%s7 + $0x10] sm:$0xf]
        %v4678 = vld [vmem:[%s7 + $0x14] sm:$0xf]
        %v4679 = vld [vmem:[%s7 + $0x18] sm:$0xf]
        %v4680 = vld [vmem:[%s7 + $0x1c] sm:$0xf]
        %v4681 = vld [vmem:[%s7 + $0x20] sm:$0xf]
        %v4682 = vld [vmem:[%s7 + $0x24] sm:$0xf]
        %v4683 = vld [vmem:[%s7 + $0x28] sm:$0xf]
        %v4684 = vld [vmem:[%s7 + $0x2c] sm:$0xf]
        %v4685 = vld [vmem:[%s7 + $0x30] sm:$0xf]
        %v4686 = vld [vmem:[%s7 + $0x34] sm:$0xf]
        %v4687 = vld [vmem:[%s7 + $0x38] sm:$0xf]
        %v4688 = vld [vmem:[%s7 + $0x3c] sm:$0xf]
        %v4689 = vld [vmem:[%s7 + $0x40] sm:$0xf]
        %v4690 = vld [vmem:[%s7 + $0x44] sm:$0xf]
        %v4709 = vunpack.c.l.b16 %v4673
        %v4710 = vunpack.c.l.b16 %v4674
        %v4711 = vunpack.c.l.b16 %v4675
        %v4712 = vunpack.c.l.b16 %v4676
        %v4713 = vunpack.c.l.b16 %v4677
        %v4714 = vunpack.c.l.b16 %v4678
        %v4715 = vunpack.c.l.b16 %v4679
        %v4716 = vunpack.c.l.b16 %v4680
        %v4717 = vunpack.c.l.b16 %v4681
        %v4718 = vunpack.c.l.b16 %v4682
        %v4719 = vunpack.c.l.b16 %v4683
        %v4720 = vunpack.c.l.b16 %v4684
        %v4721 = vunpack.c.l.b16 %v4685
        %v4722 = vunpack.c.l.b16 %v4686
        %v4723 = vunpack.c.l.b16 %v4687
        %v4724 = vunpack.c.l.b16 %v4688
        %v4725 = vunpack.c.l.b16 %v4689
        %v4726 = vunpack.c.l.b16 %v4690
        %v4727 = vpack.c.b16 %v4710, %v4709
        %v4728 = vpack.c.b16 %v4712, %v4711
        %v4729 = vpack.c.b16 %v4714, %v4713
        %v4730 = vpack.c.b16 %v4716, %v4715
        %v4731 = vpack.c.b16 %v4718, %v4717
        %v4732 = vpack.c.b16 %v4720, %v4719
        %v4733 = vpack.c.b16 %v4722, %v4721
        %v4734 = vpack.c.b16 %v4724, %v4723
        %v4735 = vpack.c.b16 %v4726, %v4725
        %vm4736 = vcmask 130048
        %v4738 = vsel %vm4736, %v4727, 0
        %v4741 = vsel %vm4736, %v4728, 0
        %v4744 = vsel %vm4736, %v4729, 0
        %v4747 = vsel %vm4736, %v4730, 0
        %v4750 = vsel %vm4736, %v4731, 0
        %v4753 = vsel %vm4736, %v4732, 0
        %v4756 = vsel %vm4736, %v4733, 0
        %v4759 = vsel %vm4736, %v4734, 0
        %v4762 = vsel %vm4736, %v4735, 0
        %4764 = vmatprep.subr.bf16.mxu0 0
        %4765 = vmatpush1.bf16.msra.mxu0 %v4672
        %4766 = vmatprep.subr.bf16.mxu0 0
        %4767 = vmatpush1.bf16.msra.mxu0 0
        %4768 = vmatprep.subr.bf16.mxu0 0
        %4769 = vmatpush1.bf16.msra.mxu0 0
        %4770 = vmatprep.subr.bf16.mxu0 0
        %4771 = vmatpush1.bf16.msra.mxu0 0
        %4772 = vmatprep.subr.bf16.mxu0 0
        %4773 = vmatpush1.bf16.msra.mxu0 0
        %4774 = vmatprep.subr.bf16.mxu0 0
        %4775 = vmatpush1.bf16.msra.mxu0 0
        %4776 = vmatprep.subr.bf16.mxu0 0
        %4777 = vmatpush1.bf16.msra.mxu0 0
        %4778 = vmatprep.subr.bf16.mxu0 0
        %4779 = vmatpush1.bf16.msra.mxu0 0
        %4780 = vmatprep.subr.bf16.mxu0 0
        %4781 = vmatpush1.bf16.msra.mxu0 0
        %4782 = vmatprep.subr.bf16.mxu0 0
        %4783 = vmatpush1.bf16.msra.mxu0 0
        %4784 = vmatprep.subr.bf16.mxu0 0
        %4785 = vmatpush1.bf16.msra.mxu0 0
        %4786 = vmatprep.subr.bf16.mxu0 0
        %4787 = vmatpush1.bf16.msra.mxu0 0
        %4788 = vmatprep.subr.bf16.mxu0 0
        %4789 = vmatpush1.bf16.msra.mxu0 0
        %4790 = vmatprep.subr.bf16.mxu0 0
        %4791 = vmatpush1.bf16.msra.mxu0 0
        %4792 = vmatprep.subr.bf16.mxu0 0
        %4793 = vmatpush1.bf16.msra.mxu0 0
        %4794 = vmatprep.subr.bf16.mxu0 0
        %4795 = vmatpush1.bf16.msra.mxu0 0
        %4796 = vmatprep.mubr.bf16.mxu0 0
        %4797 = vmatmul.mubr.bf16.gmra.mrb[0].mxu0 %v4738
        %v4798 = vpop.f32.mrb[0].mxu0
        %v4799 = vadd.f32 0.0, %v4798
        %v4800 = vpop.f32.mrb[0].mxu0
        %v4801 = vpop.f32.mrb[0].mxu0
        %v4802 = vadd.f32 0.0, %v4801
        %v4803 = vpop.f32.mrb[0].mxu0
        %4804 = vmatprep.mubr.bf16.mxu0 0
        %4805 = vmatmul.mubr.bf16.gmra.mrb[0].mxu0 %v4741
        %v4806 = vpop.f32.mrb[0].mxu0
        %v4807 = vadd.f32 0.0, %v4806
        %v4808 = vpop.f32.mrb[0].mxu0
        %v4809 = vpop.f32.mrb[0].mxu0
        %v4810 = vadd.f32 0.0, %v4809
        %v4811 = vpop.f32.mrb[0].mxu0
        %4812 = vmatprep.mubr.bf16.mxu0 0
        %4813 = vmatmul.mubr.bf16.gmra.mrb[0].mxu0 %v4744
        %v4814 = vpop.f32.mrb[0].mxu0
        %v4815 = vadd.f32 0.0, %v4814
        %v4816 = vpop.f32.mrb[0].mxu0
        %v4817 = vpop.f32.mrb[0].mxu0
        %v4818 = vadd.f32 0.0, %v4817
        %v4819 = vpop.f32.mrb[0].mxu0
        %4820 = vmatprep.mubr.bf16.mxu0 0
        %4821 = vmatmul.mubr.bf16.gmra.mrb[0].mxu0 %v4747
        %v4822 = vpop.f32.mrb[0].mxu0
        %v4823 = vadd.f32 0.0, %v4822
        %v4824 = vpop.f32.mrb[0].mxu0
        %v4825 = vpop.f32.mrb[0].mxu0
        %v4826 = vadd.f32 0.0, %v4825
        %v4827 = vpop.f32.mrb[0].mxu0
        %4828 = vmatprep.mubr.bf16.mxu0 0
        %4829 = vmatmul.mubr.bf16.gmra.mrb[0].mxu0 %v4750
        %v4830 = vpop.f32.mrb[0].mxu0
        %v4831 = vadd.f32 0.0, %v4830
        %v4832 = vpop.f32.mrb[0].mxu0
        %v4833 = vpop.f32.mrb[0].mxu0
        %v4834 = vadd.f32 0.0, %v4833
        %v4835 = vpop.f32.mrb[0].mxu0
        %4836 = vmatprep.mubr.bf16.mxu0 0
        %4837 = vmatmul.mubr.bf16.gmra.mrb[0].mxu0 %v4753
        %v4838 = vpop.f32.mrb[0].mxu0
        %v4839 = vadd.f32 0.0, %v4838
        %v4840 = vpop.f32.mrb[0].mxu0
        %v4841 = vpop.f32.mrb[0].mxu0
        %v4842 = vadd.f32 0.0, %v4841
        %v4843 = vpop.f32.mrb[0].mxu0
        %4844 = vmatprep.mubr.bf16.mxu0 0
        %4845 = vmatmul.mubr.bf16.gmra.mrb[0].mxu0 %v4756
        %v4846 = vpop.f32.mrb[0].mxu0
        %v4847 = vadd.f32 0.0, %v4846
        %v4848 = vpop.f32.mrb[0].mxu0
        %v4849 = vpop.f32.mrb[0].mxu0
        %v4850 = vadd.f32 0.0, %v4849
        %v4851 = vpop.f32.mrb[0].mxu0
        %4852 = vmatprep.mubr.bf16.mxu0 0
        %4853 = vmatmul.mubr.bf16.gmra.mrb[0].mxu0 %v4759
        %v4854 = vpop.f32.mrb[0].mxu0
        %v4855 = vadd.f32 0.0, %v4854
        %v4856 = vpop.f32.mrb[0].mxu0
        %v4857 = vpop.f32.mrb[0].mxu0
        %v4858 = vadd.f32 0.0, %v4857
        %v4859 = vpop.f32.mrb[0].mxu0
        %4860 = vmatprep.mubr.bf16.mxu0 0
        %4861 = vmatmul.mubr.bf16.gmra.mrb[0].mxu0 %v4762
        %v4862 = vpop.f32.mrb[0].mxu0
        %v4863 = vadd.f32 0.0, %v4862
        %v4864 = vpop.f32.mrb[0].mxu0
        %v4865 = vpop.f32.mrb[0].mxu0
        %v4866 = vadd.f32 0.0, %v4865
        %v4867 = vpop.f32.mrb[0].mxu0
        %4868 = vdwg.mxu0
        %v4869 = vpack.c.bf16 %v4802, %v4799
        %v4870 = vpack.c.bf16 %v4810, %v4807
        %v4871 = vpack.c.bf16 %v4818, %v4815
        %v4872 = vpack.c.bf16 %v4826, %v4823
        %v4873 = vpack.c.bf16 %v4834, %v4831
        %v4874 = vpack.c.bf16 %v4842, %v4839
        %v4875 = vpack.c.bf16 %v4850, %v4847
        %v4876 = vpack.c.bf16 %v4858, %v4855
        %v4877 = vpack.c.bf16 %v4866, %v4863
        %v4878 = vld [vmem:[%s8] sm:$0xf]
        %v4879 = vld [vmem:[%s8 + $0x4] sm:$0xf]
        %v4880 = vld [vmem:[%s8 + $0x8] sm:$0xf]
        %v4881 = vld [vmem:[%s8 + $0xc] sm:$0xf]
        %v4882 = vld [vmem:[%s8 + $0x10] sm:$0xf]
        %v4883 = vld [vmem:[%s8 + $0x14] sm:$0xf]
        %v4884 = vld [vmem:[%s8 + $0x18] sm:$0xf]
        %v4885 = vld [vmem:[%s8 + $0x1c] sm:$0xf]
        %s4886 = scalar_lea.vmem %s8, 32
        %v4887 = vld [vmem:[%s4886] sm:$0xf]
        %v4888 = vld [vmem:[%s4886 + $0x4] sm:$0xf]
        %v4889 = vld [vmem:[%s4886 + $0x8] sm:$0xf]
        %v4890 = vld [vmem:[%s4886 + $0xc] sm:$0xf]
        %v4891 = vld [vmem:[%s4886 + $0x10] sm:$0xf]
        %v4892 = vld [vmem:[%s4886 + $0x14] sm:$0xf]
        %v4893 = vld [vmem:[%s4886 + $0x18] sm:$0xf]
        %v4894 = vld [vmem:[%s4886 + $0x1c] sm:$0xf]
        %v4903 = vunpack.c.l.b16 %v4887
        %v4904 = vunpack.c.l.b16 %v4888
        %v4905 = vunpack.c.l.b16 %v4889
        %v4906 = vunpack.c.l.b16 %v4890
        %v4907 = vunpack.c.l.b16 %v4891
        %v4908 = vunpack.c.l.b16 %v4892
        %v4909 = vunpack.c.l.b16 %v4893
        %v4910 = vunpack.c.l.b16 %v4894
        %v4911 = vpack.c.b16 %v4904, %v4903
        %v4912 = vpack.c.b16 %v4906, %v4905
        %v4913 = vpack.c.b16 %v4908, %v4907
        %v4914 = vpack.c.b16 %v4910, %v4909
        %v4920 = vsel %vm3431, %v4870, 0
        %4922 = vmatprep.subr.bf16.mxu0 0
        %4923 = vmatpush1.bf16.msra.mxu0 %v4911
        %4924 = vmatprep.subr.bf16.mxu0 0
        %4925 = vmatpush1.bf16.msra.mxu0 %v4912
        %4926 = vmatprep.subr.bf16.mxu0 0
        %4927 = vmatpush1.bf16.msra.mxu0 %v4913
        %4928 = vmatprep.subr.bf16.mxu0 0
        %4929 = vmatpush1.bf16.msra.mxu0 %v4914
        %4930 = vmatprep.subr.bf16.mxu0 0
        %4931 = vmatpush1.bf16.msra.mxu0 0
        %4932 = vmatprep.subr.bf16.mxu0 0
        %4933 = vmatpush1.bf16.msra.mxu0 0
        %4934 = vmatprep.subr.bf16.mxu0 0
        %4935 = vmatpush1.bf16.msra.mxu0 0
        %4936 = vmatprep.subr.bf16.mxu0 0
        %4937 = vmatpush1.bf16.msra.mxu0 0
        %4938 = vmatprep.subr.bf16.mxu0 0
        %4939 = vmatpush1.bf16.msra.mxu0 0
        %4940 = vmatprep.subr.bf16.mxu0 0
        %4941 = vmatpush1.bf16.msra.mxu0 0
        %4942 = vmatprep.subr.bf16.mxu0 0
        %4943 = vmatpush1.bf16.msra.mxu0 0
        %4944 = vmatprep.subr.bf16.mxu0 0
        %4945 = vmatpush1.bf16.msra.mxu0 0
        %4946 = vmatprep.subr.bf16.mxu0 0
        %4947 = vmatpush1.bf16.msra.mxu0 0
        %4948 = vmatprep.subr.bf16.mxu0 0
        %4949 = vmatpush1.bf16.msra.mxu0 0
        %4950 = vmatprep.subr.bf16.mxu0 0
        %4951 = vmatpush1.bf16.msra.mxu0 0
        %4952 = vmatprep.subr.bf16.mxu0 0
        %4953 = vmatpush1.bf16.msra.mxu0 0
        %4954 = vmatprep.mubr.bf16.mxu0 0
        %4955 = vmatmul.mubr.bf16.gmra.mrb[0].mxu0 %v4920
        %v4956 = vpop.f32.mrb[0].mxu0
        %v4957 = vadd.f32 0.0, %v4956
        %v4958 = vpop.f32.mrb[0].mxu0
        %v4959 = vpop.f32.mrb[0].mxu0
        %v4960 = vadd.f32 0.0, %v4959
        %v4961 = vpop.f32.mrb[0].mxu0
        %4962 = vdwg.mxu0
        %v4971 = vunpack.c.l.b16 %v4878
        %v4972 = vunpack.c.l.b16 %v4879
        %v4973 = vunpack.c.l.b16 %v4880
        %v4974 = vunpack.c.l.b16 %v4881
        %v4975 = vunpack.c.l.b16 %v4882
        %v4976 = vunpack.c.l.b16 %v4883
        %v4977 = vunpack.c.l.b16 %v4884
        %v4978 = vunpack.c.l.b16 %v4885
        %v4979 = vpack.c.b16 %v4972, %v4971
        %v4980 = vpack.c.b16 %v4974, %v4973
        %v4981 = vpack.c.b16 %v4976, %v4975
        %v4982 = vpack.c.b16 %v4978, %v4977
        %v4988 = vsel %vm3431, %v4869, 0
        %4990 = vmatprep.subr.bf16.mxu0 0
        %4991 = vmatpush1.bf16.msra.mxu0 %v4979
        %4992 = vmatprep.subr.bf16.mxu0 0
        %4993 = vmatpush1.bf16.msra.mxu0 %v4980
        %4994 = vmatprep.subr.bf16.mxu0 0
        %4995 = vmatpush1.bf16.msra.mxu0 %v4981
        %4996 = vmatprep.subr.bf16.mxu0 0
        %4997 = vmatpush1.bf16.msra.mxu0 %v4982
        %4998 = vmatprep.subr.bf16.mxu0 0
        %4999 = vmatpush1.bf16.msra.mxu0 0
        %5000 = vmatprep.subr.bf16.mxu0 0
        %5001 = vmatpush1.bf16.msra.mxu0 0
        %5002 = vmatprep.subr.bf16.mxu0 0
        %5003 = vmatpush1.bf16.msra.mxu0 0
        %5004 = vmatprep.subr.bf16.mxu0 0
        %5005 = vmatpush1.bf16.msra.mxu0 0
        %5006 = vmatprep.subr.bf16.mxu0 0
        %5007 = vmatpush1.bf16.msra.mxu0 0
        %5008 = vmatprep.subr.bf16.mxu0 0
        %5009 = vmatpush1.bf16.msra.mxu0 0
        %5010 = vmatprep.subr.bf16.mxu0 0
        %5011 = vmatpush1.bf16.msra.mxu0 0
        %5012 = vmatprep.subr.bf16.mxu0 0
        %5013 = vmatpush1.bf16.msra.mxu0 0
        %5014 = vmatprep.subr.bf16.mxu0 0
        %5015 = vmatpush1.bf16.msra.mxu0 0
        %5016 = vmatprep.subr.bf16.mxu0 0
        %5017 = vmatpush1.bf16.msra.mxu0 0
        %5018 = vmatprep.subr.bf16.mxu0 0
        %5019 = vmatpush1.bf16.msra.mxu0 0
        %5020 = vmatprep.subr.bf16.mxu0 0
        %5021 = vmatpush1.bf16.msra.mxu0 0
        %5022 = vmatprep.mubr.bf16.mxu0 0
        %5023 = vmatmul.mubr.bf16.gmra.mrb[0].mxu0 %v4988
        %v5024 = vpop.f32.mrb[0].mxu0
        %v5025 = vadd.f32 %v4957, %v5024
        %v5026 = vpop.f32.mrb[0].mxu0
        %v5027 = vpop.f32.mrb[0].mxu0
        %v5028 = vadd.f32 %v4960, %v5027
        %v5029 = vpop.f32.mrb[0].mxu0
        %5030 = vdwg.mxu0
        %s5031 = scalar_lea.vmem %s8, 64
        %v5032 = vld [vmem:[%s5031] sm:$0xf]
        %v5033 = vld [vmem:[%s5031 + $0x4] sm:$0xf]
        %v5034 = vld [vmem:[%s5031 + $0x8] sm:$0xf]
        %v5035 = vld [vmem:[%s5031 + $0xc] sm:$0xf]
        %v5036 = vld [vmem:[%s5031 + $0x10] sm:$0xf]
        %v5037 = vld [vmem:[%s5031 + $0x14] sm:$0xf]
        %v5038 = vld [vmem:[%s5031 + $0x18] sm:$0xf]
        %v5039 = vld [vmem:[%s5031 + $0x1c] sm:$0xf]
        %v5048 = vunpack.c.l.b16 %v5032
        %v5049 = vunpack.c.l.b16 %v5033
        %v5050 = vunpack.c.l.b16 %v5034
        %v5051 = vunpack.c.l.b16 %v5035
        %v5052 = vunpack.c.l.b16 %v5036
        %v5053 = vunpack.c.l.b16 %v5037
        %v5054 = vunpack.c.l.b16 %v5038
        %v5055 = vunpack.c.l.b16 %v5039
        %v5056 = vpack.c.b16 %v5049, %v5048
        %v5057 = vpack.c.b16 %v5051, %v5050
        %v5058 = vpack.c.b16 %v5053, %v5052
        %v5059 = vpack.c.b16 %v5055, %v5054
        %v5065 = vsel %vm3431, %v4871, 0
        %5067 = vmatprep.subr.bf16.mxu0 0
        %5068 = vmatpush1.bf16.msra.mxu0 %v5056
        %5069 = vmatprep.subr.bf16.mxu0 0
        %5070 = vmatpush1.bf16.msra.mxu0 %v5057
        %5071 = vmatprep.subr.bf16.mxu0 0
        %5072 = vmatpush1.bf16.msra.mxu0 %v5058
        %5073 = vmatprep.subr.bf16.mxu0 0
        %5074 = vmatpush1.bf16.msra.mxu0 %v5059
        %5075 = vmatprep.subr.bf16.mxu0 0
        %5076 = vmatpush1.bf16.msra.mxu0 0
        %5077 = vmatprep.subr.bf16.mxu0 0
        %5078 = vmatpush1.bf16.msra.mxu0 0
        %5079 = vmatprep.subr.bf16.mxu0 0
        %5080 = vmatpush1.bf16.msra.mxu0 0
        %5081 = vmatprep.subr.bf16.mxu0 0
        %5082 = vmatpush1.bf16.msra.mxu0 0
        %5083 = vmatprep.subr.bf16.mxu0 0
        %5084 = vmatpush1.bf16.msra.mxu0 0
        %5085 = vmatprep.subr.bf16.mxu0 0
        %5086 = vmatpush1.bf16.msra.mxu0 0
        %5087 = vmatprep.subr.bf16.mxu0 0
        %5088 = vmatpush1.bf16.msra.mxu0 0
        %5089 = vmatprep.subr.bf16.mxu0 0
        %5090 = vmatpush1.bf16.msra.mxu0 0
        %5091 = vmatprep.subr.bf16.mxu0 0
        %5092 = vmatpush1.bf16.msra.mxu0 0
        %5093 = vmatprep.subr.bf16.mxu0 0
        %5094 = vmatpush1.bf16.msra.mxu0 0
        %5095 = vmatprep.subr.bf16.mxu0 0
        %5096 = vmatpush1.bf16.msra.mxu0 0
        %5097 = vmatprep.subr.bf16.mxu0 0
        %5098 = vmatpush1.bf16.msra.mxu0 0
        %5099 = vmatprep.mubr.bf16.mxu0 0
        %5100 = vmatmul.mubr.bf16.gmra.mrb[0].mxu0 %v5065
        %v5101 = vpop.f32.mrb[0].mxu0
        %v5102 = vadd.f32 0.0, %v5101
        %v5103 = vpop.f32.mrb[0].mxu0
        %v5104 = vpop.f32.mrb[0].mxu0
        %v5105 = vadd.f32 0.0, %v5104
        %v5106 = vpop.f32.mrb[0].mxu0
        %5107 = vdwg.mxu0
        %v5108 = vadd.f32 %v5025, %v5102
        %v5109 = vadd.f32 %v5028, %v5105
        %s5110 = scalar_lea.vmem %s8, 96
        %v5111 = vld [vmem:[%s5110] sm:$0xf]
        %v5112 = vld [vmem:[%s5110 + $0x4] sm:$0xf]
        %v5113 = vld [vmem:[%s5110 + $0x8] sm:$0xf]
        %v5114 = vld [vmem:[%s5110 + $0xc] sm:$0xf]
        %v5115 = vld [vmem:[%s5110 + $0x10] sm:$0xf]
        %v5116 = vld [vmem:[%s5110 + $0x14] sm:$0xf]
        %v5117 = vld [vmem:[%s5110 + $0x18] sm:$0xf]
        %v5118 = vld [vmem:[%s5110 + $0x1c] sm:$0xf]
        %v5127 = vunpack.c.l.b16 %v5111
        %v5128 = vunpack.c.l.b16 %v5112
        %v5129 = vunpack.c.l.b16 %v5113
        %v5130 = vunpack.c.l.b16 %v5114
        %v5131 = vunpack.c.l.b16 %v5115
        %v5132 = vunpack.c.l.b16 %v5116
        %v5133 = vunpack.c.l.b16 %v5117
        %v5134 = vunpack.c.l.b16 %v5118
        %v5135 = vpack.c.b16 %v5128, %v5127
        %v5136 = vpack.c.b16 %v5130, %v5129
        %v5137 = vpack.c.b16 %v5132, %v5131
        %v5138 = vpack.c.b16 %v5134, %v5133
        %v5144 = vsel %vm3431, %v4872, 0
        %5146 = vmatprep.subr.bf16.mxu0 0
        %5147 = vmatpush1.bf16.msra.mxu0 %v5135
        %5148 = vmatprep.subr.bf16.mxu0 0
        %5149 = vmatpush1.bf16.msra.mxu0 %v5136
        %5150 = vmatprep.subr.bf16.mxu0 0
        %5151 = vmatpush1.bf16.msra.mxu0 %v5137
        %5152 = vmatprep.subr.bf16.mxu0 0
        %5153 = vmatpush1.bf16.msra.mxu0 %v5138
        %5154 = vmatprep.subr.bf16.mxu0 0
        %5155 = vmatpush1.bf16.msra.mxu0 0
        %5156 = vmatprep.subr.bf16.mxu0 0
        %5157 = vmatpush1.bf16.msra.mxu0 0
        %5158 = vmatprep.subr.bf16.mxu0 0
        %5159 = vmatpush1.bf16.msra.mxu0 0
        %5160 = vmatprep.subr.bf16.mxu0 0
        %5161 = vmatpush1.bf16.msra.mxu0 0
        %5162 = vmatprep.subr.bf16.mxu0 0
        %5163 = vmatpush1.bf16.msra.mxu0 0
        %5164 = vmatprep.subr.bf16.mxu0 0
        %5165 = vmatpush1.bf16.msra.mxu0 0
        %5166 = vmatprep.subr.bf16.mxu0 0
        %5167 = vmatpush1.bf16.msra.mxu0 0
        %5168 = vmatprep.subr.bf16.mxu0 0
        %5169 = vmatpush1.bf16.msra.mxu0 0
        %5170 = vmatprep.subr.bf16.mxu0 0
        %5171 = vmatpush1.bf16.msra.mxu0 0
        %5172 = vmatprep.subr.bf16.mxu0 0
        %5173 = vmatpush1.bf16.msra.mxu0 0
        %5174 = vmatprep.subr.bf16.mxu0 0
        %5175 = vmatpush1.bf16.msra.mxu0 0
        %5176 = vmatprep.subr.bf16.mxu0 0
        %5177 = vmatpush1.bf16.msra.mxu0 0
        %5178 = vmatprep.mubr.bf16.mxu0 0
        %5179 = vmatmul.mubr.bf16.gmra.mrb[0].mxu0 %v5144
        %v5180 = vpop.f32.mrb[0].mxu0
        %v5181 = vadd.f32 0.0, %v5180
        %v5182 = vpop.f32.mrb[0].mxu0
        %v5183 = vpop.f32.mrb[0].mxu0
        %v5184 = vadd.f32 0.0, %v5183
        %v5185 = vpop.f32.mrb[0].mxu0
        %5186 = vdwg.mxu0
        %v5187 = vadd.f32 %v5108, %v5181
        %v5188 = vadd.f32 %v5109, %v5184
        %s5189 = scalar_lea.vmem %s8, 128
        %v5190 = vld [vmem:[%s5189] sm:$0xf]
        %v5191 = vld [vmem:[%s5189 + $0x4] sm:$0xf]
        %v5192 = vld [vmem:[%s5189 + $0x8] sm:$0xf]
        %v5193 = vld [vmem:[%s5189 + $0xc] sm:$0xf]
        %v5194 = vld [vmem:[%s5189 + $0x10] sm:$0xf]
        %v5195 = vld [vmem:[%s5189 + $0x14] sm:$0xf]
        %v5196 = vld [vmem:[%s5189 + $0x18] sm:$0xf]
        %v5197 = vld [vmem:[%s5189 + $0x1c] sm:$0xf]
        %v5206 = vunpack.c.l.b16 %v5190
        %v5207 = vunpack.c.l.b16 %v5191
        %v5208 = vunpack.c.l.b16 %v5192
        %v5209 = vunpack.c.l.b16 %v5193
        %v5210 = vunpack.c.l.b16 %v5194
        %v5211 = vunpack.c.l.b16 %v5195
        %v5212 = vunpack.c.l.b16 %v5196
        %v5213 = vunpack.c.l.b16 %v5197
        %v5214 = vpack.c.b16 %v5207, %v5206
        %v5215 = vpack.c.b16 %v5209, %v5208
        %v5216 = vpack.c.b16 %v5211, %v5210
        %v5217 = vpack.c.b16 %v5213, %v5212
        %v5223 = vsel %vm3431, %v4873, 0
        %5225 = vmatprep.subr.bf16.mxu0 0
        %5226 = vmatpush1.bf16.msra.mxu0 %v5214
        %5227 = vmatprep.subr.bf16.mxu0 0
        %5228 = vmatpush1.bf16.msra.mxu0 %v5215
        %5229 = vmatprep.subr.bf16.mxu0 0
        %5230 = vmatpush1.bf16.msra.mxu0 %v5216
        %5231 = vmatprep.subr.bf16.mxu0 0
        %5232 = vmatpush1.bf16.msra.mxu0 %v5217
        %5233 = vmatprep.subr.bf16.mxu0 0
        %5234 = vmatpush1.bf16.msra.mxu0 0
        %5235 = vmatprep.subr.bf16.mxu0 0
        %5236 = vmatpush1.bf16.msra.mxu0 0
        %5237 = vmatprep.subr.bf16.mxu0 0
        %5238 = vmatpush1.bf16.msra.mxu0 0
        %5239 = vmatprep.subr.bf16.mxu0 0
        %5240 = vmatpush1.bf16.msra.mxu0 0
        %5241 = vmatprep.subr.bf16.mxu0 0
        %5242 = vmatpush1.bf16.msra.mxu0 0
        %5243 = vmatprep.subr.bf16.mxu0 0
        %5244 = vmatpush1.bf16.msra.mxu0 0
        %5245 = vmatprep.subr.bf16.mxu0 0
        %5246 = vmatpush1.bf16.msra.mxu0 0
        %5247 = vmatprep.subr.bf16.mxu0 0
        %5248 = vmatpush1.bf16.msra.mxu0 0
        %5249 = vmatprep.subr.bf16.mxu0 0
        %5250 = vmatpush1.bf16.msra.mxu0 0
        %5251 = vmatprep.subr.bf16.mxu0 0
        %5252 = vmatpush1.bf16.msra.mxu0 0
        %5253 = vmatprep.subr.bf16.mxu0 0
        %5254 = vmatpush1.bf16.msra.mxu0 0
        %5255 = vmatprep.subr.bf16.mxu0 0
        %5256 = vmatpush1.bf16.msra.mxu0 0
        %5257 = vmatprep.mubr.bf16.mxu0 0
        %5258 = vmatmul.mubr.bf16.gmra.mrb[0].mxu0 %v5223
        %v5259 = vpop.f32.mrb[0].mxu0
        %v5260 = vadd.f32 0.0, %v5259
        %v5261 = vpop.f32.mrb[0].mxu0
        %v5262 = vpop.f32.mrb[0].mxu0
        %v5263 = vadd.f32 0.0, %v5262
        %v5264 = vpop.f32.mrb[0].mxu0
        %5265 = vdwg.mxu0
        %v5266 = vadd.f32 %v5187, %v5260
        %v5267 = vadd.f32 %v5188, %v5263
        %s5268 = scalar_lea.vmem %s8, 160
        %v5269 = vld [vmem:[%s5268] sm:$0xf]
        %v5270 = vld [vmem:[%s5268 + $0x4] sm:$0xf]
        %v5271 = vld [vmem:[%s5268 + $0x8] sm:$0xf]
        %v5272 = vld [vmem:[%s5268 + $0xc] sm:$0xf]
        %v5273 = vld [vmem:[%s5268 + $0x10] sm:$0xf]
        %v5274 = vld [vmem:[%s5268 + $0x14] sm:$0xf]
        %v5275 = vld [vmem:[%s5268 + $0x18] sm:$0xf]
        %v5276 = vld [vmem:[%s5268 + $0x1c] sm:$0xf]
        %v5285 = vunpack.c.l.b16 %v5269
        %v5286 = vunpack.c.l.b16 %v5270
        %v5287 = vunpack.c.l.b16 %v5271
        %v5288 = vunpack.c.l.b16 %v5272
        %v5289 = vunpack.c.l.b16 %v5273
        %v5290 = vunpack.c.l.b16 %v5274
        %v5291 = vunpack.c.l.b16 %v5275
        %v5292 = vunpack.c.l.b16 %v5276
        %v5293 = vpack.c.b16 %v5286, %v5285
        %v5294 = vpack.c.b16 %v5288, %v5287
        %v5295 = vpack.c.b16 %v5290, %v5289
        %v5296 = vpack.c.b16 %v5292, %v5291
        %v5302 = vsel %vm3431, %v4874, 0
        %5304 = vmatprep.subr.bf16.mxu0 0
        %5305 = vmatpush1.bf16.msra.mxu0 %v5293
        %5306 = vmatprep.subr.bf16.mxu0 0
        %5307 = vmatpush1.bf16.msra.mxu0 %v5294
        %5308 = vmatprep.subr.bf16.mxu0 0
        %5309 = vmatpush1.bf16.msra.mxu0 %v5295
        %5310 = vmatprep.subr.bf16.mxu0 0
        %5311 = vmatpush1.bf16.msra.mxu0 %v5296
        %5312 = vmatprep.subr.bf16.mxu0 0
        %5313 = vmatpush1.bf16.msra.mxu0 0
        %5314 = vmatprep.subr.bf16.mxu0 0
        %5315 = vmatpush1.bf16.msra.mxu0 0
        %5316 = vmatprep.subr.bf16.mxu0 0
        %5317 = vmatpush1.bf16.msra.mxu0 0
        %5318 = vmatprep.subr.bf16.mxu0 0
        %5319 = vmatpush1.bf16.msra.mxu0 0
        %5320 = vmatprep.subr.bf16.mxu0 0
        %5321 = vmatpush1.bf16.msra.mxu0 0
        %5322 = vmatprep.subr.bf16.mxu0 0
        %5323 = vmatpush1.bf16.msra.mxu0 0
        %5324 = vmatprep.subr.bf16.mxu0 0
        %5325 = vmatpush1.bf16.msra.mxu0 0
        %5326 = vmatprep.subr.bf16.mxu0 0
        %5327 = vmatpush1.bf16.msra.mxu0 0
        %5328 = vmatprep.subr.bf16.mxu0 0
        %5329 = vmatpush1.bf16.msra.mxu0 0
        %5330 = vmatprep.subr.bf16.mxu0 0
        %5331 = vmatpush1.bf16.msra.mxu0 0
        %5332 = vmatprep.subr.bf16.mxu0 0
        %5333 = vmatpush1.bf16.msra.mxu0 0
        %5334 = vmatprep.subr.bf16.mxu0 0
        %5335 = vmatpush1.bf16.msra.mxu0 0
        %5336 = vmatprep.mubr.bf16.mxu0 0
        %5337 = vmatmul.mubr.bf16.gmra.mrb[0].mxu0 %v5302
        %v5338 = vpop.f32.mrb[0].mxu0
        %v5339 = vadd.f32 0.0, %v5338
        %v5340 = vpop.f32.mrb[0].mxu0
        %v5341 = vpop.f32.mrb[0].mxu0
        %v5342 = vadd.f32 0.0, %v5341
        %v5343 = vpop.f32.mrb[0].mxu0
        %5344 = vdwg.mxu0
        %v5345 = vadd.f32 %v5266, %v5339
        %v5346 = vadd.f32 %v5267, %v5342
        %s5347 = scalar_lea.vmem %s8, 192
        %v5348 = vld [vmem:[%s5347] sm:$0xf]
        %v5349 = vld [vmem:[%s5347 + $0x4] sm:$0xf]
        %v5350 = vld [vmem:[%s5347 + $0x8] sm:$0xf]
        %v5351 = vld [vmem:[%s5347 + $0xc] sm:$0xf]
        %v5352 = vld [vmem:[%s5347 + $0x10] sm:$0xf]
        %v5353 = vld [vmem:[%s5347 + $0x14] sm:$0xf]
        %v5354 = vld [vmem:[%s5347 + $0x18] sm:$0xf]
        %v5355 = vld [vmem:[%s5347 + $0x1c] sm:$0xf]
        %v5364 = vunpack.c.l.b16 %v5348
        %v5365 = vunpack.c.l.b16 %v5349
        %v5366 = vunpack.c.l.b16 %v5350
        %v5367 = vunpack.c.l.b16 %v5351
        %v5368 = vunpack.c.l.b16 %v5352
        %v5369 = vunpack.c.l.b16 %v5353
        %v5370 = vunpack.c.l.b16 %v5354
        %v5371 = vunpack.c.l.b16 %v5355
        %v5372 = vpack.c.b16 %v5365, %v5364
        %v5373 = vpack.c.b16 %v5367, %v5366
        %v5374 = vpack.c.b16 %v5369, %v5368
        %v5375 = vpack.c.b16 %v5371, %v5370
        %v5381 = vsel %vm3431, %v4875, 0
        %5383 = vmatprep.subr.bf16.mxu0 0
        %5384 = vmatpush1.bf16.msra.mxu0 %v5372
        %5385 = vmatprep.subr.bf16.mxu0 0
        %5386 = vmatpush1.bf16.msra.mxu0 %v5373
        %5387 = vmatprep.subr.bf16.mxu0 0
        %5388 = vmatpush1.bf16.msra.mxu0 %v5374
        %5389 = vmatprep.subr.bf16.mxu0 0
        %5390 = vmatpush1.bf16.msra.mxu0 %v5375
        %5391 = vmatprep.subr.bf16.mxu0 0
        %5392 = vmatpush1.bf16.msra.mxu0 0
        %5393 = vmatprep.subr.bf16.mxu0 0
        %5394 = vmatpush1.bf16.msra.mxu0 0
        %5395 = vmatprep.subr.bf16.mxu0 0
        %5396 = vmatpush1.bf16.msra.mxu0 0
        %5397 = vmatprep.subr.bf16.mxu0 0
        %5398 = vmatpush1.bf16.msra.mxu0 0
        %5399 = vmatprep.subr.bf16.mxu0 0
        %5400 = vmatpush1.bf16.msra.mxu0 0
        %5401 = vmatprep.subr.bf16.mxu0 0
        %5402 = vmatpush1.bf16.msra.mxu0 0
        %5403 = vmatprep.subr.bf16.mxu0 0
        %5404 = vmatpush1.bf16.msra.mxu0 0
        %5405 = vmatprep.subr.bf16.mxu0 0
        %5406 = vmatpush1.bf16.msra.mxu0 0
        %5407 = vmatprep.subr.bf16.mxu0 0
        %5408 = vmatpush1.bf16.msra.mxu0 0
        %5409 = vmatprep.subr.bf16.mxu0 0
        %5410 = vmatpush1.bf16.msra.mxu0 0
        %5411 = vmatprep.subr.bf16.mxu0 0
        %5412 = vmatpush1.bf16.msra.mxu0 0
        %5413 = vmatprep.subr.bf16.mxu0 0
        %5414 = vmatpush1.bf16.msra.mxu0 0
        %5415 = vmatprep.mubr.bf16.mxu0 0
        %5416 = vmatmul.mubr.bf16.gmra.mrb[0].mxu0 %v5381
        %v5417 = vpop.f32.mrb[0].mxu0
        %v5418 = vadd.f32 0.0, %v5417
        %v5419 = vpop.f32.mrb[0].mxu0
        %v5420 = vpop.f32.mrb[0].mxu0
        %v5421 = vadd.f32 0.0, %v5420
        %v5422 = vpop.f32.mrb[0].mxu0
        %5423 = vdwg.mxu0
        %v5424 = vadd.f32 %v5345, %v5418
        %v5425 = vadd.f32 %v5346, %v5421
        %s5426 = scalar_lea.vmem %s8, 224
        %v5427 = vld [vmem:[%s5426] sm:$0xf]
        %v5428 = vld [vmem:[%s5426 + $0x4] sm:$0xf]
        %v5429 = vld [vmem:[%s5426 + $0x8] sm:$0xf]
        %v5430 = vld [vmem:[%s5426 + $0xc] sm:$0xf]
        %v5431 = vld [vmem:[%s5426 + $0x10] sm:$0xf]
        %v5432 = vld [vmem:[%s5426 + $0x14] sm:$0xf]
        %v5433 = vld [vmem:[%s5426 + $0x18] sm:$0xf]
        %v5434 = vld [vmem:[%s5426 + $0x1c] sm:$0xf]
        %v5443 = vunpack.c.l.b16 %v5427
        %v5444 = vunpack.c.l.b16 %v5428
        %v5445 = vunpack.c.l.b16 %v5429
        %v5446 = vunpack.c.l.b16 %v5430
        %v5447 = vunpack.c.l.b16 %v5431
        %v5448 = vunpack.c.l.b16 %v5432
        %v5449 = vunpack.c.l.b16 %v5433
        %v5450 = vunpack.c.l.b16 %v5434
        %v5451 = vpack.c.b16 %v5444, %v5443
        %v5452 = vpack.c.b16 %v5446, %v5445
        %v5453 = vpack.c.b16 %v5448, %v5447
        %v5454 = vpack.c.b16 %v5450, %v5449
        %v5460 = vsel %vm3431, %v4876, 0
        %5462 = vmatprep.subr.bf16.mxu0 0
        %5463 = vmatpush1.bf16.msra.mxu0 %v5451
        %5464 = vmatprep.subr.bf16.mxu0 0
        %5465 = vmatpush1.bf16.msra.mxu0 %v5452
        %5466 = vmatprep.subr.bf16.mxu0 0
        %5467 = vmatpush1.bf16.msra.mxu0 %v5453
        %5468 = vmatprep.subr.bf16.mxu0 0
        %5469 = vmatpush1.bf16.msra.mxu0 %v5454
        %5470 = vmatprep.subr.bf16.mxu0 0
        %5471 = vmatpush1.bf16.msra.mxu0 0
        %5472 = vmatprep.subr.bf16.mxu0 0
        %5473 = vmatpush1.bf16.msra.mxu0 0
        %5474 = vmatprep.subr.bf16.mxu0 0
        %5475 = vmatpush1.bf16.msra.mxu0 0
        %5476 = vmatprep.subr.bf16.mxu0 0
        %5477 = vmatpush1.bf16.msra.mxu0 0
        %5478 = vmatprep.subr.bf16.mxu0 0
        %5479 = vmatpush1.bf16.msra.mxu0 0
        %5480 = vmatprep.subr.bf16.mxu0 0
        %5481 = vmatpush1.bf16.msra.mxu0 0
        %5482 = vmatprep.subr.bf16.mxu0 0
        %5483 = vmatpush1.bf16.msra.mxu0 0
        %5484 = vmatprep.subr.bf16.mxu0 0
        %5485 = vmatpush1.bf16.msra.mxu0 0
        %5486 = vmatprep.subr.bf16.mxu0 0
        %5487 = vmatpush1.bf16.msra.mxu0 0
        %5488 = vmatprep.subr.bf16.mxu0 0
        %5489 = vmatpush1.bf16.msra.mxu0 0
        %5490 = vmatprep.subr.bf16.mxu0 0
        %5491 = vmatpush1.bf16.msra.mxu0 0
        %5492 = vmatprep.subr.bf16.mxu0 0
        %5493 = vmatpush1.bf16.msra.mxu0 0
        %5494 = vmatprep.mubr.bf16.mxu0 0
        %5495 = vmatmul.mubr.bf16.gmra.mrb[0].mxu0 %v5460
        %v5496 = vpop.f32.mrb[0].mxu0
        %v5497 = vadd.f32 0.0, %v5496
        %v5498 = vpop.f32.mrb[0].mxu0
        %v5499 = vpop.f32.mrb[0].mxu0
        %v5500 = vadd.f32 0.0, %v5499
        %v5501 = vpop.f32.mrb[0].mxu0
        %5502 = vdwg.mxu0
        %v5503 = vadd.f32 %v5424, %v5497
        %v5504 = vadd.f32 %v5425, %v5500
        %s5505 = scalar_lea.vmem %s8, 256
        %v5506 = vld [vmem:[%s5505] sm:$0xf]
        %v5507 = vld [vmem:[%s5505 + $0x4] sm:$0xf]
        %v5508 = vld [vmem:[%s5505 + $0x8] sm:$0xf]
        %v5509 = vld [vmem:[%s5505 + $0xc] sm:$0xf]
        %v5510 = vld [vmem:[%s5505 + $0x10] sm:$0xf]
        %v5511 = vld [vmem:[%s5505 + $0x14] sm:$0xf]
        %v5512 = vld [vmem:[%s5505 + $0x18] sm:$0xf]
        %v5513 = vld [vmem:[%s5505 + $0x1c] sm:$0xf]
        %v5522 = vunpack.c.l.b16 %v5506
        %v5523 = vunpack.c.l.b16 %v5507
        %v5524 = vunpack.c.l.b16 %v5508
        %v5525 = vunpack.c.l.b16 %v5509
        %v5526 = vunpack.c.l.b16 %v5510
        %v5527 = vunpack.c.l.b16 %v5511
        %v5528 = vunpack.c.l.b16 %v5512
        %v5529 = vunpack.c.l.b16 %v5513
        %v5530 = vpack.c.b16 %v5523, %v5522
        %v5531 = vpack.c.b16 %v5525, %v5524
        %v5532 = vpack.c.b16 %v5527, %v5526
        %v5533 = vpack.c.b16 %v5529, %v5528
        %v5539 = vsel %vm3431, %v4877, 0
        %5541 = vmatprep.subr.bf16.mxu0 0
        %5542 = vmatpush1.bf16.msra.mxu0 %v5530
        %5543 = vmatprep.subr.bf16.mxu0 0
        %5544 = vmatpush1.bf16.msra.mxu0 %v5531
        %5545 = vmatprep.subr.bf16.mxu0 0
        %5546 = vmatpush1.bf16.msra.mxu0 %v5532
        %5547 = vmatprep.subr.bf16.mxu0 0
        %5548 = vmatpush1.bf16.msra.mxu0 %v5533
        %5549 = vmatprep.subr.bf16.mxu0 0
        %5550 = vmatpush1.bf16.msra.mxu0 0
        %5551 = vmatprep.subr.bf16.mxu0 0
        %5552 = vmatpush1.bf16.msra.mxu0 0
        %5553 = vmatprep.subr.bf16.mxu0 0
        %5554 = vmatpush1.bf16.msra.mxu0 0
        %5555 = vmatprep.subr.bf16.mxu0 0
        %5556 = vmatpush1.bf16.msra.mxu0 0
        %5557 = vmatprep.subr.bf16.mxu0 0
        %5558 = vmatpush1.bf16.msra.mxu0 0
        %5559 = vmatprep.subr.bf16.mxu0 0
        %5560 = vmatpush1.bf16.msra.mxu0 0
        %5561 = vmatprep.subr.bf16.mxu0 0
        %5562 = vmatpush1.bf16.msra.mxu0 0
        %5563 = vmatprep.subr.bf16.mxu0 0
        %5564 = vmatpush1.bf16.msra.mxu0 0
        %5565 = vmatprep.subr.bf16.mxu0 0
        %5566 = vmatpush1.bf16.msra.mxu0 0
        %5567 = vmatprep.subr.bf16.mxu0 0
        %5568 = vmatpush1.bf16.msra.mxu0 0
        %5569 = vmatprep.subr.bf16.mxu0 0
        %5570 = vmatpush1.bf16.msra.mxu0 0
        %5571 = vmatprep.subr.bf16.mxu0 0
        %5572 = vmatpush1.bf16.msra.mxu0 0
        %5573 = vmatprep.mubr.bf16.mxu0 0
        %5574 = vmatmul.mubr.bf16.gmra.mrb[0].mxu0 %v5539
        %v5575 = vpop.f32.mrb[0].mxu0
        %v5576 = vadd.f32 0.0, %v5575
        %v5577 = vpop.f32.mrb[0].mxu0
        %v5578 = vpop.f32.mrb[0].mxu0
        %v5579 = vadd.f32 0.0, %v5578
        %v5580 = vpop.f32.mrb[0].mxu0
        %5581 = vdwg.mxu0
        %v5582 = vadd.f32 %v5503, %v5576
        %v5583 = vadd.f32 %v5504, %v5579
        %v5584 = vld [vmem:[%s9] sm:$0x1]
        %v5586 = vlaneseq
        %v5587 = vshrl.u32 %v5586, 7
        %v5588 = vsub.s32 0, %v5587
        %v5589 = vrot.slane %v5584, %v5588
        %v5591 = vadd.f32 %v5582, %v5589
        %v5592 = vadd.f32 %v5583, %v5589
        %vm5593 = vcmask 64512
        %5594 = vst.msk [vmem:[%s352] sm:$0xff] %vm5593, %v5591
        %5595 = vst.msk [vmem:[%s352 + $0x8] sm:$0xff] %vm5593, %v5592
        %s5596 = sand.u32 %s247, 1
        %s5597 = scalar_lea.sflag [#allocation3], %s5596
        %s5598 = sand.u32 %s247, 1
        %s5599 = smul.addr %s5598, 16
        %s5600 = scalar_lea.vmem [#allocation2], %s5599
        // Predicated region
        $region61: #{encoder_forward.1} parent=59 // pred_check
          %p5601 = pneg %p257
        $region62: #{encoder_forward.1} parent=59 // pred_check_branch
          %5603 = sbr.rel (%p5601) target = $region64
        $region63: #{encoder_forward.1} parent=59 // pred_region
          %s5605 = ssub.s32 256, 256
          %5606 = vsyncadd %s5597, %s5605
          %s5607 = smul.addr %s24, 2
          %s5608 = smul.addr %s5607, 128
          %s5609 = scalar_lea.hbm %s10, %s5608
          %s5610 = sshll.u32 %s5600, 4
          %s5611 = int_to_ptr.vmem [resolvable:$true] %s5610
          %5616 = dma.vmem_to_hbm [thread:$0]  %s5611, 256, %s5609, %s5597, 128, 128, 8
        $region64: #{encoder_forward.1} parent=59 // pred_fallthru
          _
      $region60: #{encoder_forward.1} parent=5 // pred_fallthru
        _
      %p5617 = scmp.le.s32.totalorder 2, %s19
      // Predicated region
      $region65: #{encoder_forward.1} parent=5 // pred_check
        %p5618 = pneg %p5617
      $region66: #{encoder_forward.1} parent=5 // pred_check_branch
        %5620 = sbr.rel (%p5618) target = $region68
      $region67: #{encoder_forward.1} parent=5 // pred_region
        %s5621 = ssub.s32 %s19, 2
        // Predicated region
        $region69: #{encoder_forward.1} parent=67 // pred_check
          %p5622 = pneg %p263
        $region70: #{encoder_forward.1} parent=67 // pred_check_branch
          %5624 = sbr.rel (%p5622) target = $region72
        $region71: #{encoder_forward.1} parent=67 // pred_region
          %s5625 = sand.u32 %s248, 1
          %s5626 = scalar_lea.sflag [#allocation3], %s5625
          %s5627 = sand.u32 %s248, 1
          %s5628 = smul.addr %s5627, 16
          %s5629 = scalar_lea.vmem [#allocation2], %s5628
          %5630 = dma.done %s5626, 256
        $region72: #{encoder_forward.1} parent=67 // pred_fallthru
          _
      $region68: #{encoder_forward.1} parent=5 // pred_fallthru
        _
    $region6: #{encoder_forward.1} parent=1 // loop_footer
      %s23 = sadd.s32 1, %s19
    $region7: #{encoder_forward.1} parent=1 // loop_footer_branch
      %18 = sbr.rel target = $region3
    $region8: #{encoder_forward.1} parent=1 // loop_exit
      _
    %5631 = vsyncpa [#allocation3], 1
    %s5632 = scalar_lea.sflag [#allocation3], 1
    %5633 = vsyncpa %s5632, 1

</llo_original>
